<compile_context>
chip_gen: v5e
topology: v5e:2x2
jax: 0.10.0
libtpu: 0.0.40
codegen_flags: <defaults>
</compile_context>

<pallas_src>
import jax
import jax.numpy as jnp
from jax.experimental import pallas as pl
from jax.experimental.pallas import tpu as pltpu

INPUT_SIZE = 112
IN_PAD = 128                 # zero-padded input feature dim
HIDDEN = 256
NUM_LAYERS = 2
NUM_HEADS = 4
FFN = HIDDEN * 4
OUT = HIDDEN // 2            # 128
LN_EPS = 1e-5                # nn.LayerNorm default
L2_EPS = 1e-12               # F.normalize default

# packed param-vector length: bi + per-layer(bvo,g1,b1,c1,c2,g2,b2) + (bout,gn,bn)
PVEC_LEN = HIDDEN + NUM_LAYERS * (6 * HIDDEN + FFN) + 3 * OUT   # = 5760 (multiple of 128)


def _layernorm(x, g, b):
    mu = jnp.mean(x, axis=-1, keepdims=True)
    var = jnp.mean((x - mu) ** 2, axis=-1, keepdims=True)
    return (x - mu) * jax.lax.rsqrt(var + LN_EPS) * g + b


def _round_up(n, m):
    return ((n + m - 1) // m) * m


def transformer_encoder_kernel(x_ref, wi_ref,
                               wvo0_ref, w1a_ref, w2a_ref,
                               wvo1_ref, w1b_ref, w2b_ref,
                               wout_ref, p_ref, o_ref):
    """One row-tile of the whole forward pass. Weights are VMEM-resident bf16 tiles;
    all bias/LN vectors live in the single packed f32 vector p_ref."""

    def seg(off, n):
        # static, lane-aligned slice of the packed param vector -> (1, n) f32
        return p_ref[:, off:off + n]

    def dot_bf16(a, w_ref):
        # bf16 MXU matmul with f32 accumulation
        return jnp.dot(a.astype(jnp.bfloat16), w_ref[...],
                       preferred_element_type=jnp.float32)

    off = 0
    # input_proj (input dim zero-padded to 128; padded rows of wi are zero)
    h = dot_bf16(x_ref[...], wi_ref) + seg(off, HIDDEN)
    off += HIDDEN

    layer_w = ((wvo0_ref, w1a_ref, w2a_ref), (wvo1_ref, w1b_ref, w2b_ref))
    for l in range(NUM_LAYERS):
        wvo, w1, w2 = layer_w[l]
        bvo = seg(off, HIDDEN); off += HIDDEN
        g1 = seg(off, HIDDEN); off += HIDDEN
        b1 = seg(off, HIDDEN); off += HIDDEN
        c1 = seg(off, FFN);    off += FFN
        c2 = seg(off, HIDDEN); off += HIDDEN
        g2 = seg(off, HIDDEN); off += HIDDEN
        b2 = seg(off, HIDDEN); off += HIDDEN

        # seq_len == 1 -> softmax over a single key is exactly 1, and the V/out
        # projections are fused host-side:  attn = h @ (Wv^T Wo^T) + (bv Wo^T + bo)
        attn = dot_bf16(h, wvo) + bvo
        h = _layernorm(h + attn, g1, b1)

        ff = jnp.maximum(dot_bf16(h, w1) + c1, 0.0)
        ff = dot_bf16(ff, w2) + c2
        h = _layernorm(h + ff, g2, b2)

    bout = seg(off, OUT); off += OUT
    gn = seg(off, OUT);   off += OUT
    bn = seg(off, OUT);   off += OUT

    # output_proj -> LayerNorm -> L2 normalize (rsqrt-multiply on EUP)
    y = dot_bf16(h, wout_ref) + bout
    y = _layernorm(y, gn, bn)
    sumsq = jnp.sum(y * y, axis=-1, keepdims=True)
    o_ref[...] = y * jax.lax.rsqrt(jnp.maximum(sumsq, L2_EPS * L2_EPS))


def transformer_encoder_pallas(x, weights, packed_params, tile_m=256):
    """x: (N, INPUT_SIZE) f32. weights: list of bf16 (in,out) matrices.
    packed_params: (1, PVEC_LEN) f32."""
    N = x.shape[0]
    tm = min(tile_m, _round_up(N, 8))
    n_pad = _round_up(N, tm)

    x_pad = jnp.zeros((n_pad, IN_PAD), jnp.float32).at[:N, :INPUT_SIZE].set(x)

    def resident(shape):
        # full-array block, same block index every step -> stays VMEM-resident
        return pl.BlockSpec(shape, lambda i: (0,) * len(shape))

    in_specs = [pl.BlockSpec((tm, IN_PAD), lambda i: (i, 0))]
    in_specs += [resident(w.shape) for w in weights]
    in_specs += [resident(packed_params.shape)]

    out = pl.pallas_call(
        transformer_encoder_kernel,
        out_shape=jax.ShapeDtypeStruct((n_pad, OUT), jnp.float32),
        grid=(n_pad // tm,),
        in_specs=in_specs,
        out_specs=pl.BlockSpec((tm, OUT), lambda i: (i, 0)),
        compiler_params=pltpu.CompilerParams(
            dimension_semantics=("parallel",),
            vmem_limit_bytes=32 << 20),
    )(x_pad, *weights, packed_params)
    return out[:N]


# ---------------- deterministic parameter construction (PyTorch shapes) ----------------
def init_params(key):
    def nrm(k, shape, scale=0.05):
        return scale * jax.random.normal(k, shape, dtype=jnp.float32)

    keys = iter(jax.random.split(key, 64))
    p = {
        "wi": nrm(next(keys), (HIDDEN, INPUT_SIZE)),       # nn.Linear weight (out,in)
        "bi": nrm(next(keys), (HIDDEN,)),
        "layers": [],
        "wout": nrm(next(keys), (OUT, HIDDEN)),
        "bout": nrm(next(keys), (OUT,)),
        "gn": 1.0 + nrm(next(keys), (OUT,), 0.1),
        "bn": nrm(next(keys), (OUT,), 0.1),
    }
    for _ in range(NUM_LAYERS):
        p["layers"].append({
            "in_proj_w": nrm(next(keys), (3 * HIDDEN, HIDDEN)),
            "in_proj_b": nrm(next(keys), (3 * HIDDEN,)),
            "out_proj_w": nrm(next(keys), (HIDDEN, HIDDEN)),
            "out_proj_b": nrm(next(keys), (HIDDEN,)),
            "ln1_g": 1.0 + nrm(next(keys), (HIDDEN,), 0.1),
            "ln1_b": nrm(next(keys), (HIDDEN,), 0.1),
            "w1": nrm(next(keys), (FFN, HIDDEN)),
            "c1": nrm(next(keys), (FFN,)),
            "w2": nrm(next(keys), (HIDDEN, FFN)),
            "c2": nrm(next(keys), (HIDDEN,)),
            "ln2_g": 1.0 + nrm(next(keys), (HIDDEN,), 0.1),
            "ln2_b": nrm(next(keys), (HIDDEN,), 0.1),
        })
    return p


def prepare_kernel_params(p):
    """Host-side prep: fuse V/out projections, transpose to (in,out), cast matrices to
    bf16, zero-pad wi's input dim, and pack all 1-D vectors into one (1, PVEC_LEN) f32."""
    def bf(w):
        return w.astype(jnp.bfloat16)

    wi_pad = jnp.zeros((IN_PAD, HIDDEN), jnp.float32).at[:INPUT_SIZE].set(p["wi"].T)
    weights = [bf(wi_pad)]
    vecs = [p["bi"]]
    for l in p["layers"]:
        wv = l["in_proj_w"][2 * HIDDEN:3 * HIDDEN]   # V slice (q/k unused: S=1)
        bv = l["in_proj_b"][2 * HIDDEN:3 * HIDDEN]
        wo, bo = l["out_proj_w"], l["out_proj_b"]
        wvo = wv.T @ wo.T                            # fused (in,out) attention matrix
        bvo = bv @ wo.T + bo
        weights += [bf(wvo), bf(l["w1"].T), bf(l["w2"].T)]
        vecs += [bvo, l["ln1_g"], l["ln1_b"], l["c1"], l["c2"], l["ln2_g"], l["ln2_b"]]
    weights.append(bf(p["wout"].T))
    vecs += [p["bout"], p["gn"], p["bn"]]
    packed = jnp.concatenate(vecs).astype(jnp.float32)[None]   # (1, PVEC_LEN)
    assert packed.shape == (1, PVEC_LEN)
    return weights, packed


# ---------------- pure-JAX reference (full MHA, matches PyTorch semantics, f32) ----------------
def reference_forward(x, p):
    def lin(t, W, b):  # PyTorch nn.Linear: y = t @ W.T + b
        return t @ W.T + b

    h = lin(x, p["wi"], p["bi"])          # (N, H)
    s = h[None]                           # (S=1, N, H)
    S, N, E = s.shape
    hd = E // NUM_HEADS
    for l in p["layers"]:
        qkv = jnp.einsum("snd,fd->snf", s, l["in_proj_w"]) + l["in_proj_b"]
        q, k, v = jnp.split(qkv, 3, axis=-1)

        def heads(t):
            return t.reshape(S, N, NUM_HEADS, hd).transpose(1, 2, 0, 3)  # (N,H,S,hd)

        qh, kh, vh = heads(q), heads(k), heads(v)
        scores = jnp.einsum("nhqd,nhkd->nhqk", qh, kh) / jnp.sqrt(float(hd))
        att = jax.nn.softmax(scores, axis=-1)
        ctx = jnp.einsum("nhqk,nhkd->nhqd", att, vh).transpose(2, 0, 1, 3).reshape(S, N, E)
        attn_out = lin(ctx, l["out_proj_w"], l["out_proj_b"])
        s = _layernorm(s + attn_out, l["ln1_g"], l["ln1_b"])
        ff = lin(jax.nn.relu(lin(s, l["w1"], l["c1"])), l["w2"], l["c2"])
        s = _layernorm(s + ff, l["ln2_g"], l["ln2_b"])
    y = lin(s[0], p["wout"], p["bout"])
    y = _layernorm(y, p["gn"], p["bn"])
    nrm = jnp.sqrt(jnp.sum(y * y, axis=-1, keepdims=True))
    return y / jnp.maximum(nrm, L2_EPS)


if __name__ == "__main__":
    key = jax.random.PRNGKey(0)
    kx, kp = jax.random.split(key)
    N = 8
    x = jax.random.normal(kx, (N, INPUT_SIZE), dtype=jnp.float32)

    params = init_params(kp)
    weights, packed = prepare_kernel_params(params)

    out = jax.block_until_ready(transformer_encoder_pallas(x, weights, packed))
    ref = jax.block_until_ready(reference_forward(x, params))

    assert out.shape == (N, OUT)
    # bf16 weights / bf16 dot inputs vs the f32 reference -> loosened tolerance.
    max_err = float(jnp.max(jnp.abs(out - ref)))
    assert jnp.allclose(out, ref, atol=2e-2, rtol=2e-2), f"mismatch vs reference (max abs err {max_err})"
    print("KERNEL_OK")
</pallas_src>

<mosaic_0001>
module attributes {stable_mosaic.version = 11 : i64} {
  func.func @transformer_encoder_kernel(%arg0: i32, %arg1: memref<8x128xf32, #tpu.memory_space<vmem>>, %arg2: memref<128x256xbf16, #tpu.memory_space<vmem>>, %arg3: memref<256x256xbf16, #tpu.memory_space<vmem>>, %arg4: memref<256x1024xbf16, #tpu.memory_space<vmem>>, %arg5: memref<1024x256xbf16, #tpu.memory_space<vmem>>, %arg6: memref<256x256xbf16, #tpu.memory_space<vmem>>, %arg7: memref<256x1024xbf16, #tpu.memory_space<vmem>>, %arg8: memref<1024x256xbf16, #tpu.memory_space<vmem>>, %arg9: memref<256x128xbf16, #tpu.memory_space<vmem>>, %arg10: memref<1x5760xf32, #tpu.memory_space<vmem>>, %arg11: memref<8x128xf32, #tpu.memory_space<vmem>>) attributes {dimension_semantics = [#tpu.dimension_semantics<parallel>], iteration_bounds = array<i64: 1>, scalar_prefetch = 0 : i64, scratch_operands = 0 : i64, tpu.core_type = #tpu.core_type<tc>, window_params = [{transform_indices = @transform_0, window_bounds = array<i64: 8, 128>}, {pipeline_mode = #tpu.pipeline_mode<synchronous>, transform_indices = @transform_1, window_bounds = array<i64: 128, 256>}, {pipeline_mode = #tpu.pipeline_mode<synchronous>, transform_indices = @transform_2, window_bounds = array<i64: 256, 256>}, {pipeline_mode = #tpu.pipeline_mode<synchronous>, transform_indices = @transform_3, window_bounds = array<i64: 256, 1024>}, {pipeline_mode = #tpu.pipeline_mode<synchronous>, transform_indices = @transform_4, window_bounds = array<i64: 1024, 256>}, {pipeline_mode = #tpu.pipeline_mode<synchronous>, transform_indices = @transform_5, window_bounds = array<i64: 256, 256>}, {pipeline_mode = #tpu.pipeline_mode<synchronous>, transform_indices = @transform_6, window_bounds = array<i64: 256, 1024>}, {pipeline_mode = #tpu.pipeline_mode<synchronous>, transform_indices = @transform_7, window_bounds = array<i64: 1024, 256>}, {pipeline_mode = #tpu.pipeline_mode<synchronous>, transform_indices = @transform_8, window_bounds = array<i64: 256, 128>}, {pipeline_mode = #tpu.pipeline_mode<synchronous>, transform_indices = @transform_9, window_bounds = array<i64: 1, 5760>}, {transform_indices = @transform_10, window_bounds = array<i64: 8, 128>}]} {
    %c0 = arith.constant 0 : index
    %c0_0 = arith.constant 0 : index
    %0 = vector.load %arg1[%c0, %c0_0] : memref<8x128xf32, #tpu.memory_space<vmem>>, vector<8x128xf32>
    %1 = arith.truncf %0 : vector<8x128xf32> to vector<8x128xbf16>
    %c0_1 = arith.constant 0 : index
    %c0_2 = arith.constant 0 : index
    %2 = vector.load %arg2[%c0_1, %c0_2] : memref<128x256xbf16, #tpu.memory_space<vmem>>, vector<128x256xbf16>
    %cst = arith.constant dense<0.000000e+00> : vector<8x256xf32>
    %3 = tpu.matmul %1, %2, %cst {dimension_numbers = #tpu.dot_dimension_numbers<[1], [0], [0], [1], [0, 0, 1, 1], [], []>} : vector<8x128xbf16>, vector<128x256xbf16>, vector<8x256xf32> -> vector<8x256xf32>
    %c0_3 = arith.constant 0 : index
    %c0_4 = arith.constant 0 : index
    %4 = vector.load %arg10[%c0_3, %c0_4] : memref<1x5760xf32, #tpu.memory_space<vmem>>, vector<1x256xf32>
    %5 = vector.broadcast %4 : vector<1x256xf32> to vector<8x256xf32>
    %6 = arith.addf %3, %5 : vector<8x256xf32>
    %c0_5 = arith.constant 0 : index
    %c256 = arith.constant 256 : index
    %7 = vector.load %arg10[%c0_5, %c256] : memref<1x5760xf32, #tpu.memory_space<vmem>>, vector<1x256xf32>
    %c0_6 = arith.constant 0 : index
    %c512 = arith.constant 512 : index
    %8 = vector.load %arg10[%c0_6, %c512] : memref<1x5760xf32, #tpu.memory_space<vmem>>, vector<1x256xf32>
    %c0_7 = arith.constant 0 : index
    %c768 = arith.constant 768 : index
    %9 = vector.load %arg10[%c0_7, %c768] : memref<1x5760xf32, #tpu.memory_space<vmem>>, vector<1x256xf32>
    %c0_8 = arith.constant 0 : index
    %c1024 = arith.constant 1024 : index
    %10 = vector.load %arg10[%c0_8, %c1024] : memref<1x5760xf32, #tpu.memory_space<vmem>>, vector<1x1024xf32>
    %c0_9 = arith.constant 0 : index
    %c2048 = arith.constant 2048 : index
    %11 = vector.load %arg10[%c0_9, %c2048] : memref<1x5760xf32, #tpu.memory_space<vmem>>, vector<1x256xf32>
    %c0_10 = arith.constant 0 : index
    %c2304 = arith.constant 2304 : index
    %12 = vector.load %arg10[%c0_10, %c2304] : memref<1x5760xf32, #tpu.memory_space<vmem>>, vector<1x256xf32>
    %c0_11 = arith.constant 0 : index
    %c2560 = arith.constant 2560 : index
    %13 = vector.load %arg10[%c0_11, %c2560] : memref<1x5760xf32, #tpu.memory_space<vmem>>, vector<1x256xf32>
    %14 = arith.truncf %6 : vector<8x256xf32> to vector<8x256xbf16>
    %c0_12 = arith.constant 0 : index
    %c0_13 = arith.constant 0 : index
    %15 = vector.load %arg3[%c0_12, %c0_13] : memref<256x256xbf16, #tpu.memory_space<vmem>>, vector<256x256xbf16>
    %cst_14 = arith.constant dense<0.000000e+00> : vector<8x256xf32>
    %16 = tpu.matmul %14, %15, %cst_14 {dimension_numbers = #tpu.dot_dimension_numbers<[1], [0], [0], [1], [0, 0, 1, 1], [], []>} : vector<8x256xbf16>, vector<256x256xbf16>, vector<8x256xf32> -> vector<8x256xf32>
    %17 = vector.broadcast %7 : vector<1x256xf32> to vector<8x256xf32>
    %18 = arith.addf %16, %17 : vector<8x256xf32>
    %19 = arith.addf %6, %18 : vector<8x256xf32>
    %cst_15 = arith.constant dense<0.000000e+00> : vector<8xf32>
    %20 = vector.multi_reduction <add>, %19, %cst_15 [1] : vector<8x256xf32> to vector<8xf32>
    %21 = vector.shape_cast %20 : vector<8xf32> to vector<8x1xf32>
    %cst_16 = arith.constant 2.560000e+02 : f32
    %22 = vector.broadcast %cst_16 : f32 to vector<8x1xf32>
    %23 = arith.divf %21, %22 : vector<8x1xf32>
    %24 = vector.broadcast %23 : vector<8x1xf32> to vector<8x256xf32>
    %25 = arith.subf %19, %24 : vector<8x256xf32>
    %26 = arith.mulf %25, %25 : vector<8x256xf32>
    %cst_17 = arith.constant dense<0.000000e+00> : vector<8xf32>
    %27 = vector.multi_reduction <add>, %26, %cst_17 [1] : vector<8x256xf32> to vector<8xf32>
    %28 = vector.shape_cast %27 : vector<8xf32> to vector<8x1xf32>
    %cst_18 = arith.constant 2.560000e+02 : f32
    %29 = vector.broadcast %cst_18 : f32 to vector<8x1xf32>
    %30 = arith.divf %28, %29 : vector<8x1xf32>
    %31 = vector.broadcast %23 : vector<8x1xf32> to vector<8x256xf32>
    %32 = arith.subf %19, %31 : vector<8x256xf32>
    %cst_19 = arith.constant 9.99999974E-6 : f32
    %33 = vector.broadcast %cst_19 : f32 to vector<8x1xf32>
    %34 = arith.addf %30, %33 : vector<8x1xf32>
    %35 = math.rsqrt %34 : vector<8x1xf32>
    %36 = vector.broadcast %35 : vector<8x1xf32> to vector<8x256xf32>
    %37 = arith.mulf %32, %36 : vector<8x256xf32>
    %38 = vector.broadcast %8 : vector<1x256xf32> to vector<8x256xf32>
    %39 = arith.mulf %37, %38 : vector<8x256xf32>
    %40 = vector.broadcast %9 : vector<1x256xf32> to vector<8x256xf32>
    %41 = arith.addf %39, %40 : vector<8x256xf32>
    %42 = arith.truncf %41 : vector<8x256xf32> to vector<8x256xbf16>
    %c0_20 = arith.constant 0 : index
    %c0_21 = arith.constant 0 : index
    %43 = vector.load %arg4[%c0_20, %c0_21] : memref<256x1024xbf16, #tpu.memory_space<vmem>>, vector<256x1024xbf16>
    %cst_22 = arith.constant dense<0.000000e+00> : vector<8x1024xf32>
    %44 = tpu.matmul %42, %43, %cst_22 {dimension_numbers = #tpu.dot_dimension_numbers<[1], [0], [0], [1], [0, 0, 1, 1], [], []>} : vector<8x256xbf16>, vector<256x1024xbf16>, vector<8x1024xf32> -> vector<8x1024xf32>
    %45 = vector.broadcast %10 : vector<1x1024xf32> to vector<8x1024xf32>
    %46 = arith.addf %44, %45 : vector<8x1024xf32>
    %cst_23 = arith.constant 0.000000e+00 : f32
    %47 = vector.broadcast %cst_23 : f32 to vector<8x1024xf32>
    %48 = arith.maximumf %46, %47 : vector<8x1024xf32>
    %49 = arith.truncf %48 : vector<8x1024xf32> to vector<8x1024xbf16>
    %c0_24 = arith.constant 0 : index
    %c0_25 = arith.constant 0 : index
    %50 = vector.load %arg5[%c0_24, %c0_25] : memref<1024x256xbf16, #tpu.memory_space<vmem>>, vector<1024x256xbf16>
    %cst_26 = arith.constant dense<0.000000e+00> : vector<8x256xf32>
    %51 = tpu.matmul %49, %50, %cst_26 {dimension_numbers = #tpu.dot_dimension_numbers<[1], [0], [0], [1], [0, 0, 1, 1], [], []>} : vector<8x1024xbf16>, vector<1024x256xbf16>, vector<8x256xf32> -> vector<8x256xf32>
    %52 = vector.broadcast %11 : vector<1x256xf32> to vector<8x256xf32>
    %53 = arith.addf %51, %52 : vector<8x256xf32>
    %54 = arith.addf %41, %53 : vector<8x256xf32>
    %cst_27 = arith.constant dense<0.000000e+00> : vector<8xf32>
    %55 = vector.multi_reduction <add>, %54, %cst_27 [1] : vector<8x256xf32> to vector<8xf32>
    %56 = vector.shape_cast %55 : vector<8xf32> to vector<8x1xf32>
    %cst_28 = arith.constant 2.560000e+02 : f32
    %57 = vector.broadcast %cst_28 : f32 to vector<8x1xf32>
    %58 = arith.divf %56, %57 : vector<8x1xf32>
    %59 = vector.broadcast %58 : vector<8x1xf32> to vector<8x256xf32>
    %60 = arith.subf %54, %59 : vector<8x256xf32>
    %61 = arith.mulf %60, %60 : vector<8x256xf32>
    %cst_29 = arith.constant dense<0.000000e+00> : vector<8xf32>
    %62 = vector.multi_reduction <add>, %61, %cst_29 [1] : vector<8x256xf32> to vector<8xf32>
    %63 = vector.shape_cast %62 : vector<8xf32> to vector<8x1xf32>
    %cst_30 = arith.constant 2.560000e+02 : f32
    %64 = vector.broadcast %cst_30 : f32 to vector<8x1xf32>
    %65 = arith.divf %63, %64 : vector<8x1xf32>
    %66 = vector.broadcast %58 : vector<8x1xf32> to vector<8x256xf32>
    %67 = arith.subf %54, %66 : vector<8x256xf32>
    %cst_31 = arith.constant 9.99999974E-6 : f32
    %68 = vector.broadcast %cst_31 : f32 to vector<8x1xf32>
    %69 = arith.addf %65, %68 : vector<8x1xf32>
    %70 = math.rsqrt %69 : vector<8x1xf32>
    %71 = vector.broadcast %70 : vector<8x1xf32> to vector<8x256xf32>
    %72 = arith.mulf %67, %71 : vector<8x256xf32>
    %73 = vector.broadcast %12 : vector<1x256xf32> to vector<8x256xf32>
    %74 = arith.mulf %72, %73 : vector<8x256xf32>
    %75 = vector.broadcast %13 : vector<1x256xf32> to vector<8x256xf32>
    %76 = arith.addf %74, %75 : vector<8x256xf32>
    %c0_32 = arith.constant 0 : index
    %c2816 = arith.constant 2816 : index
    %77 = vector.load %arg10[%c0_32, %c2816] : memref<1x5760xf32, #tpu.memory_space<vmem>>, vector<1x256xf32>
    %c0_33 = arith.constant 0 : index
    %c3072 = arith.constant 3072 : index
    %78 = vector.load %arg10[%c0_33, %c3072] : memref<1x5760xf32, #tpu.memory_space<vmem>>, vector<1x256xf32>
    %c0_34 = arith.constant 0 : index
    %c3328 = arith.constant 3328 : index
    %79 = vector.load %arg10[%c0_34, %c3328] : memref<1x5760xf32, #tpu.memory_space<vmem>>, vector<1x256xf32>
    %c0_35 = arith.constant 0 : index
    %c3584 = arith.constant 3584 : index
    %80 = vector.load %arg10[%c0_35, %c3584] : memref<1x5760xf32, #tpu.memory_space<vmem>>, vector<1x1024xf32>
    %c0_36 = arith.constant 0 : index
    %c4608 = arith.constant 4608 : index
    %81 = vector.load %arg10[%c0_36, %c4608] : memref<1x5760xf32, #tpu.memory_space<vmem>>, vector<1x256xf32>
    %c0_37 = arith.constant 0 : index
    %c4864 = arith.constant 4864 : index
    %82 = vector.load %arg10[%c0_37, %c4864] : memref<1x5760xf32, #tpu.memory_space<vmem>>, vector<1x256xf32>
    %c0_38 = arith.constant 0 : index
    %c5120 = arith.constant 5120 : index
    %83 = vector.load %arg10[%c0_38, %c5120] : memref<1x5760xf32, #tpu.memory_space<vmem>>, vector<1x256xf32>
    %84 = arith.truncf %76 : vector<8x256xf32> to vector<8x256xbf16>
    %c0_39 = arith.constant 0 : index
    %c0_40 = arith.constant 0 : index
    %85 = vector.load %arg6[%c0_39, %c0_40] : memref<256x256xbf16, #tpu.memory_space<vmem>>, vector<256x256xbf16>
    %cst_41 = arith.constant dense<0.000000e+00> : vector<8x256xf32>
    %86 = tpu.matmul %84, %85, %cst_41 {dimension_numbers = #tpu.dot_dimension_numbers<[1], [0], [0], [1], [0, 0, 1, 1], [], []>} : vector<8x256xbf16>, vector<256x256xbf16>, vector<8x256xf32> -> vector<8x256xf32>
    %87 = vector.broadcast %77 : vector<1x256xf32> to vector<8x256xf32>
    %88 = arith.addf %86, %87 : vector<8x256xf32>
    %89 = arith.addf %76, %88 : vector<8x256xf32>
    %cst_42 = arith.constant dense<0.000000e+00> : vector<8xf32>
    %90 = vector.multi_reduction <add>, %89, %cst_42 [1] : vector<8x256xf32> to vector<8xf32>
    %91 = vector.shape_cast %90 : vector<8xf32> to vector<8x1xf32>
    %cst_43 = arith.constant 2.560000e+02 : f32
    %92 = vector.broadcast %cst_43 : f32 to vector<8x1xf32>
    %93 = arith.divf %91, %92 : vector<8x1xf32>
    %94 = vector.broadcast %93 : vector<8x1xf32> to vector<8x256xf32>
    %95 = arith.subf %89, %94 : vector<8x256xf32>
    %96 = arith.mulf %95, %95 : vector<8x256xf32>
    %cst_44 = arith.constant dense<0.000000e+00> : vector<8xf32>
    %97 = vector.multi_reduction <add>, %96, %cst_44 [1] : vector<8x256xf32> to vector<8xf32>
    %98 = vector.shape_cast %97 : vector<8xf32> to vector<8x1xf32>
    %cst_45 = arith.constant 2.560000e+02 : f32
    %99 = vector.broadcast %cst_45 : f32 to vector<8x1xf32>
    %100 = arith.divf %98, %99 : vector<8x1xf32>
    %101 = vector.broadcast %93 : vector<8x1xf32> to vector<8x256xf32>
    %102 = arith.subf %89, %101 : vector<8x256xf32>
    %cst_46 = arith.constant 9.99999974E-6 : f32
    %103 = vector.broadcast %cst_46 : f32 to vector<8x1xf32>
    %104 = arith.addf %100, %103 : vector<8x1xf32>
    %105 = math.rsqrt %104 : vector<8x1xf32>
    %106 = vector.broadcast %105 : vector<8x1xf32> to vector<8x256xf32>
    %107 = arith.mulf %102, %106 : vector<8x256xf32>
    %108 = vector.broadcast %78 : vector<1x256xf32> to vector<8x256xf32>
    %109 = arith.mulf %107, %108 : vector<8x256xf32>
    %110 = vector.broadcast %79 : vector<1x256xf32> to vector<8x256xf32>
    %111 = arith.addf %109, %110 : vector<8x256xf32>
    %112 = arith.truncf %111 : vector<8x256xf32> to vector<8x256xbf16>
    %c0_47 = arith.constant 0 : index
    %c0_48 = arith.constant 0 : index
    %113 = vector.load %arg7[%c0_47, %c0_48] : memref<256x1024xbf16, #tpu.memory_space<vmem>>, vector<256x1024xbf16>
    %cst_49 = arith.constant dense<0.000000e+00> : vector<8x1024xf32>
    %114 = tpu.matmul %112, %113, %cst_49 {dimension_numbers = #tpu.dot_dimension_numbers<[1], [0], [0], [1], [0, 0, 1, 1], [], []>} : vector<8x256xbf16>, vector<256x1024xbf16>, vector<8x1024xf32> -> vector<8x1024xf32>
    %115 = vector.broadcast %80 : vector<1x1024xf32> to vector<8x1024xf32>
    %116 = arith.addf %114, %115 : vector<8x1024xf32>
    %cst_50 = arith.constant 0.000000e+00 : f32
    %117 = vector.broadcast %cst_50 : f32 to vector<8x1024xf32>
    %118 = arith.maximumf %116, %117 : vector<8x1024xf32>
    %119 = arith.truncf %118 : vector<8x1024xf32> to vector<8x1024xbf16>
    %c0_51 = arith.constant 0 : index
    %c0_52 = arith.constant 0 : index
    %120 = vector.load %arg8[%c0_51, %c0_52] : memref<1024x256xbf16, #tpu.memory_space<vmem>>, vector<1024x256xbf16>
    %cst_53 = arith.constant dense<0.000000e+00> : vector<8x256xf32>
    %121 = tpu.matmul %119, %120, %cst_53 {dimension_numbers = #tpu.dot_dimension_numbers<[1], [0], [0], [1], [0, 0, 1, 1], [], []>} : vector<8x1024xbf16>, vector<1024x256xbf16>, vector<8x256xf32> -> vector<8x256xf32>
    %122 = vector.broadcast %81 : vector<1x256xf32> to vector<8x256xf32>
    %123 = arith.addf %121, %122 : vector<8x256xf32>
    %124 = arith.addf %111, %123 : vector<8x256xf32>
    %cst_54 = arith.constant dense<0.000000e+00> : vector<8xf32>
    %125 = vector.multi_reduction <add>, %124, %cst_54 [1] : vector<8x256xf32> to vector<8xf32>
    %126 = vector.shape_cast %125 : vector<8xf32> to vector<8x1xf32>
    %cst_55 = arith.constant 2.560000e+02 : f32
    %127 = vector.broadcast %cst_55 : f32 to vector<8x1xf32>
    %128 = arith.divf %126, %127 : vector<8x1xf32>
    %129 = vector.broadcast %128 : vector<8x1xf32> to vector<8x256xf32>
    %130 = arith.subf %124, %129 : vector<8x256xf32>
    %131 = arith.mulf %130, %130 : vector<8x256xf32>
    %cst_56 = arith.constant dense<0.000000e+00> : vector<8xf32>
    %132 = vector.multi_reduction <add>, %131, %cst_56 [1] : vector<8x256xf32> to vector<8xf32>
    %133 = vector.shape_cast %132 : vector<8xf32> to vector<8x1xf32>
    %cst_57 = arith.constant 2.560000e+02 : f32
    %134 = vector.broadcast %cst_57 : f32 to vector<8x1xf32>
    %135 = arith.divf %133, %134 : vector<8x1xf32>
    %136 = vector.broadcast %128 : vector<8x1xf32> to vector<8x256xf32>
    %137 = arith.subf %124, %136 : vector<8x256xf32>
    %cst_58 = arith.constant 9.99999974E-6 : f32
    %138 = vector.broadcast %cst_58 : f32 to vector<8x1xf32>
    %139 = arith.addf %135, %138 : vector<8x1xf32>
    %140 = math.rsqrt %139 : vector<8x1xf32>
    %141 = vector.broadcast %140 : vector<8x1xf32> to vector<8x256xf32>
    %142 = arith.mulf %137, %141 : vector<8x256xf32>
    %143 = vector.broadcast %82 : vector<1x256xf32> to vector<8x256xf32>
    %144 = arith.mulf %142, %143 : vector<8x256xf32>
    %145 = vector.broadcast %83 : vector<1x256xf32> to vector<8x256xf32>
    %146 = arith.addf %144, %145 : vector<8x256xf32>
    %c0_59 = arith.constant 0 : index
    %c5376 = arith.constant 5376 : index
    %147 = vector.load %arg10[%c0_59, %c5376] : memref<1x5760xf32, #tpu.memory_space<vmem>>, vector<1x128xf32>
    %c0_60 = arith.constant 0 : index
    %c5504 = arith.constant 5504 : index
    %148 = vector.load %arg10[%c0_60, %c5504] : memref<1x5760xf32, #tpu.memory_space<vmem>>, vector<1x128xf32>
    %c0_61 = arith.constant 0 : index
    %c5632 = arith.constant 5632 : index
    %149 = vector.load %arg10[%c0_61, %c5632] : memref<1x5760xf32, #tpu.memory_space<vmem>>, vector<1x128xf32>
    %150 = arith.truncf %146 : vector<8x256xf32> to vector<8x256xbf16>
    %c0_62 = arith.constant 0 : index
    %c0_63 = arith.constant 0 : index
    %151 = vector.load %arg9[%c0_62, %c0_63] : memref<256x128xbf16, #tpu.memory_space<vmem>>, vector<256x128xbf16>
    %cst_64 = arith.constant dense<0.000000e+00> : vector<8x128xf32>
    %152 = tpu.matmul %150, %151, %cst_64 {dimension_numbers = #tpu.dot_dimension_numbers<[1], [0], [0], [1], [0, 0, 1, 1], [], []>} : vector<8x256xbf16>, vector<256x128xbf16>, vector<8x128xf32> -> vector<8x128xf32>
    %153 = vector.broadcast %147 : vector<1x128xf32> to vector<8x128xf32>
    %154 = arith.addf %152, %153 : vector<8x128xf32>
    %cst_65 = arith.constant dense<0.000000e+00> : vector<8xf32>
    %155 = vector.multi_reduction <add>, %154, %cst_65 [1] : vector<8x128xf32> to vector<8xf32>
    %156 = vector.shape_cast %155 : vector<8xf32> to vector<8x1xf32>
    %cst_66 = arith.constant 1.280000e+02 : f32
    %157 = vector.broadcast %cst_66 : f32 to vector<8x1xf32>
    %158 = arith.divf %156, %157 : vector<8x1xf32>
    %159 = vector.broadcast %158 : vector<8x1xf32> to vector<8x128xf32>
    %160 = arith.subf %154, %159 : vector<8x128xf32>
    %161 = arith.mulf %160, %160 : vector<8x128xf32>
    %cst_67 = arith.constant dense<0.000000e+00> : vector<8xf32>
    %162 = vector.multi_reduction <add>, %161, %cst_67 [1] : vector<8x128xf32> to vector<8xf32>
    %163 = vector.shape_cast %162 : vector<8xf32> to vector<8x1xf32>
    %cst_68 = arith.constant 1.280000e+02 : f32
    %164 = vector.broadcast %cst_68 : f32 to vector<8x1xf32>
    %165 = arith.divf %163, %164 : vector<8x1xf32>
    %166 = vector.broadcast %158 : vector<8x1xf32> to vector<8x128xf32>
    %167 = arith.subf %154, %166 : vector<8x128xf32>
    %cst_69 = arith.constant 9.99999974E-6 : f32
    %168 = vector.broadcast %cst_69 : f32 to vector<8x1xf32>
    %169 = arith.addf %165, %168 : vector<8x1xf32>
    %170 = math.rsqrt %169 : vector<8x1xf32>
    %171 = vector.broadcast %170 : vector<8x1xf32> to vector<8x128xf32>
    %172 = arith.mulf %167, %171 : vector<8x128xf32>
    %173 = vector.broadcast %148 : vector<1x128xf32> to vector<8x128xf32>
    %174 = arith.mulf %172, %173 : vector<8x128xf32>
    %175 = vector.broadcast %149 : vector<1x128xf32> to vector<8x128xf32>
    %176 = arith.addf %174, %175 : vector<8x128xf32>
    %177 = arith.mulf %176, %176 : vector<8x128xf32>
    %cst_70 = arith.constant dense<0.000000e+00> : vector<8xf32>
    %178 = vector.multi_reduction <add>, %177, %cst_70 [1] : vector<8x128xf32> to vector<8xf32>
    %179 = vector.shape_cast %178 : vector<8xf32> to vector<8x1xf32>
    %cst_71 = arith.constant 1.000000e-24 : f32
    %180 = vector.broadcast %cst_71 : f32 to vector<8x1xf32>
    %181 = arith.maximumf %179, %180 : vector<8x1xf32>
    %182 = math.rsqrt %181 : vector<8x1xf32>
    %183 = vector.broadcast %182 : vector<8x1xf32> to vector<8x128xf32>
    %184 = arith.mulf %176, %183 : vector<8x128xf32>
    %c0_72 = arith.constant 0 : index
    %c0_73 = arith.constant 0 : index
    %185 = vector.load %arg11[%c0_72, %c0_73] : memref<8x128xf32, #tpu.memory_space<vmem>>, vector<8x128xf32>
    tpu.vector_store %arg11[%c0_72, %c0_73], %184 {strides = array<i32>} : memref<8x128xf32, #tpu.memory_space<vmem>>, vector<8x128xf32>,
    return
  }
  func.func @transform_0(%arg0: i32) -> (i32, i32) {
    %c0_i32 = arith.constant 0 : i32
    %c0_i32_0 = arith.constant 0 : i32
    return %arg0, %c0_i32 : i32, i32
  }
  func.func @transform_1(%arg0: i32) -> (i32, i32) {
    %c0_i32 = arith.constant 0 : i32
    %c0_i32_0 = arith.constant 0 : i32
    %c0_i32_1 = arith.constant 0 : i32
    return %c0_i32, %c0_i32_0 : i32, i32
  }
  func.func @transform_2(%arg0: i32) -> (i32, i32) {
    %c0_i32 = arith.constant 0 : i32
    %c0_i32_0 = arith.constant 0 : i32
    %c0_i32_1 = arith.constant 0 : i32
    return %c0_i32, %c0_i32_0 : i32, i32
  }
  func.func @transform_3(%arg0: i32) -> (i32, i32) {
    %c0_i32 = arith.constant 0 : i32
    %c0_i32_0 = arith.constant 0 : i32
    %c0_i32_1 = arith.constant 0 : i32
    return %c0_i32, %c0_i32_0 : i32, i32
  }
  func.func @transform_4(%arg0: i32) -> (i32, i32) {
    %c0_i32 = arith.constant 0 : i32
    %c0_i32_0 = arith.constant 0 : i32
    %c0_i32_1 = arith.constant 0 : i32
    return %c0_i32, %c0_i32_0 : i32, i32
  }
  func.func @transform_5(%arg0: i32) -> (i32, i32) {
    %c0_i32 = arith.constant 0 : i32
    %c0_i32_0 = arith.constant 0 : i32
    %c0_i32_1 = arith.constant 0 : i32
    return %c0_i32, %c0_i32_0 : i32, i32
  }
  func.func @transform_6(%arg0: i32) -> (i32, i32) {
    %c0_i32 = arith.constant 0 : i32
    %c0_i32_0 = arith.constant 0 : i32
    %c0_i32_1 = arith.constant 0 : i32
    return %c0_i32, %c0_i32_0 : i32, i32
  }
  func.func @transform_7(%arg0: i32) -> (i32, i32) {
    %c0_i32 = arith.constant 0 : i32
    %c0_i32_0 = arith.constant 0 : i32
    %c0_i32_1 = arith.constant 0 : i32
    return %c0_i32, %c0_i32_0 : i32, i32
  }
  func.func @transform_8(%arg0: i32) -> (i32, i32) {
    %c0_i32 = arith.constant 0 : i32
    %c0_i32_0 = arith.constant 0 : i32
    %c0_i32_1 = arith.constant 0 : i32
    return %c0_i32, %c0_i32_0 : i32, i32
  }
  func.func @transform_9(%arg0: i32) -> (i32, i32) {
    %c0_i32 = arith.constant 0 : i32
    %c0_i32_0 = arith.constant 0 : i32
    %c0_i32_1 = arith.constant 0 : i32
    return %c0_i32, %c0_i32_0 : i32, i32
  }
  func.func @transform_10(%arg0: i32) -> (i32, i32) {
    %c0_i32 = arith.constant 0 : i32
    %c0_i32_0 = arith.constant 0 : i32
    return %arg0, %c0_i32 : i32, i32
  }
}

</mosaic_0001>

<llo_original>
// kernel: tpu_custom_call.1
$region0: #{tpu_custom_call.1}
  #allocation0 [shape = 'u32[]', space=smem, size = 0x4, offset = 0x4, fixed_abs, tag = 'smem constant byte address 0x4 - core index']
  #allocation1 [shape = 'u32[72,128]{1,0:T(1,128)}', space=vmem, size = 0x9000, scoped, tag = 'internal scratch']
  %s0 = inlined_call_operand.hbm [shape: f32[8,128], index: 0, kind: input, shape index: {}]
  %s1 = inlined_call_operand.hbm [shape: bf16[128,256], index: 1, kind: input, shape index: {}]
  %s2 = inlined_call_operand.hbm [shape: bf16[256,256], index: 2, kind: input, shape index: {}]
  %s3 = inlined_call_operand.hbm [shape: bf16[256,1024], index: 3, kind: input, shape index: {}]
  %s4 = inlined_call_operand.hbm [shape: bf16[1024,256], index: 4, kind: input, shape index: {}]
  %s5 = inlined_call_operand.hbm [shape: bf16[256,256], index: 5, kind: input, shape index: {}]
  %s6 = inlined_call_operand.hbm [shape: bf16[256,1024], index: 6, kind: input, shape index: {}]
  %s7 = inlined_call_operand.hbm [shape: bf16[1024,256], index: 7, kind: input, shape index: {}]
  %s8 = inlined_call_operand.hbm [shape: bf16[256,128], index: 8, kind: input, shape index: {}]
  %s9 = inlined_call_operand.hbm [shape: f32[1,5760], index: 9, kind: input, shape index: {}]
  %s10 = inlined_call_operand.hbm [shape: f32[8,128], index: 10, kind: output, shape index: {}]
  %s11 = sld [smem:[#allocation0]]
  $region90: #{tpu_custom_call.1} parent=0
    _
  %s13 = ssub.s32 1, %s11
  %s14 = scalar_select 0, %s13, %s11
  $region1: #{tpu_custom_call.1} parent=0
    #allocation2 [shape = 'u8[4096]{0}', space=vmem, size = 0x1000, scoped, tag = 'input window, operand 0, single buffered']
    #allocation3 [shape = 's32[1]{0}', space=sflag, size = 0x4, scoped, tag = 'scoped memory for tpu_custom_call.1']
    #allocation4 [shape = 's32[1]{0}', space=sflag, size = 0x4, scoped, tag = 'scoped memory for tpu_custom_call.1']
    #allocation5 [shape = 'u8[65536]{0}', space=vmem, size = 0x10000, scoped, tag = 'input window, operand 1, single buffered']
    #allocation6 [shape = 's32[1]{0}', space=sflag, size = 0x4, scoped, tag = 'scoped memory for tpu_custom_call.1']
    #allocation7 [shape = 'u8[131072]{0}', space=vmem, size = 0x20000, scoped, tag = 'input window, operand 2, single buffered']
    #allocation8 [shape = 'u8[524288]{0}', space=vmem, size = 0x80000, scoped, tag = 'input window, operand 3, single buffered']
    #allocation9 [shape = 's32[1]{0}', space=sflag, size = 0x4, scoped, tag = 'scoped memory for tpu_custom_call.1']
    #allocation10 [shape = 'u8[524288]{0}', space=vmem, size = 0x80000, scoped, tag = 'input window, operand 4, single buffered']
    #allocation11 [shape = 'u8[131072]{0}', space=vmem, size = 0x20000, scoped, tag = 'input window, operand 5, single buffered']
    #allocation12 [shape = 's32[1]{0}', space=sflag, size = 0x4, scoped, tag = 'scoped memory for tpu_custom_call.1']
    #allocation13 [shape = 'u8[524288]{0}', space=vmem, size = 0x80000, scoped, tag = 'input window, operand 6, single buffered']
    #allocation14 [shape = 'u8[524288]{0}', space=vmem, size = 0x80000, scoped, tag = 'input window, operand 7, single buffered']
    #allocation15 [shape = 's32[1]{0}', space=sflag, size = 0x4, scoped, tag = 'scoped memory for tpu_custom_call.1']
    #allocation16 [shape = 'u8[65536]{0}', space=vmem, size = 0x10000, scoped, tag = 'input window, operand 8, single buffered']
    #allocation17 [shape = 'u8[23040]{0}', space=vmem, size = 0x5c00, scoped, tag = 'input window, operand 9, single buffered']
    #allocation18 [shape = 's32[1]{0}', space=sflag, size = 0x4, scoped, tag = 'scoped memory for tpu_custom_call.1']
    #allocation19 [shape = 'u8[4096]{0}', space=vmem, size = 0x1000, scoped, tag = 'output window, operand 0, single buffered']
    %15 = vsyncpa [#allocation3], 0
    %16 = vsyncpa [#allocation6], 0
    %17 = vsyncpa [#allocation9], 0
    %18 = vsyncpa [#allocation12], 0
    %19 = vsyncpa [#allocation15], 0
    %20 = vsyncpa [#allocation18], 0
    %21 = vsyncpa [#allocation4], 0
    // Predicated region
    $region2: #{tpu_custom_call.1} parent=1 // pred_check
      _
    $region3: #{tpu_custom_call.1} parent=1 // pred_check_branch
      %23 = sbr.rel (0) target = $region5
    $region4: #{tpu_custom_call.1} parent=1 // pred_region
      %25 = vsyncadd [#allocation3], 0
      %s27 = sshll.u32 %s0, 4
      %s28 = int_to_ptr.hbm [resolvable:$true] %s27
      %s29 = sshll.u32 [#allocation2], 4
      %s30 = int_to_ptr.vmem [resolvable:$true] %s29
      %32 = dma.hbm_to_vmem [thread:$0]  %s28, 128, %s30, [#allocation3]
    $region5: #{tpu_custom_call.1} parent=1 // pred_fallthru
      _
    // Predicated region
    $region6: #{tpu_custom_call.1} parent=1 // pred_check
      _
    $region7: #{tpu_custom_call.1} parent=1 // pred_check_branch
      %34 = sbr.rel (0) target = $region9
    $region8: #{tpu_custom_call.1} parent=1 // pred_region
      %36 = vsyncadd [#allocation6], 0
      %s37 = sshll.u32 %s1, 4
      %s38 = int_to_ptr.hbm [resolvable:$true] %s37
      %s39 = sshll.u32 [#allocation5], 4
      %s40 = int_to_ptr.vmem [resolvable:$true] %s39
      %45 = dma.hbm_to_vmem [thread:$0]  %s38, 2048, %s40, [#allocation6], 128, 128, 8
    $region9: #{tpu_custom_call.1} parent=1 // pred_fallthru
      _
    // Predicated region
    $region10: #{tpu_custom_call.1} parent=1 // pred_check
      _
    $region11: #{tpu_custom_call.1} parent=1 // pred_check_branch
      %47 = sbr.rel (0) target = $region13
    $region12: #{tpu_custom_call.1} parent=1 // pred_region
      %49 = vsyncadd [#allocation6], 0
      %s50 = sshll.u32 %s2, 4
      %s51 = int_to_ptr.hbm [resolvable:$true] %s50
      %s52 = sshll.u32 [#allocation7], 4
      %s53 = int_to_ptr.vmem [resolvable:$true] %s52
      %58 = dma.hbm_to_vmem [thread:$0]  %s51, 4096, %s53, [#allocation6], 128, 128, 8
    $region13: #{tpu_custom_call.1} parent=1 // pred_fallthru
      _
    // Predicated region
    $region14: #{tpu_custom_call.1} parent=1 // pred_check
      _
    $region15: #{tpu_custom_call.1} parent=1 // pred_check_branch
      %60 = sbr.rel (0) target = $region17
    $region16: #{tpu_custom_call.1} parent=1 // pred_region
      %62 = vsyncadd [#allocation9], 0
      %s63 = sshll.u32 %s3, 4
      %s64 = int_to_ptr.hbm [resolvable:$true] %s63
      %s65 = sshll.u32 [#allocation8], 4
      %s66 = int_to_ptr.vmem [resolvable:$true] %s65
      %71 = dma.hbm_to_vmem [thread:$0]  %s64, 16384, %s66, [#allocation9], 512, 512, 32
    $region17: #{tpu_custom_call.1} parent=1 // pred_fallthru
      _
    // Predicated region
    $region18: #{tpu_custom_call.1} parent=1 // pred_check
      _
    $region19: #{tpu_custom_call.1} parent=1 // pred_check_branch
      %73 = sbr.rel (0) target = $region21
    $region20: #{tpu_custom_call.1} parent=1 // pred_region
      %75 = vsyncadd [#allocation9], 0
      %s76 = sshll.u32 %s4, 4
      %s77 = int_to_ptr.hbm [resolvable:$true] %s76
      %s78 = sshll.u32 [#allocation10], 4
      %s79 = int_to_ptr.vmem [resolvable:$true] %s78
      %84 = dma.hbm_to_vmem [thread:$0]  %s77, 16384, %s79, [#allocation9], 128, 128, 8
    $region21: #{tpu_custom_call.1} parent=1 // pred_fallthru
      _
    // Predicated region
    $region22: #{tpu_custom_call.1} parent=1 // pred_check
      _
    $region23: #{tpu_custom_call.1} parent=1 // pred_check_branch
      %86 = sbr.rel (0) target = $region25
    $region24: #{tpu_custom_call.1} parent=1 // pred_region
      %88 = vsyncadd [#allocation12], 0
      %s89 = sshll.u32 %s5, 4
      %s90 = int_to_ptr.hbm [resolvable:$true] %s89
      %s91 = sshll.u32 [#allocation11], 4
      %s92 = int_to_ptr.vmem [resolvable:$true] %s91
      %97 = dma.hbm_to_vmem [thread:$0]  %s90, 4096, %s92, [#allocation12], 128, 128, 8
    $region25: #{tpu_custom_call.1} parent=1 // pred_fallthru
      _
    // Predicated region
    $region26: #{tpu_custom_call.1} parent=1 // pred_check
      _
    $region27: #{tpu_custom_call.1} parent=1 // pred_check_branch
      %99 = sbr.rel (0) target = $region29
    $region28: #{tpu_custom_call.1} parent=1 // pred_region
      %101 = vsyncadd [#allocation12], 0
      %s102 = sshll.u32 %s6, 4
      %s103 = int_to_ptr.hbm [resolvable:$true] %s102
      %s104 = sshll.u32 [#allocation13], 4
      %s105 = int_to_ptr.vmem [resolvable:$true] %s104
      %110 = dma.hbm_to_vmem [thread:$0]  %s103, 16384, %s105, [#allocation12], 512, 512, 32
    $region29: #{tpu_custom_call.1} parent=1 // pred_fallthru
      _
    // Predicated region
    $region30: #{tpu_custom_call.1} parent=1 // pred_check
      _
    $region31: #{tpu_custom_call.1} parent=1 // pred_check_branch
      %112 = sbr.rel (0) target = $region33
    $region32: #{tpu_custom_call.1} parent=1 // pred_region
      %114 = vsyncadd [#allocation15], 0
      %s115 = sshll.u32 %s7, 4
      %s116 = int_to_ptr.hbm [resolvable:$true] %s115
      %s117 = sshll.u32 [#allocation14], 4
      %s118 = int_to_ptr.vmem [resolvable:$true] %s117
      %123 = dma.hbm_to_vmem [thread:$0]  %s116, 16384, %s118, [#allocation15], 128, 128, 8
    $region33: #{tpu_custom_call.1} parent=1 // pred_fallthru
      _
    // Predicated region
    $region34: #{tpu_custom_call.1} parent=1 // pred_check
      _
    $region35: #{tpu_custom_call.1} parent=1 // pred_check_branch
      %125 = sbr.rel (0) target = $region37
    $region36: #{tpu_custom_call.1} parent=1 // pred_region
      %127 = vsyncadd [#allocation15], 0
      %s128 = sshll.u32 %s8, 4
      %s129 = int_to_ptr.hbm [resolvable:$true] %s128
      %s130 = sshll.u32 [#allocation16], 4
      %s131 = int_to_ptr.vmem [resolvable:$true] %s130
      %136 = dma.hbm_to_vmem [thread:$0]  %s129, 2048, %s131, [#allocation15], 64, 64, 4
    $region37: #{tpu_custom_call.1} parent=1 // pred_fallthru
      _
    // Predicated region
    $region38: #{tpu_custom_call.1} parent=1 // pred_check
      _
    $region39: #{tpu_custom_call.1} parent=1 // pred_check_branch
      %138 = sbr.rel (0) target = $region41
    $region40: #{tpu_custom_call.1} parent=1 // pred_region
      %140 = vsyncadd [#allocation18], 0
      %s142 = sshll.u32 %s9, 4
      %s143 = int_to_ptr.hbm [resolvable:$true] %s142
      %s144 = sshll.u32 [#allocation17], 4
      %s145 = int_to_ptr.vmem [resolvable:$true] %s144
      %147 = dma.hbm_to_vmem [thread:$0]  %s143, 720, %s145, [#allocation18]
    $region41: #{tpu_custom_call.1} parent=1 // pred_fallthru
      _
    // Predicated region
    $region42: #{tpu_custom_call.1} parent=1 // pred_check
      _
    $region43: #{tpu_custom_call.1} parent=1 // pred_check_branch
      %149 = sbr.rel (0) target = $region45
    $region44: #{tpu_custom_call.1} parent=1 // pred_region
      %151 = dma.done [#allocation3], 128
    $region45: #{tpu_custom_call.1} parent=1 // pred_fallthru
      _
    // Predicated region
    $region46: #{tpu_custom_call.1} parent=1 // pred_check
      _
    $region47: #{tpu_custom_call.1} parent=1 // pred_check_branch
      %153 = sbr.rel (0) target = $region49
    $region48: #{tpu_custom_call.1} parent=1 // pred_region
      %155 = dma.done [#allocation6], 2048
    $region49: #{tpu_custom_call.1} parent=1 // pred_fallthru
      _
    // Predicated region
    $region50: #{tpu_custom_call.1} parent=1 // pred_check
      _
    $region51: #{tpu_custom_call.1} parent=1 // pred_check_branch
      %157 = sbr.rel (0) target = $region53
    $region52: #{tpu_custom_call.1} parent=1 // pred_region
      %159 = dma.done [#allocation6], 4096
    $region53: #{tpu_custom_call.1} parent=1 // pred_fallthru
      _
    // Predicated region
    $region54: #{tpu_custom_call.1} parent=1 // pred_check
      _
    $region55: #{tpu_custom_call.1} parent=1 // pred_check_branch
      %161 = sbr.rel (0) target = $region57
    $region56: #{tpu_custom_call.1} parent=1 // pred_region
      %163 = dma.done [#allocation9], 16384
    $region57: #{tpu_custom_call.1} parent=1 // pred_fallthru
      _
    // Predicated region
    $region58: #{tpu_custom_call.1} parent=1 // pred_check
      _
    $region59: #{tpu_custom_call.1} parent=1 // pred_check_branch
      %165 = sbr.rel (0) target = $region61
    $region60: #{tpu_custom_call.1} parent=1 // pred_region
      %167 = dma.done [#allocation9], 16384
    $region61: #{tpu_custom_call.1} parent=1 // pred_fallthru
      _
    // Predicated region
    $region62: #{tpu_custom_call.1} parent=1 // pred_check
      _
    $region63: #{tpu_custom_call.1} parent=1 // pred_check_branch
      %169 = sbr.rel (0) target = $region65
    $region64: #{tpu_custom_call.1} parent=1 // pred_region
      %171 = dma.done [#allocation12], 4096
    $region65: #{tpu_custom_call.1} parent=1 // pred_fallthru
      _
    // Predicated region
    $region66: #{tpu_custom_call.1} parent=1 // pred_check
      _
    $region67: #{tpu_custom_call.1} parent=1 // pred_check_branch
      %173 = sbr.rel (0) target = $region69
    $region68: #{tpu_custom_call.1} parent=1 // pred_region
      %175 = dma.done [#allocation12], 16384
    $region69: #{tpu_custom_call.1} parent=1 // pred_fallthru
      _
    // Predicated region
    $region70: #{tpu_custom_call.1} parent=1 // pred_check
      _
    $region71: #{tpu_custom_call.1} parent=1 // pred_check_branch
      %177 = sbr.rel (0) target = $region73
    $region72: #{tpu_custom_call.1} parent=1 // pred_region
      %179 = dma.done [#allocation15], 16384
    $region73: #{tpu_custom_call.1} parent=1 // pred_fallthru
      _
    // Predicated region
    $region74: #{tpu_custom_call.1} parent=1 // pred_check
      _
    $region75: #{tpu_custom_call.1} parent=1 // pred_check_branch
      %181 = sbr.rel (0) target = $region77
    $region76: #{tpu_custom_call.1} parent=1 // pred_region
      %183 = dma.done [#allocation15], 2048
    $region77: #{tpu_custom_call.1} parent=1 // pred_fallthru
      _
    // Predicated region
    $region78: #{tpu_custom_call.1} parent=1 // pred_check
      _
    $region79: #{tpu_custom_call.1} parent=1 // pred_check_branch
      %185 = sbr.rel (0) target = $region81
    $region80: #{tpu_custom_call.1} parent=1 // pred_region
      %187 = dma.done [#allocation18], 720
    $region81: #{tpu_custom_call.1} parent=1 // pred_fallthru
      _
    %v188 = vld [vmem:[#allocation2] sm:$0xff]
    %v189 = vpack.c.bf16 %v188, %v188
    %v190 = vld [vmem:[#allocation5] sm:$0xff]
    %v191 = vld [vmem:[#allocation5 + $0x8] sm:$0xff]
    %v192 = vld [vmem:[#allocation5 + $0x10] sm:$0xff]
    %v193 = vld [vmem:[#allocation5 + $0x18] sm:$0xff]
    %v194 = vld [vmem:[#allocation5 + $0x20] sm:$0xff]
    %v195 = vld [vmem:[#allocation5 + $0x28] sm:$0xff]
    %v196 = vld [vmem:[#allocation5 + $0x30] sm:$0xff]
    %v197 = vld [vmem:[#allocation5 + $0x38] sm:$0xff]
    %v198 = vld [vmem:[#allocation5 + $0x40] sm:$0xff]
    %v199 = vld [vmem:[#allocation5 + $0x48] sm:$0xff]
    %v200 = vld [vmem:[#allocation5 + $0x50] sm:$0xff]
    %v201 = vld [vmem:[#allocation5 + $0x58] sm:$0xff]
    %v202 = vld [vmem:[#allocation5 + $0x60] sm:$0xff]
    %v203 = vld [vmem:[#allocation5 + $0x68] sm:$0xff]
    %v204 = vld [vmem:[#allocation5 + $0x70] sm:$0xff]
    %v205 = vld [vmem:[#allocation5 + $0x78] sm:$0xff]
    %v206 = vld [vmem:[#allocation17] sm:$0x3]
    %v208 = vperm.slane %v206, 0
    %v209 = vperm.slane %v206, 1
    %v228 = vunpack.c.l.b16 %v190
    %v229 = vunpack.c.h.b16 %v190
    %v230 = vunpack.c.l.b16 %v191
    %v231 = vunpack.c.h.b16 %v191
    %v232 = vunpack.c.l.b16 %v192
    %v233 = vunpack.c.h.b16 %v192
    %v234 = vunpack.c.l.b16 %v193
    %v235 = vunpack.c.h.b16 %v193
    %v236 = vunpack.c.l.b16 %v194
    %v237 = vunpack.c.h.b16 %v194
    %v238 = vunpack.c.l.b16 %v195
    %v239 = vunpack.c.h.b16 %v195
    %v240 = vunpack.c.l.b16 %v196
    %v241 = vunpack.c.h.b16 %v196
    %v242 = vunpack.c.l.b16 %v197
    %v243 = vunpack.c.h.b16 %v197
    %v244 = vunpack.c.l.b16 %v198
    %v245 = vunpack.c.h.b16 %v198
    %v246 = vunpack.c.l.b16 %v199
    %v247 = vunpack.c.h.b16 %v199
    %v248 = vunpack.c.l.b16 %v200
    %v249 = vunpack.c.h.b16 %v200
    %v250 = vunpack.c.l.b16 %v201
    %v251 = vunpack.c.h.b16 %v201
    %v252 = vunpack.c.l.b16 %v202
    %v253 = vunpack.c.h.b16 %v202
    %v254 = vunpack.c.l.b16 %v203
    %v255 = vunpack.c.h.b16 %v203
    %v256 = vunpack.c.l.b16 %v204
    %v257 = vunpack.c.h.b16 %v204
    %v258 = vunpack.c.l.b16 %v205
    %v259 = vunpack.c.h.b16 %v205
    %v260 = vpack.c.b16 %v230, %v228
    %v261 = vpack.c.b16 %v231, %v229
    %v262 = vpack.c.b16 %v234, %v232
    %v263 = vpack.c.b16 %v235, %v233
    %v264 = vpack.c.b16 %v238, %v236
    %v265 = vpack.c.b16 %v239, %v237
    %v266 = vpack.c.b16 %v242, %v240
    %v267 = vpack.c.b16 %v243, %v241
    %v268 = vpack.c.b16 %v246, %v244
    %v269 = vpack.c.b16 %v247, %v245
    %v270 = vpack.c.b16 %v250, %v248
    %v271 = vpack.c.b16 %v251, %v249
    %v272 = vpack.c.b16 %v254, %v252
    %v273 = vpack.c.b16 %v255, %v253
    %v274 = vpack.c.b16 %v258, %v256
    %v275 = vpack.c.b16 %v259, %v257
    %292 = vmatpush.bf16.msra.mxu0 %v274
    %293 = vmatpush.bf16.msra.mxu0 %v272
    %294 = vmatpush.bf16.msra.mxu0 %v270
    %295 = vmatpush.bf16.msra.mxu0 %v268
    %296 = vmatpush.bf16.msra.mxu0 %v266
    %297 = vmatpush.bf16.msra.mxu0 %v264
    %298 = vmatpush.bf16.msra.mxu0 %v262
    %299 = vmatpush.bf16.msra.mxu0 %v260
    %300 = vmatmul.bf16.gmra.mxu0 %v189
    %v301 = vpop.f32.mrf.mxu0
    %v302 = vadd.f32 %v208, %v301
    %v303 = vpop.f32.mrf.mxu0
    %304 = vdwg.mxu0
    %305 = vmatpush.bf16.msra.mxu0 %v275
    %306 = vmatpush.bf16.msra.mxu0 %v273
    %307 = vmatpush.bf16.msra.mxu0 %v271
    %308 = vmatpush.bf16.msra.mxu0 %v269
    %309 = vmatpush.bf16.msra.mxu0 %v267
    %310 = vmatpush.bf16.msra.mxu0 %v265
    %311 = vmatpush.bf16.msra.mxu0 %v263
    %312 = vmatpush.bf16.msra.mxu0 %v261
    %313 = vmatmul.bf16.gmra.mxu0 %v189
    %v314 = vpop.f32.mrf.mxu0
    %v315 = vadd.f32 %v209, %v314
    %v316 = vpop.f32.mrf.mxu0
    %317 = vdwg.mxu0
    %v318 = vld [vmem:[#allocation17 + $0x2] sm:$0x3]
    %v319 = vld [vmem:[#allocation17 + $0x4] sm:$0x3]
    %v320 = vld [vmem:[#allocation17 + $0x6] sm:$0x3]
    %v321 = vld [vmem:[#allocation17 + $0x8] sm:$0xff]
    %v322 = vld [vmem:[#allocation17 + $0x10] sm:$0x3]
    %v323 = vld [vmem:[#allocation17 + $0x12] sm:$0x3]
    %v324 = vld [vmem:[#allocation17 + $0x14] sm:$0x3]
    %v325 = vpack.c.bf16 %v302, %v302
    %v326 = vpack.c.bf16 %v315, %v315
    %v327 = vld [vmem:[#allocation7] sm:$0xff]
    %v328 = vld [vmem:[#allocation7 + $0x8] sm:$0xff]
    %v329 = vld [vmem:[#allocation7 + $0x10] sm:$0xff]
    %v330 = vld [vmem:[#allocation7 + $0x18] sm:$0xff]
    %v331 = vld [vmem:[#allocation7 + $0x20] sm:$0xff]
    %v332 = vld [vmem:[#allocation7 + $0x28] sm:$0xff]
    %v333 = vld [vmem:[#allocation7 + $0x30] sm:$0xff]
    %v334 = vld [vmem:[#allocation7 + $0x38] sm:$0xff]
    %v335 = vld [vmem:[#allocation7 + $0x40] sm:$0xff]
    %v336 = vld [vmem:[#allocation7 + $0x48] sm:$0xff]
    %v337 = vld [vmem:[#allocation7 + $0x50] sm:$0xff]
    %v338 = vld [vmem:[#allocation7 + $0x58] sm:$0xff]
    %v339 = vld [vmem:[#allocation7 + $0x60] sm:$0xff]
    %v340 = vld [vmem:[#allocation7 + $0x68] sm:$0xff]
    %v341 = vld [vmem:[#allocation7 + $0x70] sm:$0xff]
    %v342 = vld [vmem:[#allocation7 + $0x78] sm:$0xff]
    %v343 = vld [vmem:[#allocation7 + $0x80] sm:$0xff]
    %v344 = vld [vmem:[#allocation7 + $0x88] sm:$0xff]
    %v345 = vld [vmem:[#allocation7 + $0x90] sm:$0xff]
    %v346 = vld [vmem:[#allocation7 + $0x98] sm:$0xff]
    %v347 = vld [vmem:[#allocation7 + $0xa0] sm:$0xff]
    %v348 = vld [vmem:[#allocation7 + $0xa8] sm:$0xff]
    %v349 = vld [vmem:[#allocation7 + $0xb0] sm:$0xff]
    %v350 = vld [vmem:[#allocation7 + $0xb8] sm:$0xff]
    %v351 = vld [vmem:[#allocation7 + $0xc0] sm:$0xff]
    %v352 = vld [vmem:[#allocation7 + $0xc8] sm:$0xff]
    %v353 = vld [vmem:[#allocation7 + $0xd0] sm:$0xff]
    %v354 = vld [vmem:[#allocation7 + $0xd8] sm:$0xff]
    %v355 = vld [vmem:[#allocation7 + $0xe0] sm:$0xff]
    %v356 = vld [vmem:[#allocation7 + $0xe8] sm:$0xff]
    %v357 = vld [vmem:[#allocation7 + $0xf0] sm:$0xff]
    %v358 = vld [vmem:[#allocation7 + $0xf8] sm:$0xff]
    %v360 = vperm.slane %v318, 0
    %v361 = vperm.slane %v318, 1
    %v396 = vunpack.c.l.b16 %v327
    %v397 = vunpack.c.h.b16 %v327
    %v398 = vunpack.c.l.b16 %v328
    %v399 = vunpack.c.h.b16 %v328
    %v400 = vunpack.c.l.b16 %v329
    %v401 = vunpack.c.h.b16 %v329
    %v402 = vunpack.c.l.b16 %v330
    %v403 = vunpack.c.h.b16 %v330
    %v404 = vunpack.c.l.b16 %v331
    %v405 = vunpack.c.h.b16 %v331
    %v406 = vunpack.c.l.b16 %v332
    %v407 = vunpack.c.h.b16 %v332
    %v408 = vunpack.c.l.b16 %v333
    %v409 = vunpack.c.h.b16 %v333
    %v410 = vunpack.c.l.b16 %v334
    %v411 = vunpack.c.h.b16 %v334
    %v412 = vunpack.c.l.b16 %v335
    %v413 = vunpack.c.h.b16 %v335
    %v414 = vunpack.c.l.b16 %v336
    %v415 = vunpack.c.h.b16 %v336
    %v416 = vunpack.c.l.b16 %v337
    %v417 = vunpack.c.h.b16 %v337
    %v418 = vunpack.c.l.b16 %v338
    %v419 = vunpack.c.h.b16 %v338
    %v420 = vunpack.c.l.b16 %v339
    %v421 = vunpack.c.h.b16 %v339
    %v422 = vunpack.c.l.b16 %v340
    %v423 = vunpack.c.h.b16 %v340
    %v424 = vunpack.c.l.b16 %v341
    %v425 = vunpack.c.h.b16 %v341
    %v426 = vunpack.c.l.b16 %v342
    %v427 = vunpack.c.h.b16 %v342
    %v428 = vunpack.c.l.b16 %v343
    %v429 = vunpack.c.h.b16 %v343
    %v430 = vunpack.c.l.b16 %v344
    %v431 = vunpack.c.h.b16 %v344
    %v432 = vunpack.c.l.b16 %v345
    %v433 = vunpack.c.h.b16 %v345
    %v434 = vunpack.c.l.b16 %v346
    %v435 = vunpack.c.h.b16 %v346
    %v436 = vunpack.c.l.b16 %v347
    %v437 = vunpack.c.h.b16 %v347
    %v438 = vunpack.c.l.b16 %v348
    %v439 = vunpack.c.h.b16 %v348
    %v440 = vunpack.c.l.b16 %v349
    %v441 = vunpack.c.h.b16 %v349
    %v442 = vunpack.c.l.b16 %v350
    %v443 = vunpack.c.h.b16 %v350
    %v444 = vunpack.c.l.b16 %v351
    %v445 = vunpack.c.h.b16 %v351
    %v446 = vunpack.c.l.b16 %v352
    %v447 = vunpack.c.h.b16 %v352
    %v448 = vunpack.c.l.b16 %v353
    %v449 = vunpack.c.h.b16 %v353
    %v450 = vunpack.c.l.b16 %v354
    %v451 = vunpack.c.h.b16 %v354
    %v452 = vunpack.c.l.b16 %v355
    %v453 = vunpack.c.h.b16 %v355
    %v454 = vunpack.c.l.b16 %v356
    %v455 = vunpack.c.h.b16 %v356
    %v456 = vunpack.c.l.b16 %v357
    %v457 = vunpack.c.h.b16 %v357
    %v458 = vunpack.c.l.b16 %v358
    %v459 = vunpack.c.h.b16 %v358
    %v460 = vpack.c.b16 %v398, %v396
    %v461 = vpack.c.b16 %v399, %v397
    %v462 = vpack.c.b16 %v402, %v400
    %v463 = vpack.c.b16 %v403, %v401
    %v464 = vpack.c.b16 %v406, %v404
    %v465 = vpack.c.b16 %v407, %v405
    %v466 = vpack.c.b16 %v410, %v408
    %v467 = vpack.c.b16 %v411, %v409
    %v468 = vpack.c.b16 %v414, %v412
    %v469 = vpack.c.b16 %v415, %v413
    %v470 = vpack.c.b16 %v418, %v416
    %v471 = vpack.c.b16 %v419, %v417
    %v472 = vpack.c.b16 %v422, %v420
    %v473 = vpack.c.b16 %v423, %v421
    %v474 = vpack.c.b16 %v426, %v424
    %v475 = vpack.c.b16 %v427, %v425
    %v476 = vpack.c.b16 %v430, %v428
    %v477 = vpack.c.b16 %v431, %v429
    %v478 = vpack.c.b16 %v434, %v432
    %v479 = vpack.c.b16 %v435, %v433
    %v480 = vpack.c.b16 %v438, %v436
    %v481 = vpack.c.b16 %v439, %v437
    %v482 = vpack.c.b16 %v442, %v440
    %v483 = vpack.c.b16 %v443, %v441
    %v484 = vpack.c.b16 %v446, %v444
    %v485 = vpack.c.b16 %v447, %v445
    %v486 = vpack.c.b16 %v450, %v448
    %v487 = vpack.c.b16 %v451, %v449
    %v488 = vpack.c.b16 %v454, %v452
    %v489 = vpack.c.b16 %v455, %v453
    %v490 = vpack.c.b16 %v458, %v456
    %v491 = vpack.c.b16 %v459, %v457
    %524 = vmatpush.bf16.msra.mxu0 %v474
    %525 = vmatpush.bf16.msra.mxu0 %v472
    %526 = vmatpush.bf16.msra.mxu0 %v470
    %527 = vmatpush.bf16.msra.mxu0 %v468
    %528 = vmatpush.bf16.msra.mxu0 %v466
    %529 = vmatpush.bf16.msra.mxu0 %v464
    %530 = vmatpush.bf16.msra.mxu0 %v462
    %531 = vmatpush.bf16.msra.mxu0 %v460
    %532 = vmatmul.bf16.gmra.mxu0 %v325
    %v533 = vpop.f32.mrf.mxu0
    %v534 = vadd.f32 %v360, %v533
    %v535 = vpop.f32.mrf.mxu0
    %536 = vdwg.mxu0
    %537 = vmatpush.bf16.msra.mxu0 %v490
    %538 = vmatpush.bf16.msra.mxu0 %v488
    %539 = vmatpush.bf16.msra.mxu0 %v486
    %540 = vmatpush.bf16.msra.mxu0 %v484
    %541 = vmatpush.bf16.msra.mxu0 %v482
    %542 = vmatpush.bf16.msra.mxu0 %v480
    %543 = vmatpush.bf16.msra.mxu0 %v478
    %544 = vmatpush.bf16.msra.mxu0 %v476
    %545 = vmatmul.bf16.gmra.mxu0 %v326
    %v546 = vpop.f32.mrf.mxu0
    %v547 = vadd.f32 %v534, %v546
    %v548 = vpop.f32.mrf.mxu0
    %549 = vdwg.mxu0
    %550 = vmatpush.bf16.msra.mxu0 %v475
    %551 = vmatpush.bf16.msra.mxu0 %v473
    %552 = vmatpush.bf16.msra.mxu0 %v471
    %553 = vmatpush.bf16.msra.mxu0 %v469
    %554 = vmatpush.bf16.msra.mxu0 %v467
    %555 = vmatpush.bf16.msra.mxu0 %v465
    %556 = vmatpush.bf16.msra.mxu0 %v463
    %557 = vmatpush.bf16.msra.mxu0 %v461
    %558 = vmatmul.bf16.gmra.mxu0 %v325
    %v559 = vpop.f32.mrf.mxu0
    %v560 = vadd.f32 %v361, %v559
    %v561 = vpop.f32.mrf.mxu0
    %562 = vdwg.mxu0
    %563 = vmatpush.bf16.msra.mxu0 %v491
    %564 = vmatpush.bf16.msra.mxu0 %v489
    %565 = vmatpush.bf16.msra.mxu0 %v487
    %566 = vmatpush.bf16.msra.mxu0 %v485
    %567 = vmatpush.bf16.msra.mxu0 %v483
    %568 = vmatpush.bf16.msra.mxu0 %v481
    %569 = vmatpush.bf16.msra.mxu0 %v479
    %570 = vmatpush.bf16.msra.mxu0 %v477
    %571 = vmatmul.bf16.gmra.mxu0 %v326
    %v572 = vpop.f32.mrf.mxu0
    %v573 = vadd.f32 %v560, %v572
    %v574 = vpop.f32.mrf.mxu0
    %575 = vdwg.mxu0
    %v576 = vadd.f32 %v302, %v547
    %v577 = vadd.f32 %v315, %v573
    %v578 = vadd.f32 %v576, %v577
    %579 = vadd.xlane.f32.xlu0 %v578
    %v580 = vpop.xlane.xlu0 %579
    %v581 = vrcp.pop 256.0
    %v582 = vmul.f32 256.0, %v581
    %v583 = vsub.f32 1.0, %v582
    %v584 = vmul.f32 %v581, %v583
    %v585 = vadd.f32 %v581, %v584
    %vm586 = vweird.f32 %v581
    %v587 = vsel %vm586, %v581, %v585
    %v588 = vmul.f32 %v580, %v587
    %v589 = vsub.f32 %v576, %v588
    %v590 = vsub.f32 %v577, %v588
    %v591 = vmul.f32 %v589, %v589
    %v592 = vmul.f32 %v590, %v590
    %v593 = vadd.f32 %v591, %v592
    %594 = vadd.xlane.f32.xlu0 %v593
    %v595 = vpop.xlane.xlu0 %594
    %v596 = vmul.f32 %v595, %v587
    %v597 = vadd.f32 %v596, 1e-05
    %v598 = vrsqrt.pop %v597
    %v599 = vmul.f32 %v598, %v597
    %v600 = vmul.f32 %v599, %v598
    %v601 = vmul.f32 0.5, %v600
    %v602 = vsub.f32 1.5, %v601
    %v603 = vmul.f32 %v598, %v602
    %vm604 = vweird.f32 %v597
    %vm605 = vweird.f32 %v598
    %vm606 = vmor %vm604, %vm605
    %v607 = vsel %vm606, %v598, %v603
    %v608 = vmul.f32 %v589, %v607
    %v609 = vmul.f32 %v590, %v607
    %v611 = vperm.slane %v319, 0
    %v612 = vperm.slane %v319, 1
    %v615 = vmul.f32 %v608, %v611
    %v616 = vmul.f32 %v609, %v612
    %v618 = vperm.slane %v320, 0
    %v619 = vperm.slane %v320, 1
    %v622 = vadd.f32 %v615, %v618
    %v623 = vadd.f32 %v616, %v619
    %v624 = vpack.c.bf16 %v622, %v622
    %v625 = vpack.c.bf16 %v623, %v623
    %v626 = vld [vmem:[#allocation8] sm:$0xff]
    %v627 = vld [vmem:[#allocation8 + $0x8] sm:$0xff]
    %v628 = vld [vmem:[#allocation8 + $0x10] sm:$0xff]
    %v629 = vld [vmem:[#allocation8 + $0x18] sm:$0xff]
    %v630 = vld [vmem:[#allocation8 + $0x20] sm:$0xff]
    %v631 = vld [vmem:[#allocation8 + $0x28] sm:$0xff]
    %v632 = vld [vmem:[#allocation8 + $0x30] sm:$0xff]
    %v633 = vld [vmem:[#allocation8 + $0x38] sm:$0xff]
    %v634 = vld [vmem:[#allocation8 + $0x40] sm:$0xff]
    %v635 = vld [vmem:[#allocation8 + $0x48] sm:$0xff]
    %v636 = vld [vmem:[#allocation8 + $0x50] sm:$0xff]
    %v637 = vld [vmem:[#allocation8 + $0x58] sm:$0xff]
    %v638 = vld [vmem:[#allocation8 + $0x60] sm:$0xff]
    %v639 = vld [vmem:[#allocation8 + $0x68] sm:$0xff]
    %v640 = vld [vmem:[#allocation8 + $0x70] sm:$0xff]
    %v641 = vld [vmem:[#allocation8 + $0x78] sm:$0xff]
    %v642 = vld [vmem:[#allocation8 + $0x80] sm:$0xff]
    %v643 = vld [vmem:[#allocation8 + $0x88] sm:$0xff]
    %v644 = vld [vmem:[#allocation8 + $0x90] sm:$0xff]
    %v645 = vld [vmem:[#allocation8 + $0x98] sm:$0xff]
    %v646 = vld [vmem:[#allocation8 + $0xa0] sm:$0xff]
    %v647 = vld [vmem:[#allocation8 + $0xa8] sm:$0xff]
    %v648 = vld [vmem:[#allocation8 + $0xb0] sm:$0xff]
    %v649 = vld [vmem:[#allocation8 + $0xb8] sm:$0xff]
    %v650 = vld [vmem:[#allocation8 + $0xc0] sm:$0xff]
    %v651 = vld [vmem:[#allocation8 + $0xc8] sm:$0xff]
    %v652 = vld [vmem:[#allocation8 + $0xd0] sm:$0xff]
    %v653 = vld [vmem:[#allocation8 + $0xd8] sm:$0xff]
    %v654 = vld [vmem:[#allocation8 + $0xe0] sm:$0xff]
    %v655 = vld [vmem:[#allocation8 + $0xe8] sm:$0xff]
    %v656 = vld [vmem:[#allocation8 + $0xf0] sm:$0xff]
    %v657 = vld [vmem:[#allocation8 + $0xf8] sm:$0xff]
    %v658 = vld [vmem:[#allocation8 + $0x100] sm:$0xff]
    %v659 = vld [vmem:[#allocation8 + $0x108] sm:$0xff]
    %v660 = vld [vmem:[#allocation8 + $0x110] sm:$0xff]
    %v661 = vld [vmem:[#allocation8 + $0x118] sm:$0xff]
    %v662 = vld [vmem:[#allocation8 + $0x120] sm:$0xff]
    %v663 = vld [vmem:[#allocation8 + $0x128] sm:$0xff]
    %v664 = vld [vmem:[#allocation8 + $0x130] sm:$0xff]
    %v665 = vld [vmem:[#allocation8 + $0x138] sm:$0xff]
    %v666 = vld [vmem:[#allocation8 + $0x140] sm:$0xff]
    %v667 = vld [vmem:[#allocation8 + $0x148] sm:$0xff]
    %v668 = vld [vmem:[#allocation8 + $0x150] sm:$0xff]
    %v669 = vld [vmem:[#allocation8 + $0x158] sm:$0xff]
    %v670 = vld [vmem:[#allocation8 + $0x160] sm:$0xff]
    %v671 = vld [vmem:[#allocation8 + $0x168] sm:$0xff]
    %v672 = vld [vmem:[#allocation8 + $0x170] sm:$0xff]
    %v673 = vld [vmem:[#allocation8 + $0x178] sm:$0xff]
    %v674 = vld [vmem:[#allocation8 + $0x180] sm:$0xff]
    %v675 = vld [vmem:[#allocation8 + $0x188] sm:$0xff]
    %v676 = vld [vmem:[#allocation8 + $0x190] sm:$0xff]
    %v677 = vld [vmem:[#allocation8 + $0x198] sm:$0xff]
    %v678 = vld [vmem:[#allocation8 + $0x1a0] sm:$0xff]
    %v679 = vld [vmem:[#allocation8 + $0x1a8] sm:$0xff]
    %v680 = vld [vmem:[#allocation8 + $0x1b0] sm:$0xff]
    %v681 = vld [vmem:[#allocation8 + $0x1b8] sm:$0xff]
    %v682 = vld [vmem:[#allocation8 + $0x1c0] sm:$0xff]
    %v683 = vld [vmem:[#allocation8 + $0x1c8] sm:$0xff]
    %v684 = vld [vmem:[#allocation8 + $0x1d0] sm:$0xff]
    %v685 = vld [vmem:[#allocation8 + $0x1d8] sm:$0xff]
    %v686 = vld [vmem:[#allocation8 + $0x1e0] sm:$0xff]
    %v687 = vld [vmem:[#allocation8 + $0x1e8] sm:$0xff]
    %v688 = vld [vmem:[#allocation8 + $0x1f0] sm:$0xff]
    %v689 = vld [vmem:[#allocation8 + $0x1f8] sm:$0xff]
    %v690 = vld [vmem:[#allocation8 + $0x200] sm:$0xff]
    %v691 = vld [vmem:[#allocation8 + $0x208] sm:$0xff]
    %v692 = vld [vmem:[#allocation8 + $0x210] sm:$0xff]
    %v693 = vld [vmem:[#allocation8 + $0x218] sm:$0xff]
    %v694 = vld [vmem:[#allocation8 + $0x220] sm:$0xff]
    %v695 = vld [vmem:[#allocation8 + $0x228] sm:$0xff]
    %v696 = vld [vmem:[#allocation8 + $0x230] sm:$0xff]
    %v697 = vld [vmem:[#allocation8 + $0x238] sm:$0xff]
    %v698 = vld [vmem:[#allocation8 + $0x240] sm:$0xff]
    %v699 = vld [vmem:[#allocation8 + $0x248] sm:$0xff]
    %v700 = vld [vmem:[#allocation8 + $0x250] sm:$0xff]
    %v701 = vld [vmem:[#allocation8 + $0x258] sm:$0xff]
    %v702 = vld [vmem:[#allocation8 + $0x260] sm:$0xff]
    %v703 = vld [vmem:[#allocation8 + $0x268] sm:$0xff]
    %v704 = vld [vmem:[#allocation8 + $0x270] sm:$0xff]
    %v705 = vld [vmem:[#allocation8 + $0x278] sm:$0xff]
    %v706 = vld [vmem:[#allocation8 + $0x280] sm:$0xff]
    %v707 = vld [vmem:[#allocation8 + $0x288] sm:$0xff]
    %v708 = vld [vmem:[#allocation8 + $0x290] sm:$0xff]
    %v709 = vld [vmem:[#allocation8 + $0x298] sm:$0xff]
    %v710 = vld [vmem:[#allocation8 + $0x2a0] sm:$0xff]
    %v711 = vld [vmem:[#allocation8 + $0x2a8] sm:$0xff]
    %v712 = vld [vmem:[#allocation8 + $0x2b0] sm:$0xff]
    %v713 = vld [vmem:[#allocation8 + $0x2b8] sm:$0xff]
    %v714 = vld [vmem:[#allocation8 + $0x2c0] sm:$0xff]
    %v715 = vld [vmem:[#allocation8 + $0x2c8] sm:$0xff]
    %v716 = vld [vmem:[#allocation8 + $0x2d0] sm:$0xff]
    %v717 = vld [vmem:[#allocation8 + $0x2d8] sm:$0xff]
    %v718 = vld [vmem:[#allocation8 + $0x2e0] sm:$0xff]
    %v719 = vld [vmem:[#allocation8 + $0x2e8] sm:$0xff]
    %v720 = vld [vmem:[#allocation8 + $0x2f0] sm:$0xff]
    %v721 = vld [vmem:[#allocation8 + $0x2f8] sm:$0xff]
    %v722 = vld [vmem:[#allocation8 + $0x300] sm:$0xff]
    %v723 = vld [vmem:[#allocation8 + $0x308] sm:$0xff]
    %v724 = vld [vmem:[#allocation8 + $0x310] sm:$0xff]
    %v725 = vld [vmem:[#allocation8 + $0x318] sm:$0xff]
    %v726 = vld [vmem:[#allocation8 + $0x320] sm:$0xff]
    %v727 = vld [vmem:[#allocation8 + $0x328] sm:$0xff]
    %v728 = vld [vmem:[#allocation8 + $0x330] sm:$0xff]
    %v729 = vld [vmem:[#allocation8 + $0x338] sm:$0xff]
    %v730 = vld [vmem:[#allocation8 + $0x340] sm:$0xff]
    %v731 = vld [vmem:[#allocation8 + $0x348] sm:$0xff]
    %v732 = vld [vmem:[#allocation8 + $0x350] sm:$0xff]
    %v733 = vld [vmem:[#allocation8 + $0x358] sm:$0xff]
    %v734 = vld [vmem:[#allocation8 + $0x360] sm:$0xff]
    %v735 = vld [vmem:[#allocation8 + $0x368] sm:$0xff]
    %v736 = vld [vmem:[#allocation8 + $0x370] sm:$0xff]
    %v737 = vld [vmem:[#allocation8 + $0x378] sm:$0xff]
    %v738 = vld [vmem:[#allocation8 + $0x380] sm:$0xff]
    %v739 = vld [vmem:[#allocation8 + $0x388] sm:$0xff]
    %v740 = vld [vmem:[#allocation8 + $0x390] sm:$0xff]
    %v741 = vld [vmem:[#allocation8 + $0x398] sm:$0xff]
    %v742 = vld [vmem:[#allocation8 + $0x3a0] sm:$0xff]
    %v743 = vld [vmem:[#allocation8 + $0x3a8] sm:$0xff]
    %v744 = vld [vmem:[#allocation8 + $0x3b0] sm:$0xff]
    %v745 = vld [vmem:[#allocation8 + $0x3b8] sm:$0xff]
    %v746 = vld [vmem:[#allocation8 + $0x3c0] sm:$0xff]
    %v747 = vld [vmem:[#allocation8 + $0x3c8] sm:$0xff]
    %v748 = vld [vmem:[#allocation8 + $0x3d0] sm:$0xff]
    %v749 = vld [vmem:[#allocation8 + $0x3d8] sm:$0xff]
    %v750 = vld [vmem:[#allocation8 + $0x3e0] sm:$0xff]
    %v751 = vld [vmem:[#allocation8 + $0x3e8] sm:$0xff]
    %v752 = vld [vmem:[#allocation8 + $0x3f0] sm:$0xff]
    %v753 = vld [vmem:[#allocation8 + $0x3f8] sm:$0xff]
    %v755 = vperm.slane %v321, 0
    %v756 = vperm.slane %v321, 1
    %v757 = vperm.slane %v321, 2
    %v758 = vperm.slane %v321, 3
    %v759 = vperm.slane %v321, 4
    %v760 = vperm.slane %v321, 5
    %v761 = vperm.slane %v321, 6
    %v762 = vperm.slane %v321, 7
    %v899 = vunpack.c.l.b16 %v626
    %v900 = vunpack.c.h.b16 %v626
    %v901 = vunpack.c.l.b16 %v627
    %v902 = vunpack.c.h.b16 %v627
    %v903 = vunpack.c.l.b16 %v628
    %v904 = vunpack.c.h.b16 %v628
    %v905 = vunpack.c.l.b16 %v629
    %v906 = vunpack.c.h.b16 %v629
    %v907 = vunpack.c.l.b16 %v630
    %v908 = vunpack.c.h.b16 %v630
    %v909 = vunpack.c.l.b16 %v631
    %v910 = vunpack.c.h.b16 %v631
    %v911 = vunpack.c.l.b16 %v632
    %v912 = vunpack.c.h.b16 %v632
    %v913 = vunpack.c.l.b16 %v633
    %v914 = vunpack.c.h.b16 %v633
    %v915 = vunpack.c.l.b16 %v634
    %v916 = vunpack.c.h.b16 %v634
    %v917 = vunpack.c.l.b16 %v635
    %v918 = vunpack.c.h.b16 %v635
    %v919 = vunpack.c.l.b16 %v636
    %v920 = vunpack.c.h.b16 %v636
    %v921 = vunpack.c.l.b16 %v637
    %v922 = vunpack.c.h.b16 %v637
    %v923 = vunpack.c.l.b16 %v638
    %v924 = vunpack.c.h.b16 %v638
    %v925 = vunpack.c.l.b16 %v639
    %v926 = vunpack.c.h.b16 %v639
    %v927 = vunpack.c.l.b16 %v640
    %v928 = vunpack.c.h.b16 %v640
    %v929 = vunpack.c.l.b16 %v641
    %v930 = vunpack.c.h.b16 %v641
    %v931 = vunpack.c.l.b16 %v642
    %v932 = vunpack.c.h.b16 %v642
    %v933 = vunpack.c.l.b16 %v643
    %v934 = vunpack.c.h.b16 %v643
    %v935 = vunpack.c.l.b16 %v644
    %v936 = vunpack.c.h.b16 %v644
    %v937 = vunpack.c.l.b16 %v645
    %v938 = vunpack.c.h.b16 %v645
    %v939 = vunpack.c.l.b16 %v646
    %v940 = vunpack.c.h.b16 %v646
    %v941 = vunpack.c.l.b16 %v647
    %v942 = vunpack.c.h.b16 %v647
    %v943 = vunpack.c.l.b16 %v648
    %v944 = vunpack.c.h.b16 %v648
    %v945 = vunpack.c.l.b16 %v649
    %v946 = vunpack.c.h.b16 %v649
    %v947 = vunpack.c.l.b16 %v650
    %v948 = vunpack.c.h.b16 %v650
    %v949 = vunpack.c.l.b16 %v651
    %v950 = vunpack.c.h.b16 %v651
    %v951 = vunpack.c.l.b16 %v652
    %v952 = vunpack.c.h.b16 %v652
    %v953 = vunpack.c.l.b16 %v653
    %v954 = vunpack.c.h.b16 %v653
    %v955 = vunpack.c.l.b16 %v654
    %v956 = vunpack.c.h.b16 %v654
    %v957 = vunpack.c.l.b16 %v655
    %v958 = vunpack.c.h.b16 %v655
    %v959 = vunpack.c.l.b16 %v656
    %v960 = vunpack.c.h.b16 %v656
    %v961 = vunpack.c.l.b16 %v657
    %v962 = vunpack.c.h.b16 %v657
    %v963 = vunpack.c.l.b16 %v658
    %v964 = vunpack.c.h.b16 %v658
    %v965 = vunpack.c.l.b16 %v659
    %v966 = vunpack.c.h.b16 %v659
    %v967 = vunpack.c.l.b16 %v660
    %v968 = vunpack.c.h.b16 %v660
    %v969 = vunpack.c.l.b16 %v661
    %v970 = vunpack.c.h.b16 %v661
    %v971 = vunpack.c.l.b16 %v662
    %v972 = vunpack.c.h.b16 %v662
    %v973 = vunpack.c.l.b16 %v663
    %v974 = vunpack.c.h.b16 %v663
    %v975 = vunpack.c.l.b16 %v664
    %v976 = vunpack.c.h.b16 %v664
    %v977 = vunpack.c.l.b16 %v665
    %v978 = vunpack.c.h.b16 %v665
    %v979 = vunpack.c.l.b16 %v666
    %v980 = vunpack.c.h.b16 %v666
    %v981 = vunpack.c.l.b16 %v667
    %v982 = vunpack.c.h.b16 %v667
    %v983 = vunpack.c.l.b16 %v668
    %v984 = vunpack.c.h.b16 %v668
    %v985 = vunpack.c.l.b16 %v669
    %v986 = vunpack.c.h.b16 %v669
    %v987 = vunpack.c.l.b16 %v670
    %v988 = vunpack.c.h.b16 %v670
    %v989 = vunpack.c.l.b16 %v671
    %v990 = vunpack.c.h.b16 %v671
    %v991 = vunpack.c.l.b16 %v672
    %v992 = vunpack.c.h.b16 %v672
    %v993 = vunpack.c.l.b16 %v673
    %v994 = vunpack.c.h.b16 %v673
    %v995 = vunpack.c.l.b16 %v674
    %v996 = vunpack.c.h.b16 %v674
    %v997 = vunpack.c.l.b16 %v675
    %v998 = vunpack.c.h.b16 %v675
    %v999 = vunpack.c.l.b16 %v676
    %v1000 = vunpack.c.h.b16 %v676
    %v1001 = vunpack.c.l.b16 %v677
    %v1002 = vunpack.c.h.b16 %v677
    %v1003 = vunpack.c.l.b16 %v678
    %v1004 = vunpack.c.h.b16 %v678
    %v1005 = vunpack.c.l.b16 %v679
    %v1006 = vunpack.c.h.b16 %v679
    %v1007 = vunpack.c.l.b16 %v680
    %v1008 = vunpack.c.h.b16 %v680
    %v1009 = vunpack.c.l.b16 %v681
    %v1010 = vunpack.c.h.b16 %v681
    %v1011 = vunpack.c.l.b16 %v682
    %v1012 = vunpack.c.h.b16 %v682
    %v1013 = vunpack.c.l.b16 %v683
    %v1014 = vunpack.c.h.b16 %v683
    %v1015 = vunpack.c.l.b16 %v684
    %v1016 = vunpack.c.h.b16 %v684
    %v1017 = vunpack.c.l.b16 %v685
    %v1018 = vunpack.c.h.b16 %v685
    %v1019 = vunpack.c.l.b16 %v686
    %v1020 = vunpack.c.h.b16 %v686
    %v1021 = vunpack.c.l.b16 %v687
    %v1022 = vunpack.c.h.b16 %v687
    %v1023 = vunpack.c.l.b16 %v688
    %v1024 = vunpack.c.h.b16 %v688
    %v1025 = vunpack.c.l.b16 %v689
    %v1026 = vunpack.c.h.b16 %v689
    %v1027 = vunpack.c.l.b16 %v690
    %v1028 = vunpack.c.h.b16 %v690
    %v1029 = vunpack.c.l.b16 %v691
    %v1030 = vunpack.c.h.b16 %v691
    %v1031 = vunpack.c.l.b16 %v692
    %v1032 = vunpack.c.h.b16 %v692
    %v1033 = vunpack.c.l.b16 %v693
    %v1034 = vunpack.c.h.b16 %v693
    %v1035 = vunpack.c.l.b16 %v694
    %v1036 = vunpack.c.h.b16 %v694
    %v1037 = vunpack.c.l.b16 %v695
    %v1038 = vunpack.c.h.b16 %v695
    %v1039 = vunpack.c.l.b16 %v696
    %v1040 = vunpack.c.h.b16 %v696
    %v1041 = vunpack.c.l.b16 %v697
    %v1042 = vunpack.c.h.b16 %v697
    %v1043 = vunpack.c.l.b16 %v698
    %v1044 = vunpack.c.h.b16 %v698
    %v1045 = vunpack.c.l.b16 %v699
    %v1046 = vunpack.c.h.b16 %v699
    %v1047 = vunpack.c.l.b16 %v700
    %v1048 = vunpack.c.h.b16 %v700
    %v1049 = vunpack.c.l.b16 %v701
    %v1050 = vunpack.c.h.b16 %v701
    %v1051 = vunpack.c.l.b16 %v702
    %v1052 = vunpack.c.h.b16 %v702
    %v1053 = vunpack.c.l.b16 %v703
    %v1054 = vunpack.c.h.b16 %v703
    %v1055 = vunpack.c.l.b16 %v704
    %v1056 = vunpack.c.h.b16 %v704
    %v1057 = vunpack.c.l.b16 %v705
    %v1058 = vunpack.c.h.b16 %v705
    %v1059 = vunpack.c.l.b16 %v706
    %v1060 = vunpack.c.h.b16 %v706
    %v1061 = vunpack.c.l.b16 %v707
    %v1062 = vunpack.c.h.b16 %v707
    %v1063 = vunpack.c.l.b16 %v708
    %v1064 = vunpack.c.h.b16 %v708
    %v1065 = vunpack.c.l.b16 %v709
    %v1066 = vunpack.c.h.b16 %v709
    %v1067 = vunpack.c.l.b16 %v710
    %v1068 = vunpack.c.h.b16 %v710
    %v1069 = vunpack.c.l.b16 %v711
    %v1070 = vunpack.c.h.b16 %v711
    %v1071 = vunpack.c.l.b16 %v712
    %v1072 = vunpack.c.h.b16 %v712
    %v1073 = vunpack.c.l.b16 %v713
    %v1074 = vunpack.c.h.b16 %v713
    %v1075 = vunpack.c.l.b16 %v714
    %v1076 = vunpack.c.h.b16 %v714
    %v1077 = vunpack.c.l.b16 %v715
    %v1078 = vunpack.c.h.b16 %v715
    %v1079 = vunpack.c.l.b16 %v716
    %v1080 = vunpack.c.h.b16 %v716
    %v1081 = vunpack.c.l.b16 %v717
    %v1082 = vunpack.c.h.b16 %v717
    %v1083 = vunpack.c.l.b16 %v718
    %v1084 = vunpack.c.h.b16 %v718
    %v1085 = vunpack.c.l.b16 %v719
    %v1086 = vunpack.c.h.b16 %v719
    %v1087 = vunpack.c.l.b16 %v720
    %v1088 = vunpack.c.h.b16 %v720
    %v1089 = vunpack.c.l.b16 %v721
    %v1090 = vunpack.c.h.b16 %v721
    %v1091 = vunpack.c.l.b16 %v722
    %v1092 = vunpack.c.h.b16 %v722
    %v1093 = vunpack.c.l.b16 %v723
    %v1094 = vunpack.c.h.b16 %v723
    %v1095 = vunpack.c.l.b16 %v724
    %v1096 = vunpack.c.h.b16 %v724
    %v1097 = vunpack.c.l.b16 %v725
    %v1098 = vunpack.c.h.b16 %v725
    %v1099 = vunpack.c.l.b16 %v726
    %v1100 = vunpack.c.h.b16 %v726
    %v1101 = vunpack.c.l.b16 %v727
    %v1102 = vunpack.c.h.b16 %v727
    %v1103 = vunpack.c.l.b16 %v728
    %v1104 = vunpack.c.h.b16 %v728
    %v1105 = vunpack.c.l.b16 %v729
    %v1106 = vunpack.c.h.b16 %v729
    %v1107 = vunpack.c.l.b16 %v730
    %v1108 = vunpack.c.h.b16 %v730
    %v1109 = vunpack.c.l.b16 %v731
    %v1110 = vunpack.c.h.b16 %v731
    %v1111 = vunpack.c.l.b16 %v732
    %v1112 = vunpack.c.h.b16 %v732
    %v1113 = vunpack.c.l.b16 %v733
    %v1114 = vunpack.c.h.b16 %v733
    %v1115 = vunpack.c.l.b16 %v734
    %v1116 = vunpack.c.h.b16 %v734
    %v1117 = vunpack.c.l.b16 %v735
    %v1118 = vunpack.c.h.b16 %v735
    %v1119 = vunpack.c.l.b16 %v736
    %v1120 = vunpack.c.h.b16 %v736
    %v1121 = vunpack.c.l.b16 %v737
    %v1122 = vunpack.c.h.b16 %v737
    %v1123 = vunpack.c.l.b16 %v738
    %v1124 = vunpack.c.h.b16 %v738
    %v1125 = vunpack.c.l.b16 %v739
    %v1126 = vunpack.c.h.b16 %v739
    %v1127 = vunpack.c.l.b16 %v740
    %v1128 = vunpack.c.h.b16 %v740
    %v1129 = vunpack.c.l.b16 %v741
    %v1130 = vunpack.c.h.b16 %v741
    %v1131 = vunpack.c.l.b16 %v742
    %v1132 = vunpack.c.h.b16 %v742
    %v1133 = vunpack.c.l.b16 %v743
    %v1134 = vunpack.c.h.b16 %v743
    %v1135 = vunpack.c.l.b16 %v744
    %v1136 = vunpack.c.h.b16 %v744
    %v1137 = vunpack.c.l.b16 %v745
    %v1138 = vunpack.c.h.b16 %v745
    %v1139 = vunpack.c.l.b16 %v746
    %v1140 = vunpack.c.h.b16 %v746
    %v1141 = vunpack.c.l.b16 %v747
    %v1142 = vunpack.c.h.b16 %v747
    %v1143 = vunpack.c.l.b16 %v748
    %v1144 = vunpack.c.h.b16 %v748
    %v1145 = vunpack.c.l.b16 %v749
    %v1146 = vunpack.c.h.b16 %v749
    %v1147 = vunpack.c.l.b16 %v750
    %v1148 = vunpack.c.h.b16 %v750
    %v1149 = vunpack.c.l.b16 %v751
    %v1150 = vunpack.c.h.b16 %v751
    %v1151 = vunpack.c.l.b16 %v752
    %v1152 = vunpack.c.h.b16 %v752
    %v1153 = vunpack.c.l.b16 %v753
    %v1154 = vunpack.c.h.b16 %v753
    %v1155 = vpack.c.b16 %v907, %v899
    %v1156 = vpack.c.b16 %v908, %v900
    %v1157 = vpack.c.b16 %v909, %v901
    %v1158 = vpack.c.b16 %v910, %v902
    %v1159 = vpack.c.b16 %v911, %v903
    %v1160 = vpack.c.b16 %v912, %v904
    %v1161 = vpack.c.b16 %v913, %v905
    %v1162 = vpack.c.b16 %v914, %v906
    %v1163 = vpack.c.b16 %v923, %v915
    %v1164 = vpack.c.b16 %v924, %v916
    %v1165 = vpack.c.b16 %v925, %v917
    %v1166 = vpack.c.b16 %v926, %v918
    %v1167 = vpack.c.b16 %v927, %v919
    %v1168 = vpack.c.b16 %v928, %v920
    %v1169 = vpack.c.b16 %v929, %v921
    %v1170 = vpack.c.b16 %v930, %v922
    %v1171 = vpack.c.b16 %v939, %v931
    %v1172 = vpack.c.b16 %v940, %v932
    %v1173 = vpack.c.b16 %v941, %v933
    %v1174 = vpack.c.b16 %v942, %v934
    %v1175 = vpack.c.b16 %v943, %v935
    %v1176 = vpack.c.b16 %v944, %v936
    %v1177 = vpack.c.b16 %v945, %v937
    %v1178 = vpack.c.b16 %v946, %v938
    %v1179 = vpack.c.b16 %v955, %v947
    %v1180 = vpack.c.b16 %v956, %v948
    %v1181 = vpack.c.b16 %v957, %v949
    %v1182 = vpack.c.b16 %v958, %v950
    %v1183 = vpack.c.b16 %v959, %v951
    %v1184 = vpack.c.b16 %v960, %v952
    %v1185 = vpack.c.b16 %v961, %v953
    %v1186 = vpack.c.b16 %v962, %v954
    %v1187 = vpack.c.b16 %v971, %v963
    %v1188 = vpack.c.b16 %v972, %v964
    %v1189 = vpack.c.b16 %v973, %v965
    %v1190 = vpack.c.b16 %v974, %v966
    %v1191 = vpack.c.b16 %v975, %v967
    %v1192 = vpack.c.b16 %v976, %v968
    %v1193 = vpack.c.b16 %v977, %v969
    %v1194 = vpack.c.b16 %v978, %v970
    %v1195 = vpack.c.b16 %v987, %v979
    %v1196 = vpack.c.b16 %v988, %v980
    %v1197 = vpack.c.b16 %v989, %v981
    %v1198 = vpack.c.b16 %v990, %v982
    %v1199 = vpack.c.b16 %v991, %v983
    %v1200 = vpack.c.b16 %v992, %v984
    %v1201 = vpack.c.b16 %v993, %v985
    %v1202 = vpack.c.b16 %v994, %v986
    %v1203 = vpack.c.b16 %v1003, %v995
    %v1204 = vpack.c.b16 %v1004, %v996
    %v1205 = vpack.c.b16 %v1005, %v997
    %v1206 = vpack.c.b16 %v1006, %v998
    %v1207 = vpack.c.b16 %v1007, %v999
    %v1208 = vpack.c.b16 %v1008, %v1000
    %v1209 = vpack.c.b16 %v1009, %v1001
    %v1210 = vpack.c.b16 %v1010, %v1002
    %v1211 = vpack.c.b16 %v1019, %v1011
    %v1212 = vpack.c.b16 %v1020, %v1012
    %v1213 = vpack.c.b16 %v1021, %v1013
    %v1214 = vpack.c.b16 %v1022, %v1014
    %v1215 = vpack.c.b16 %v1023, %v1015
    %v1216 = vpack.c.b16 %v1024, %v1016
    %v1217 = vpack.c.b16 %v1025, %v1017
    %v1218 = vpack.c.b16 %v1026, %v1018
    %v1219 = vpack.c.b16 %v1035, %v1027
    %v1220 = vpack.c.b16 %v1036, %v1028
    %v1221 = vpack.c.b16 %v1037, %v1029
    %v1222 = vpack.c.b16 %v1038, %v1030
    %v1223 = vpack.c.b16 %v1039, %v1031
    %v1224 = vpack.c.b16 %v1040, %v1032
    %v1225 = vpack.c.b16 %v1041, %v1033
    %v1226 = vpack.c.b16 %v1042, %v1034
    %v1227 = vpack.c.b16 %v1051, %v1043
    %v1228 = vpack.c.b16 %v1052, %v1044
    %v1229 = vpack.c.b16 %v1053, %v1045
    %v1230 = vpack.c.b16 %v1054, %v1046
    %v1231 = vpack.c.b16 %v1055, %v1047
    %v1232 = vpack.c.b16 %v1056, %v1048
    %v1233 = vpack.c.b16 %v1057, %v1049
    %v1234 = vpack.c.b16 %v1058, %v1050
    %v1235 = vpack.c.b16 %v1067, %v1059
    %v1236 = vpack.c.b16 %v1068, %v1060
    %v1237 = vpack.c.b16 %v1069, %v1061
    %v1238 = vpack.c.b16 %v1070, %v1062
    %v1239 = vpack.c.b16 %v1071, %v1063
    %v1240 = vpack.c.b16 %v1072, %v1064
    %v1241 = vpack.c.b16 %v1073, %v1065
    %v1242 = vpack.c.b16 %v1074, %v1066
    %v1243 = vpack.c.b16 %v1083, %v1075
    %v1244 = vpack.c.b16 %v1084, %v1076
    %v1245 = vpack.c.b16 %v1085, %v1077
    %v1246 = vpack.c.b16 %v1086, %v1078
    %v1247 = vpack.c.b16 %v1087, %v1079
    %v1248 = vpack.c.b16 %v1088, %v1080
    %v1249 = vpack.c.b16 %v1089, %v1081
    %v1250 = vpack.c.b16 %v1090, %v1082
    %v1251 = vpack.c.b16 %v1099, %v1091
    %v1252 = vpack.c.b16 %v1100, %v1092
    %v1253 = vpack.c.b16 %v1101, %v1093
    %v1254 = vpack.c.b16 %v1102, %v1094
    %v1255 = vpack.c.b16 %v1103, %v1095
    %v1256 = vpack.c.b16 %v1104, %v1096
    %v1257 = vpack.c.b16 %v1105, %v1097
    %v1258 = vpack.c.b16 %v1106, %v1098
    %v1259 = vpack.c.b16 %v1115, %v1107
    %v1260 = vpack.c.b16 %v1116, %v1108
    %v1261 = vpack.c.b16 %v1117, %v1109
    %v1262 = vpack.c.b16 %v1118, %v1110
    %v1263 = vpack.c.b16 %v1119, %v1111
    %v1264 = vpack.c.b16 %v1120, %v1112
    %v1265 = vpack.c.b16 %v1121, %v1113
    %v1266 = vpack.c.b16 %v1122, %v1114
    %v1267 = vpack.c.b16 %v1131, %v1123
    %v1268 = vpack.c.b16 %v1132, %v1124
    %v1269 = vpack.c.b16 %v1133, %v1125
    %v1270 = vpack.c.b16 %v1134, %v1126
    %v1271 = vpack.c.b16 %v1135, %v1127
    %v1272 = vpack.c.b16 %v1136, %v1128
    %v1273 = vpack.c.b16 %v1137, %v1129
    %v1274 = vpack.c.b16 %v1138, %v1130
    %v1275 = vpack.c.b16 %v1147, %v1139
    %v1276 = vpack.c.b16 %v1148, %v1140
    %v1277 = vpack.c.b16 %v1149, %v1141
    %v1278 = vpack.c.b16 %v1150, %v1142
    %v1279 = vpack.c.b16 %v1151, %v1143
    %v1280 = vpack.c.b16 %v1152, %v1144
    %v1281 = vpack.c.b16 %v1153, %v1145
    %v1282 = vpack.c.b16 %v1154, %v1146
    %1411 = vmatpush.bf16.msra.mxu0 %v1211
    %1412 = vmatpush.bf16.msra.mxu0 %v1203
    %1413 = vmatpush.bf16.msra.mxu0 %v1195
    %1414 = vmatpush.bf16.msra.mxu0 %v1187
    %1415 = vmatpush.bf16.msra.mxu0 %v1179
    %1416 = vmatpush.bf16.msra.mxu0 %v1171
    %1417 = vmatpush.bf16.msra.mxu0 %v1163
    %1418 = vmatpush.bf16.msra.mxu0 %v1155
    %1419 = vmatmul.bf16.gmra.mxu0 %v624
    %v1420 = vpop.f32.mrf.mxu0
    %v1421 = vadd.f32 %v755, %v1420
    %v1422 = vpop.f32.mrf.mxu0
    %1423 = vdwg.mxu0
    %1424 = vmatpush.bf16.msra.mxu0 %v1275
    %1425 = vmatpush.bf16.msra.mxu0 %v1267
    %1426 = vmatpush.bf16.msra.mxu0 %v1259
    %1427 = vmatpush.bf16.msra.mxu0 %v1251
    %1428 = vmatpush.bf16.msra.mxu0 %v1243
    %1429 = vmatpush.bf16.msra.mxu0 %v1235
    %1430 = vmatpush.bf16.msra.mxu0 %v1227
    %1431 = vmatpush.bf16.msra.mxu0 %v1219
    %1432 = vmatmul.bf16.gmra.mxu0 %v625
    %v1433 = vpop.f32.mrf.mxu0
    %v1434 = vadd.f32 %v1421, %v1433
    %v1435 = vpop.f32.mrf.mxu0
    %1436 = vdwg.mxu0
    %1437 = vmatpush.bf16.msra.mxu0 %v1212
    %1438 = vmatpush.bf16.msra.mxu0 %v1204
    %1439 = vmatpush.bf16.msra.mxu0 %v1196
    %1440 = vmatpush.bf16.msra.mxu0 %v1188
    %1441 = vmatpush.bf16.msra.mxu0 %v1180
    %1442 = vmatpush.bf16.msra.mxu0 %v1172
    %1443 = vmatpush.bf16.msra.mxu0 %v1164
    %1444 = vmatpush.bf16.msra.mxu0 %v1156
    %1445 = vmatmul.bf16.gmra.mxu0 %v624
    %v1446 = vpop.f32.mrf.mxu0
    %v1447 = vadd.f32 %v756, %v1446
    %v1448 = vpop.f32.mrf.mxu0
    %1449 = vdwg.mxu0
    %1450 = vmatpush.bf16.msra.mxu0 %v1276
    %1451 = vmatpush.bf16.msra.mxu0 %v1268
    %1452 = vmatpush.bf16.msra.mxu0 %v1260
    %1453 = vmatpush.bf16.msra.mxu0 %v1252
    %1454 = vmatpush.bf16.msra.mxu0 %v1244
    %1455 = vmatpush.bf16.msra.mxu0 %v1236
    %1456 = vmatpush.bf16.msra.mxu0 %v1228
    %1457 = vmatpush.bf16.msra.mxu0 %v1220
    %1458 = vmatmul.bf16.gmra.mxu0 %v625
    %v1459 = vpop.f32.mrf.mxu0
    %v1460 = vadd.f32 %v1447, %v1459
    %v1461 = vpop.f32.mrf.mxu0
    %1462 = vdwg.mxu0
    %1463 = vmatpush.bf16.msra.mxu0 %v1213
    %1464 = vmatpush.bf16.msra.mxu0 %v1205
    %1465 = vmatpush.bf16.msra.mxu0 %v1197
    %1466 = vmatpush.bf16.msra.mxu0 %v1189
    %1467 = vmatpush.bf16.msra.mxu0 %v1181
    %1468 = vmatpush.bf16.msra.mxu0 %v1173
    %1469 = vmatpush.bf16.msra.mxu0 %v1165
    %1470 = vmatpush.bf16.msra.mxu0 %v1157
    %1471 = vmatmul.bf16.gmra.mxu0 %v624
    %v1472 = vpop.f32.mrf.mxu0
    %v1473 = vadd.f32 %v757, %v1472
    %v1474 = vpop.f32.mrf.mxu0
    %1475 = vdwg.mxu0
    %1476 = vmatpush.bf16.msra.mxu0 %v1277
    %1477 = vmatpush.bf16.msra.mxu0 %v1269
    %1478 = vmatpush.bf16.msra.mxu0 %v1261
    %1479 = vmatpush.bf16.msra.mxu0 %v1253
    %1480 = vmatpush.bf16.msra.mxu0 %v1245
    %1481 = vmatpush.bf16.msra.mxu0 %v1237
    %1482 = vmatpush.bf16.msra.mxu0 %v1229
    %1483 = vmatpush.bf16.msra.mxu0 %v1221
    %1484 = vmatmul.bf16.gmra.mxu0 %v625
    %v1485 = vpop.f32.mrf.mxu0
    %v1486 = vadd.f32 %v1473, %v1485
    %v1487 = vpop.f32.mrf.mxu0
    %1488 = vdwg.mxu0
    %1489 = vmatpush.bf16.msra.mxu0 %v1214
    %1490 = vmatpush.bf16.msra.mxu0 %v1206
    %1491 = vmatpush.bf16.msra.mxu0 %v1198
    %1492 = vmatpush.bf16.msra.mxu0 %v1190
    %1493 = vmatpush.bf16.msra.mxu0 %v1182
    %1494 = vmatpush.bf16.msra.mxu0 %v1174
    %1495 = vmatpush.bf16.msra.mxu0 %v1166
    %1496 = vmatpush.bf16.msra.mxu0 %v1158
    %1497 = vmatmul.bf16.gmra.mxu0 %v624
    %v1498 = vpop.f32.mrf.mxu0
    %v1499 = vadd.f32 %v758, %v1498
    %v1500 = vpop.f32.mrf.mxu0
    %1501 = vdwg.mxu0
    %1502 = vmatpush.bf16.msra.mxu0 %v1278
    %1503 = vmatpush.bf16.msra.mxu0 %v1270
    %1504 = vmatpush.bf16.msra.mxu0 %v1262
    %1505 = vmatpush.bf16.msra.mxu0 %v1254
    %1506 = vmatpush.bf16.msra.mxu0 %v1246
    %1507 = vmatpush.bf16.msra.mxu0 %v1238
    %1508 = vmatpush.bf16.msra.mxu0 %v1230
    %1509 = vmatpush.bf16.msra.mxu0 %v1222
    %1510 = vmatmul.bf16.gmra.mxu0 %v625
    %v1511 = vpop.f32.mrf.mxu0
    %v1512 = vadd.f32 %v1499, %v1511
    %v1513 = vpop.f32.mrf.mxu0
    %1514 = vdwg.mxu0
    %1515 = vmatpush.bf16.msra.mxu0 %v1215
    %1516 = vmatpush.bf16.msra.mxu0 %v1207
    %1517 = vmatpush.bf16.msra.mxu0 %v1199
    %1518 = vmatpush.bf16.msra.mxu0 %v1191
    %1519 = vmatpush.bf16.msra.mxu0 %v1183
    %1520 = vmatpush.bf16.msra.mxu0 %v1175
    %1521 = vmatpush.bf16.msra.mxu0 %v1167
    %1522 = vmatpush.bf16.msra.mxu0 %v1159
    %1523 = vmatmul.bf16.gmra.mxu0 %v624
    %v1524 = vpop.f32.mrf.mxu0
    %v1525 = vadd.f32 %v759, %v1524
    %v1526 = vpop.f32.mrf.mxu0
    %1527 = vdwg.mxu0
    %1528 = vmatpush.bf16.msra.mxu0 %v1279
    %1529 = vmatpush.bf16.msra.mxu0 %v1271
    %1530 = vmatpush.bf16.msra.mxu0 %v1263
    %1531 = vmatpush.bf16.msra.mxu0 %v1255
    %1532 = vmatpush.bf16.msra.mxu0 %v1247
    %1533 = vmatpush.bf16.msra.mxu0 %v1239
    %1534 = vmatpush.bf16.msra.mxu0 %v1231
    %1535 = vmatpush.bf16.msra.mxu0 %v1223
    %1536 = vmatmul.bf16.gmra.mxu0 %v625
    %v1537 = vpop.f32.mrf.mxu0
    %v1538 = vadd.f32 %v1525, %v1537
    %v1539 = vpop.f32.mrf.mxu0
    %1540 = vdwg.mxu0
    %1541 = vmatpush.bf16.msra.mxu0 %v1216
    %1542 = vmatpush.bf16.msra.mxu0 %v1208
    %1543 = vmatpush.bf16.msra.mxu0 %v1200
    %1544 = vmatpush.bf16.msra.mxu0 %v1192
    %1545 = vmatpush.bf16.msra.mxu0 %v1184
    %1546 = vmatpush.bf16.msra.mxu0 %v1176
    %1547 = vmatpush.bf16.msra.mxu0 %v1168
    %1548 = vmatpush.bf16.msra.mxu0 %v1160
    %1549 = vmatmul.bf16.gmra.mxu0 %v624
    %v1550 = vpop.f32.mrf.mxu0
    %v1551 = vadd.f32 %v760, %v1550
    %v1552 = vpop.f32.mrf.mxu0
    %1553 = vdwg.mxu0
    %1554 = vmatpush.bf16.msra.mxu0 %v1280
    %1555 = vmatpush.bf16.msra.mxu0 %v1272
    %1556 = vmatpush.bf16.msra.mxu0 %v1264
    %1557 = vmatpush.bf16.msra.mxu0 %v1256
    %1558 = vmatpush.bf16.msra.mxu0 %v1248
    %1559 = vmatpush.bf16.msra.mxu0 %v1240
    %1560 = vmatpush.bf16.msra.mxu0 %v1232
    %1561 = vmatpush.bf16.msra.mxu0 %v1224
    %1562 = vmatmul.bf16.gmra.mxu0 %v625
    %v1563 = vpop.f32.mrf.mxu0
    %v1564 = vadd.f32 %v1551, %v1563
    %v1565 = vpop.f32.mrf.mxu0
    %1566 = vdwg.mxu0
    %1567 = vmatpush.bf16.msra.mxu0 %v1217
    %1568 = vmatpush.bf16.msra.mxu0 %v1209
    %1569 = vmatpush.bf16.msra.mxu0 %v1201
    %1570 = vmatpush.bf16.msra.mxu0 %v1193
    %1571 = vmatpush.bf16.msra.mxu0 %v1185
    %1572 = vmatpush.bf16.msra.mxu0 %v1177
    %1573 = vmatpush.bf16.msra.mxu0 %v1169
    %1574 = vmatpush.bf16.msra.mxu0 %v1161
    %1575 = vmatmul.bf16.gmra.mxu0 %v624
    %v1576 = vpop.f32.mrf.mxu0
    %v1577 = vadd.f32 %v761, %v1576
    %v1578 = vpop.f32.mrf.mxu0
    %1579 = vdwg.mxu0
    %1580 = vmatpush.bf16.msra.mxu0 %v1281
    %1581 = vmatpush.bf16.msra.mxu0 %v1273
    %1582 = vmatpush.bf16.msra.mxu0 %v1265
    %1583 = vmatpush.bf16.msra.mxu0 %v1257
    %1584 = vmatpush.bf16.msra.mxu0 %v1249
    %1585 = vmatpush.bf16.msra.mxu0 %v1241
    %1586 = vmatpush.bf16.msra.mxu0 %v1233
    %1587 = vmatpush.bf16.msra.mxu0 %v1225
    %1588 = vmatmul.bf16.gmra.mxu0 %v625
    %v1589 = vpop.f32.mrf.mxu0
    %v1590 = vadd.f32 %v1577, %v1589
    %v1591 = vpop.f32.mrf.mxu0
    %1592 = vdwg.mxu0
    %1593 = vmatpush.bf16.msra.mxu0 %v1218
    %1594 = vmatpush.bf16.msra.mxu0 %v1210
    %1595 = vmatpush.bf16.msra.mxu0 %v1202
    %1596 = vmatpush.bf16.msra.mxu0 %v1194
    %1597 = vmatpush.bf16.msra.mxu0 %v1186
    %1598 = vmatpush.bf16.msra.mxu0 %v1178
    %1599 = vmatpush.bf16.msra.mxu0 %v1170
    %1600 = vmatpush.bf16.msra.mxu0 %v1162
    %1601 = vmatmul.bf16.gmra.mxu0 %v624
    %v1602 = vpop.f32.mrf.mxu0
    %v1603 = vadd.f32 %v762, %v1602
    %v1604 = vpop.f32.mrf.mxu0
    %1605 = vdwg.mxu0
    %1606 = vmatpush.bf16.msra.mxu0 %v1282
    %1607 = vmatpush.bf16.msra.mxu0 %v1274
    %1608 = vmatpush.bf16.msra.mxu0 %v1266
    %1609 = vmatpush.bf16.msra.mxu0 %v1258
    %1610 = vmatpush.bf16.msra.mxu0 %v1250
    %1611 = vmatpush.bf16.msra.mxu0 %v1242
    %1612 = vmatpush.bf16.msra.mxu0 %v1234
    %1613 = vmatpush.bf16.msra.mxu0 %v1226
    %1614 = vmatmul.bf16.gmra.mxu0 %v625
    %v1615 = vpop.f32.mrf.mxu0
    %v1616 = vadd.f32 %v1603, %v1615
    %v1617 = vpop.f32.mrf.mxu0
    %1618 = vdwg.mxu0
    %v1619 = vmax.f32 %v1434, 0.0
    %v1620 = vmax.f32 %v1460, 0.0
    %v1621 = vmax.f32 %v1486, 0.0
    %v1622 = vmax.f32 %v1512, 0.0
    %v1623 = vmax.f32 %v1538, 0.0
    %v1624 = vmax.f32 %v1564, 0.0
    %v1625 = vmax.f32 %v1590, 0.0
    %v1626 = vmax.f32 %v1616, 0.0
    %v1627 = vpack.c.bf16 %v1619, %v1619
    %v1628 = vpack.c.bf16 %v1620, %v1620
    %v1629 = vpack.c.bf16 %v1621, %v1621
    %v1630 = vpack.c.bf16 %v1622, %v1622
    %v1631 = vpack.c.bf16 %v1623, %v1623
    %v1632 = vpack.c.bf16 %v1624, %v1624
    %v1633 = vpack.c.bf16 %v1625, %v1625
    %v1634 = vpack.c.bf16 %v1626, %v1626
    %v1635 = vld [vmem:[#allocation10] sm:$0xff]
    %v1636 = vld [vmem:[#allocation10 + $0x8] sm:$0xff]
    %v1637 = vld [vmem:[#allocation10 + $0x10] sm:$0xff]
    %v1638 = vld [vmem:[#allocation10 + $0x18] sm:$0xff]
    %v1639 = vld [vmem:[#allocation10 + $0x20] sm:$0xff]
    %v1640 = vld [vmem:[#allocation10 + $0x28] sm:$0xff]
    %v1641 = vld [vmem:[#allocation10 + $0x30] sm:$0xff]
    %v1642 = vld [vmem:[#allocation10 + $0x38] sm:$0xff]
    %v1643 = vld [vmem:[#allocation10 + $0x40] sm:$0xff]
    %v1644 = vld [vmem:[#allocation10 + $0x48] sm:$0xff]
    %v1645 = vld [vmem:[#allocation10 + $0x50] sm:$0xff]
    %v1646 = vld [vmem:[#allocation10 + $0x58] sm:$0xff]
    %v1647 = vld [vmem:[#allocation10 + $0x60] sm:$0xff]
    %v1648 = vld [vmem:[#allocation10 + $0x68] sm:$0xff]
    %v1649 = vld [vmem:[#allocation10 + $0x70] sm:$0xff]
    %v1650 = vld [vmem:[#allocation10 + $0x78] sm:$0xff]
    %v1651 = vld [vmem:[#allocation10 + $0x80] sm:$0xff]
    %v1652 = vld [vmem:[#allocation10 + $0x88] sm:$0xff]
    %v1653 = vld [vmem:[#allocation10 + $0x90] sm:$0xff]
    %v1654 = vld [vmem:[#allocation10 + $0x98] sm:$0xff]
    %v1655 = vld [vmem:[#allocation10 + $0xa0] sm:$0xff]
    %v1656 = vld [vmem:[#allocation10 + $0xa8] sm:$0xff]
    %v1657 = vld [vmem:[#allocation10 + $0xb0] sm:$0xff]
    %v1658 = vld [vmem:[#allocation10 + $0xb8] sm:$0xff]
    %v1659 = vld [vmem:[#allocation10 + $0xc0] sm:$0xff]
    %v1660 = vld [vmem:[#allocation10 + $0xc8] sm:$0xff]
    %v1661 = vld [vmem:[#allocation10 + $0xd0] sm:$0xff]
    %v1662 = vld [vmem:[#allocation10 + $0xd8] sm:$0xff]
    %v1663 = vld [vmem:[#allocation10 + $0xe0] sm:$0xff]
    %v1664 = vld [vmem:[#allocation10 + $0xe8] sm:$0xff]
    %v1665 = vld [vmem:[#allocation10 + $0xf0] sm:$0xff]
    %v1666 = vld [vmem:[#allocation10 + $0xf8] sm:$0xff]
    %v1667 = vld [vmem:[#allocation10 + $0x100] sm:$0xff]
    %v1668 = vld [vmem:[#allocation10 + $0x108] sm:$0xff]
    %v1669 = vld [vmem:[#allocation10 + $0x110] sm:$0xff]
    %v1670 = vld [vmem:[#allocation10 + $0x118] sm:$0xff]
    %v1671 = vld [vmem:[#allocation10 + $0x120] sm:$0xff]
    %v1672 = vld [vmem:[#allocation10 + $0x128] sm:$0xff]
    %v1673 = vld [vmem:[#allocation10 + $0x130] sm:$0xff]
    %v1674 = vld [vmem:[#allocation10 + $0x138] sm:$0xff]
    %v1675 = vld [vmem:[#allocation10 + $0x140] sm:$0xff]
    %v1676 = vld [vmem:[#allocation10 + $0x148] sm:$0xff]
    %v1677 = vld [vmem:[#allocation10 + $0x150] sm:$0xff]
    %v1678 = vld [vmem:[#allocation10 + $0x158] sm:$0xff]
    %v1679 = vld [vmem:[#allocation10 + $0x160] sm:$0xff]
    %v1680 = vld [vmem:[#allocation10 + $0x168] sm:$0xff]
    %v1681 = vld [vmem:[#allocation10 + $0x170] sm:$0xff]
    %v1682 = vld [vmem:[#allocation10 + $0x178] sm:$0xff]
    %v1683 = vld [vmem:[#allocation10 + $0x180] sm:$0xff]
    %v1684 = vld [vmem:[#allocation10 + $0x188] sm:$0xff]
    %v1685 = vld [vmem:[#allocation10 + $0x190] sm:$0xff]
    %v1686 = vld [vmem:[#allocation10 + $0x198] sm:$0xff]
    %v1687 = vld [vmem:[#allocation10 + $0x1a0] sm:$0xff]
    %v1688 = vld [vmem:[#allocation10 + $0x1a8] sm:$0xff]
    %v1689 = vld [vmem:[#allocation10 + $0x1b0] sm:$0xff]
    %v1690 = vld [vmem:[#allocation10 + $0x1b8] sm:$0xff]
    %v1691 = vld [vmem:[#allocation10 + $0x1c0] sm:$0xff]
    %v1692 = vld [vmem:[#allocation10 + $0x1c8] sm:$0xff]
    %v1693 = vld [vmem:[#allocation10 + $0x1d0] sm:$0xff]
    %v1694 = vld [vmem:[#allocation10 + $0x1d8] sm:$0xff]
    %v1695 = vld [vmem:[#allocation10 + $0x1e0] sm:$0xff]
    %v1696 = vld [vmem:[#allocation10 + $0x1e8] sm:$0xff]
    %v1697 = vld [vmem:[#allocation10 + $0x1f0] sm:$0xff]
    %v1698 = vld [vmem:[#allocation10 + $0x1f8] sm:$0xff]
    %v1699 = vld [vmem:[#allocation10 + $0x200] sm:$0xff]
    %v1700 = vld [vmem:[#allocation10 + $0x208] sm:$0xff]
    %v1701 = vld [vmem:[#allocation10 + $0x210] sm:$0xff]
    %v1702 = vld [vmem:[#allocation10 + $0x218] sm:$0xff]
    %v1703 = vld [vmem:[#allocation10 + $0x220] sm:$0xff]
    %v1704 = vld [vmem:[#allocation10 + $0x228] sm:$0xff]
    %v1705 = vld [vmem:[#allocation10 + $0x230] sm:$0xff]
    %v1706 = vld [vmem:[#allocation10 + $0x238] sm:$0xff]
    %v1707 = vld [vmem:[#allocation10 + $0x240] sm:$0xff]
    %v1708 = vld [vmem:[#allocation10 + $0x248] sm:$0xff]
    %v1709 = vld [vmem:[#allocation10 + $0x250] sm:$0xff]
    %v1710 = vld [vmem:[#allocation10 + $0x258] sm:$0xff]
    %v1711 = vld [vmem:[#allocation10 + $0x260] sm:$0xff]
    %v1712 = vld [vmem:[#allocation10 + $0x268] sm:$0xff]
    %v1713 = vld [vmem:[#allocation10 + $0x270] sm:$0xff]
    %v1714 = vld [vmem:[#allocation10 + $0x278] sm:$0xff]
    %v1715 = vld [vmem:[#allocation10 + $0x280] sm:$0xff]
    %v1716 = vld [vmem:[#allocation10 + $0x288] sm:$0xff]
    %v1717 = vld [vmem:[#allocation10 + $0x290] sm:$0xff]
    %v1718 = vld [vmem:[#allocation10 + $0x298] sm:$0xff]
    %v1719 = vld [vmem:[#allocation10 + $0x2a0] sm:$0xff]
    %v1720 = vld [vmem:[#allocation10 + $0x2a8] sm:$0xff]
    %v1721 = vld [vmem:[#allocation10 + $0x2b0] sm:$0xff]
    %v1722 = vld [vmem:[#allocation10 + $0x2b8] sm:$0xff]
    %v1723 = vld [vmem:[#allocation10 + $0x2c0] sm:$0xff]
    %v1724 = vld [vmem:[#allocation10 + $0x2c8] sm:$0xff]
    %v1725 = vld [vmem:[#allocation10 + $0x2d0] sm:$0xff]
    %v1726 = vld [vmem:[#allocation10 + $0x2d8] sm:$0xff]
    %v1727 = vld [vmem:[#allocation10 + $0x2e0] sm:$0xff]
    %v1728 = vld [vmem:[#allocation10 + $0x2e8] sm:$0xff]
    %v1729 = vld [vmem:[#allocation10 + $0x2f0] sm:$0xff]
    %v1730 = vld [vmem:[#allocation10 + $0x2f8] sm:$0xff]
    %v1731 = vld [vmem:[#allocation10 + $0x300] sm:$0xff]
    %v1732 = vld [vmem:[#allocation10 + $0x308] sm:$0xff]
    %v1733 = vld [vmem:[#allocation10 + $0x310] sm:$0xff]
    %v1734 = vld [vmem:[#allocation10 + $0x318] sm:$0xff]
    %v1735 = vld [vmem:[#allocation10 + $0x320] sm:$0xff]
    %v1736 = vld [vmem:[#allocation10 + $0x328] sm:$0xff]
    %v1737 = vld [vmem:[#allocation10 + $0x330] sm:$0xff]
    %v1738 = vld [vmem:[#allocation10 + $0x338] sm:$0xff]
    %v1739 = vld [vmem:[#allocation10 + $0x340] sm:$0xff]
    %v1740 = vld [vmem:[#allocation10 + $0x348] sm:$0xff]
    %v1741 = vld [vmem:[#allocation10 + $0x350] sm:$0xff]
    %v1742 = vld [vmem:[#allocation10 + $0x358] sm:$0xff]
    %v1743 = vld [vmem:[#allocation10 + $0x360] sm:$0xff]
    %v1744 = vld [vmem:[#allocation10 + $0x368] sm:$0xff]
    %v1745 = vld [vmem:[#allocation10 + $0x370] sm:$0xff]
    %v1746 = vld [vmem:[#allocation10 + $0x378] sm:$0xff]
    %v1747 = vld [vmem:[#allocation10 + $0x380] sm:$0xff]
    %v1748 = vld [vmem:[#allocation10 + $0x388] sm:$0xff]
    %v1749 = vld [vmem:[#allocation10 + $0x390] sm:$0xff]
    %v1750 = vld [vmem:[#allocation10 + $0x398] sm:$0xff]
    %v1751 = vld [vmem:[#allocation10 + $0x3a0] sm:$0xff]
    %v1752 = vld [vmem:[#allocation10 + $0x3a8] sm:$0xff]
    %v1753 = vld [vmem:[#allocation10 + $0x3b0] sm:$0xff]
    %v1754 = vld [vmem:[#allocation10 + $0x3b8] sm:$0xff]
    %v1755 = vld [vmem:[#allocation10 + $0x3c0] sm:$0xff]
    %v1756 = vld [vmem:[#allocation10 + $0x3c8] sm:$0xff]
    %v1757 = vld [vmem:[#allocation10 + $0x3d0] sm:$0xff]
    %v1758 = vld [vmem:[#allocation10 + $0x3d8] sm:$0xff]
    %v1759 = vld [vmem:[#allocation10 + $0x3e0] sm:$0xff]
    %v1760 = vld [vmem:[#allocation10 + $0x3e8] sm:$0xff]
    %v1761 = vld [vmem:[#allocation10 + $0x3f0] sm:$0xff]
    %v1762 = vld [vmem:[#allocation10 + $0x3f8] sm:$0xff]
    %v1764 = vperm.slane %v322, 0
    %v1765 = vperm.slane %v322, 1
    %v1896 = vunpack.c.l.b16 %v1635
    %v1897 = vunpack.c.h.b16 %v1635
    %v1898 = vunpack.c.l.b16 %v1636
    %v1899 = vunpack.c.h.b16 %v1636
    %v1900 = vunpack.c.l.b16 %v1637
    %v1901 = vunpack.c.h.b16 %v1637
    %v1902 = vunpack.c.l.b16 %v1638
    %v1903 = vunpack.c.h.b16 %v1638
    %v1904 = vunpack.c.l.b16 %v1639
    %v1905 = vunpack.c.h.b16 %v1639
    %v1906 = vunpack.c.l.b16 %v1640
    %v1907 = vunpack.c.h.b16 %v1640
    %v1908 = vunpack.c.l.b16 %v1641
    %v1909 = vunpack.c.h.b16 %v1641
    %v1910 = vunpack.c.l.b16 %v1642
    %v1911 = vunpack.c.h.b16 %v1642
    %v1912 = vunpack.c.l.b16 %v1643
    %v1913 = vunpack.c.h.b16 %v1643
    %v1914 = vunpack.c.l.b16 %v1644
    %v1915 = vunpack.c.h.b16 %v1644
    %v1916 = vunpack.c.l.b16 %v1645
    %v1917 = vunpack.c.h.b16 %v1645
    %v1918 = vunpack.c.l.b16 %v1646
    %v1919 = vunpack.c.h.b16 %v1646
    %v1920 = vunpack.c.l.b16 %v1647
    %v1921 = vunpack.c.h.b16 %v1647
    %v1922 = vunpack.c.l.b16 %v1648
    %v1923 = vunpack.c.h.b16 %v1648
    %v1924 = vunpack.c.l.b16 %v1649
    %v1925 = vunpack.c.h.b16 %v1649
    %v1926 = vunpack.c.l.b16 %v1650
    %v1927 = vunpack.c.h.b16 %v1650
    %v1928 = vunpack.c.l.b16 %v1651
    %v1929 = vunpack.c.h.b16 %v1651
    %v1930 = vunpack.c.l.b16 %v1652
    %v1931 = vunpack.c.h.b16 %v1652
    %v1932 = vunpack.c.l.b16 %v1653
    %v1933 = vunpack.c.h.b16 %v1653
    %v1934 = vunpack.c.l.b16 %v1654
    %v1935 = vunpack.c.h.b16 %v1654
    %v1936 = vunpack.c.l.b16 %v1655
    %v1937 = vunpack.c.h.b16 %v1655
    %v1938 = vunpack.c.l.b16 %v1656
    %v1939 = vunpack.c.h.b16 %v1656
    %v1940 = vunpack.c.l.b16 %v1657
    %v1941 = vunpack.c.h.b16 %v1657
    %v1942 = vunpack.c.l.b16 %v1658
    %v1943 = vunpack.c.h.b16 %v1658
    %v1944 = vunpack.c.l.b16 %v1659
    %v1945 = vunpack.c.h.b16 %v1659
    %v1946 = vunpack.c.l.b16 %v1660
    %v1947 = vunpack.c.h.b16 %v1660
    %v1948 = vunpack.c.l.b16 %v1661
    %v1949 = vunpack.c.h.b16 %v1661
    %v1950 = vunpack.c.l.b16 %v1662
    %v1951 = vunpack.c.h.b16 %v1662
    %v1952 = vunpack.c.l.b16 %v1663
    %v1953 = vunpack.c.h.b16 %v1663
    %v1954 = vunpack.c.l.b16 %v1664
    %v1955 = vunpack.c.h.b16 %v1664
    %v1956 = vunpack.c.l.b16 %v1665
    %v1957 = vunpack.c.h.b16 %v1665
    %v1958 = vunpack.c.l.b16 %v1666
    %v1959 = vunpack.c.h.b16 %v1666
    %v1960 = vunpack.c.l.b16 %v1667
    %v1961 = vunpack.c.h.b16 %v1667
    %v1962 = vunpack.c.l.b16 %v1668
    %v1963 = vunpack.c.h.b16 %v1668
    %v1964 = vunpack.c.l.b16 %v1669
    %v1965 = vunpack.c.h.b16 %v1669
    %v1966 = vunpack.c.l.b16 %v1670
    %v1967 = vunpack.c.h.b16 %v1670
    %v1968 = vunpack.c.l.b16 %v1671
    %v1969 = vunpack.c.h.b16 %v1671
    %v1970 = vunpack.c.l.b16 %v1672
    %v1971 = vunpack.c.h.b16 %v1672
    %v1972 = vunpack.c.l.b16 %v1673
    %v1973 = vunpack.c.h.b16 %v1673
    %v1974 = vunpack.c.l.b16 %v1674
    %v1975 = vunpack.c.h.b16 %v1674
    %v1976 = vunpack.c.l.b16 %v1675
    %v1977 = vunpack.c.h.b16 %v1675
    %v1978 = vunpack.c.l.b16 %v1676
    %v1979 = vunpack.c.h.b16 %v1676
    %v1980 = vunpack.c.l.b16 %v1677
    %v1981 = vunpack.c.h.b16 %v1677
    %v1982 = vunpack.c.l.b16 %v1678
    %v1983 = vunpack.c.h.b16 %v1678
    %v1984 = vunpack.c.l.b16 %v1679
    %v1985 = vunpack.c.h.b16 %v1679
    %v1986 = vunpack.c.l.b16 %v1680
    %v1987 = vunpack.c.h.b16 %v1680
    %v1988 = vunpack.c.l.b16 %v1681
    %v1989 = vunpack.c.h.b16 %v1681
    %v1990 = vunpack.c.l.b16 %v1682
    %v1991 = vunpack.c.h.b16 %v1682
    %v1992 = vunpack.c.l.b16 %v1683
    %v1993 = vunpack.c.h.b16 %v1683
    %v1994 = vunpack.c.l.b16 %v1684
    %v1995 = vunpack.c.h.b16 %v1684
    %v1996 = vunpack.c.l.b16 %v1685
    %v1997 = vunpack.c.h.b16 %v1685
    %v1998 = vunpack.c.l.b16 %v1686
    %v1999 = vunpack.c.h.b16 %v1686
    %v2000 = vunpack.c.l.b16 %v1687
    %v2001 = vunpack.c.h.b16 %v1687
    %v2002 = vunpack.c.l.b16 %v1688
    %v2003 = vunpack.c.h.b16 %v1688
    %v2004 = vunpack.c.l.b16 %v1689
    %v2005 = vunpack.c.h.b16 %v1689
    %v2006 = vunpack.c.l.b16 %v1690
    %v2007 = vunpack.c.h.b16 %v1690
    %v2008 = vunpack.c.l.b16 %v1691
    %v2009 = vunpack.c.h.b16 %v1691
    %v2010 = vunpack.c.l.b16 %v1692
    %v2011 = vunpack.c.h.b16 %v1692
    %v2012 = vunpack.c.l.b16 %v1693
    %v2013 = vunpack.c.h.b16 %v1693
    %v2014 = vunpack.c.l.b16 %v1694
    %v2015 = vunpack.c.h.b16 %v1694
    %v2016 = vunpack.c.l.b16 %v1695
    %v2017 = vunpack.c.h.b16 %v1695
    %v2018 = vunpack.c.l.b16 %v1696
    %v2019 = vunpack.c.h.b16 %v1696
    %v2020 = vunpack.c.l.b16 %v1697
    %v2021 = vunpack.c.h.b16 %v1697
    %v2022 = vunpack.c.l.b16 %v1698
    %v2023 = vunpack.c.h.b16 %v1698
    %v2024 = vunpack.c.l.b16 %v1699
    %v2025 = vunpack.c.h.b16 %v1699
    %v2026 = vunpack.c.l.b16 %v1700
    %v2027 = vunpack.c.h.b16 %v1700
    %v2028 = vunpack.c.l.b16 %v1701
    %v2029 = vunpack.c.h.b16 %v1701
    %v2030 = vunpack.c.l.b16 %v1702
    %v2031 = vunpack.c.h.b16 %v1702
    %v2032 = vunpack.c.l.b16 %v1703
    %v2033 = vunpack.c.h.b16 %v1703
    %v2034 = vunpack.c.l.b16 %v1704
    %v2035 = vunpack.c.h.b16 %v1704
    %v2036 = vunpack.c.l.b16 %v1705
    %v2037 = vunpack.c.h.b16 %v1705
    %v2038 = vunpack.c.l.b16 %v1706
    %v2039 = vunpack.c.h.b16 %v1706
    %v2040 = vunpack.c.l.b16 %v1707
    %v2041 = vunpack.c.h.b16 %v1707
    %v2042 = vunpack.c.l.b16 %v1708
    %v2043 = vunpack.c.h.b16 %v1708
    %v2044 = vunpack.c.l.b16 %v1709
    %v2045 = vunpack.c.h.b16 %v1709
    %v2046 = vunpack.c.l.b16 %v1710
    %v2047 = vunpack.c.h.b16 %v1710
    %v2048 = vunpack.c.l.b16 %v1711
    %v2049 = vunpack.c.h.b16 %v1711
    %v2050 = vunpack.c.l.b16 %v1712
    %v2051 = vunpack.c.h.b16 %v1712
    %v2052 = vunpack.c.l.b16 %v1713
    %v2053 = vunpack.c.h.b16 %v1713
    %v2054 = vunpack.c.l.b16 %v1714
    %v2055 = vunpack.c.h.b16 %v1714
    %v2056 = vunpack.c.l.b16 %v1715
    %v2057 = vunpack.c.h.b16 %v1715
    %v2058 = vunpack.c.l.b16 %v1716
    %v2059 = vunpack.c.h.b16 %v1716
    %v2060 = vunpack.c.l.b16 %v1717
    %v2061 = vunpack.c.h.b16 %v1717
    %v2062 = vunpack.c.l.b16 %v1718
    %v2063 = vunpack.c.h.b16 %v1718
    %v2064 = vunpack.c.l.b16 %v1719
    %v2065 = vunpack.c.h.b16 %v1719
    %v2066 = vunpack.c.l.b16 %v1720
    %v2067 = vunpack.c.h.b16 %v1720
    %v2068 = vunpack.c.l.b16 %v1721
    %v2069 = vunpack.c.h.b16 %v1721
    %v2070 = vunpack.c.l.b16 %v1722
    %v2071 = vunpack.c.h.b16 %v1722
    %v2072 = vunpack.c.l.b16 %v1723
    %v2073 = vunpack.c.h.b16 %v1723
    %v2074 = vunpack.c.l.b16 %v1724
    %v2075 = vunpack.c.h.b16 %v1724
    %v2076 = vunpack.c.l.b16 %v1725
    %v2077 = vunpack.c.h.b16 %v1725
    %v2078 = vunpack.c.l.b16 %v1726
    %v2079 = vunpack.c.h.b16 %v1726
    %v2080 = vunpack.c.l.b16 %v1727
    %v2081 = vunpack.c.h.b16 %v1727
    %v2082 = vunpack.c.l.b16 %v1728
    %v2083 = vunpack.c.h.b16 %v1728
    %v2084 = vunpack.c.l.b16 %v1729
    %v2085 = vunpack.c.h.b16 %v1729
    %v2086 = vunpack.c.l.b16 %v1730
    %v2087 = vunpack.c.h.b16 %v1730
    %v2088 = vunpack.c.l.b16 %v1731
    %v2089 = vunpack.c.h.b16 %v1731
    %v2090 = vunpack.c.l.b16 %v1732
    %v2091 = vunpack.c.h.b16 %v1732
    %v2092 = vunpack.c.l.b16 %v1733
    %v2093 = vunpack.c.h.b16 %v1733
    %v2094 = vunpack.c.l.b16 %v1734
    %v2095 = vunpack.c.h.b16 %v1734
    %v2096 = vunpack.c.l.b16 %v1735
    %v2097 = vunpack.c.h.b16 %v1735
    %v2098 = vunpack.c.l.b16 %v1736
    %v2099 = vunpack.c.h.b16 %v1736
    %v2100 = vunpack.c.l.b16 %v1737
    %v2101 = vunpack.c.h.b16 %v1737
    %v2102 = vunpack.c.l.b16 %v1738
    %v2103 = vunpack.c.h.b16 %v1738
    %v2104 = vunpack.c.l.b16 %v1739
    %v2105 = vunpack.c.h.b16 %v1739
    %v2106 = vunpack.c.l.b16 %v1740
    %v2107 = vunpack.c.h.b16 %v1740
    %v2108 = vunpack.c.l.b16 %v1741
    %v2109 = vunpack.c.h.b16 %v1741
    %v2110 = vunpack.c.l.b16 %v1742
    %v2111 = vunpack.c.h.b16 %v1742
    %v2112 = vunpack.c.l.b16 %v1743
    %v2113 = vunpack.c.h.b16 %v1743
    %v2114 = vunpack.c.l.b16 %v1744
    %v2115 = vunpack.c.h.b16 %v1744
    %v2116 = vunpack.c.l.b16 %v1745
    %v2117 = vunpack.c.h.b16 %v1745
    %v2118 = vunpack.c.l.b16 %v1746
    %v2119 = vunpack.c.h.b16 %v1746
    %v2120 = vunpack.c.l.b16 %v1747
    %v2121 = vunpack.c.h.b16 %v1747
    %v2122 = vunpack.c.l.b16 %v1748
    %v2123 = vunpack.c.h.b16 %v1748
    %v2124 = vunpack.c.l.b16 %v1749
    %v2125 = vunpack.c.h.b16 %v1749
    %v2126 = vunpack.c.l.b16 %v1750
    %v2127 = vunpack.c.h.b16 %v1750
    %v2128 = vunpack.c.l.b16 %v1751
    %v2129 = vunpack.c.h.b16 %v1751
    %v2130 = vunpack.c.l.b16 %v1752
    %v2131 = vunpack.c.h.b16 %v1752
    %v2132 = vunpack.c.l.b16 %v1753
    %v2133 = vunpack.c.h.b16 %v1753
    %v2134 = vunpack.c.l.b16 %v1754
    %v2135 = vunpack.c.h.b16 %v1754
    %v2136 = vunpack.c.l.b16 %v1755
    %v2137 = vunpack.c.h.b16 %v1755
    %v2138 = vunpack.c.l.b16 %v1756
    %v2139 = vunpack.c.h.b16 %v1756
    %v2140 = vunpack.c.l.b16 %v1757
    %v2141 = vunpack.c.h.b16 %v1757
    %v2142 = vunpack.c.l.b16 %v1758
    %v2143 = vunpack.c.h.b16 %v1758
    %v2144 = vunpack.c.l.b16 %v1759
    %v2145 = vunpack.c.h.b16 %v1759
    %v2146 = vunpack.c.l.b16 %v1760
    %v2147 = vunpack.c.h.b16 %v1760
    %v2148 = vunpack.c.l.b16 %v1761
    %v2149 = vunpack.c.h.b16 %v1761
    %v2150 = vunpack.c.l.b16 %v1762
    %v2151 = vunpack.c.h.b16 %v1762
    %v2152 = vpack.c.b16 %v1898, %v1896
    %v2153 = vpack.c.b16 %v1899, %v1897
    %v2154 = vpack.c.b16 %v1902, %v1900
    %v2155 = vpack.c.b16 %v1903, %v1901
    %v2156 = vpack.c.b16 %v1906, %v1904
    %v2157 = vpack.c.b16 %v1907, %v1905
    %v2158 = vpack.c.b16 %v1910, %v1908
    %v2159 = vpack.c.b16 %v1911, %v1909
    %v2160 = vpack.c.b16 %v1914, %v1912
    %v2161 = vpack.c.b16 %v1915, %v1913
    %v2162 = vpack.c.b16 %v1918, %v1916
    %v2163 = vpack.c.b16 %v1919, %v1917
    %v2164 = vpack.c.b16 %v1922, %v1920
    %v2165 = vpack.c.b16 %v1923, %v1921
    %v2166 = vpack.c.b16 %v1926, %v1924
    %v2167 = vpack.c.b16 %v1927, %v1925
    %v2168 = vpack.c.b16 %v1930, %v1928
    %v2169 = vpack.c.b16 %v1931, %v1929
    %v2170 = vpack.c.b16 %v1934, %v1932
    %v2171 = vpack.c.b16 %v1935, %v1933
    %v2172 = vpack.c.b16 %v1938, %v1936
    %v2173 = vpack.c.b16 %v1939, %v1937
    %v2174 = vpack.c.b16 %v1942, %v1940
    %v2175 = vpack.c.b16 %v1943, %v1941
    %v2176 = vpack.c.b16 %v1946, %v1944
    %v2177 = vpack.c.b16 %v1947, %v1945
    %v2178 = vpack.c.b16 %v1950, %v1948
    %v2179 = vpack.c.b16 %v1951, %v1949
    %v2180 = vpack.c.b16 %v1954, %v1952
    %v2181 = vpack.c.b16 %v1955, %v1953
    %v2182 = vpack.c.b16 %v1958, %v1956
    %v2183 = vpack.c.b16 %v1959, %v1957
    %v2184 = vpack.c.b16 %v1962, %v1960
    %v2185 = vpack.c.b16 %v1963, %v1961
    %v2186 = vpack.c.b16 %v1966, %v1964
    %v2187 = vpack.c.b16 %v1967, %v1965
    %v2188 = vpack.c.b16 %v1970, %v1968
    %v2189 = vpack.c.b16 %v1971, %v1969
    %v2190 = vpack.c.b16 %v1974, %v1972
    %v2191 = vpack.c.b16 %v1975, %v1973
    %v2192 = vpack.c.b16 %v1978, %v1976
    %v2193 = vpack.c.b16 %v1979, %v1977
    %v2194 = vpack.c.b16 %v1982, %v1980
    %v2195 = vpack.c.b16 %v1983, %v1981
    %v2196 = vpack.c.b16 %v1986, %v1984
    %v2197 = vpack.c.b16 %v1987, %v1985
    %v2198 = vpack.c.b16 %v1990, %v1988
    %v2199 = vpack.c.b16 %v1991, %v1989
    %v2200 = vpack.c.b16 %v1994, %v1992
    %v2201 = vpack.c.b16 %v1995, %v1993
    %v2202 = vpack.c.b16 %v1998, %v1996
    %v2203 = vpack.c.b16 %v1999, %v1997
    %v2204 = vpack.c.b16 %v2002, %v2000
    %v2205 = vpack.c.b16 %v2003, %v2001
    %v2206 = vpack.c.b16 %v2006, %v2004
    %v2207 = vpack.c.b16 %v2007, %v2005
    %v2208 = vpack.c.b16 %v2010, %v2008
    %v2209 = vpack.c.b16 %v2011, %v2009
    %v2210 = vpack.c.b16 %v2014, %v2012
    %v2211 = vpack.c.b16 %v2015, %v2013
    %v2212 = vpack.c.b16 %v2018, %v2016
    %v2213 = vpack.c.b16 %v2019, %v2017
    %v2214 = vpack.c.b16 %v2022, %v2020
    %v2215 = vpack.c.b16 %v2023, %v2021
    %v2216 = vpack.c.b16 %v2026, %v2024
    %v2217 = vpack.c.b16 %v2027, %v2025
    %v2218 = vpack.c.b16 %v2030, %v2028
    %v2219 = vpack.c.b16 %v2031, %v2029
    %v2220 = vpack.c.b16 %v2034, %v2032
    %v2221 = vpack.c.b16 %v2035, %v2033
    %v2222 = vpack.c.b16 %v2038, %v2036
    %v2223 = vpack.c.b16 %v2039, %v2037
    %v2224 = vpack.c.b16 %v2042, %v2040
    %v2225 = vpack.c.b16 %v2043, %v2041
    %v2226 = vpack.c.b16 %v2046, %v2044
    %v2227 = vpack.c.b16 %v2047, %v2045
    %v2228 = vpack.c.b16 %v2050, %v2048
    %v2229 = vpack.c.b16 %v2051, %v2049
    %v2230 = vpack.c.b16 %v2054, %v2052
    %v2231 = vpack.c.b16 %v2055, %v2053
    %v2232 = vpack.c.b16 %v2058, %v2056
    %v2233 = vpack.c.b16 %v2059, %v2057
    %v2234 = vpack.c.b16 %v2062, %v2060
    %v2235 = vpack.c.b16 %v2063, %v2061
    %v2236 = vpack.c.b16 %v2066, %v2064
    %v2237 = vpack.c.b16 %v2067, %v2065
    %v2238 = vpack.c.b16 %v2070, %v2068
    %v2239 = vpack.c.b16 %v2071, %v2069
    %v2240 = vpack.c.b16 %v2074, %v2072
    %v2241 = vpack.c.b16 %v2075, %v2073
    %v2242 = vpack.c.b16 %v2078, %v2076
    %v2243 = vpack.c.b16 %v2079, %v2077
    %v2244 = vpack.c.b16 %v2082, %v2080
    %v2245 = vpack.c.b16 %v2083, %v2081
    %v2246 = vpack.c.b16 %v2086, %v2084
    %v2247 = vpack.c.b16 %v2087, %v2085
    %v2248 = vpack.c.b16 %v2090, %v2088
    %v2249 = vpack.c.b16 %v2091, %v2089
    %v2250 = vpack.c.b16 %v2094, %v2092
    %v2251 = vpack.c.b16 %v2095, %v2093
    %v2252 = vpack.c.b16 %v2098, %v2096
    %v2253 = vpack.c.b16 %v2099, %v2097
    %v2254 = vpack.c.b16 %v2102, %v2100
    %v2255 = vpack.c.b16 %v2103, %v2101
    %v2256 = vpack.c.b16 %v2106, %v2104
    %v2257 = vpack.c.b16 %v2107, %v2105
    %v2258 = vpack.c.b16 %v2110, %v2108
    %v2259 = vpack.c.b16 %v2111, %v2109
    %v2260 = vpack.c.b16 %v2114, %v2112
    %v2261 = vpack.c.b16 %v2115, %v2113
    %v2262 = vpack.c.b16 %v2118, %v2116
    %v2263 = vpack.c.b16 %v2119, %v2117
    %v2264 = vpack.c.b16 %v2122, %v2120
    %v2265 = vpack.c.b16 %v2123, %v2121
    %v2266 = vpack.c.b16 %v2126, %v2124
    %v2267 = vpack.c.b16 %v2127, %v2125
    %v2268 = vpack.c.b16 %v2130, %v2128
    %v2269 = vpack.c.b16 %v2131, %v2129
    %v2270 = vpack.c.b16 %v2134, %v2132
    %v2271 = vpack.c.b16 %v2135, %v2133
    %v2272 = vpack.c.b16 %v2138, %v2136
    %v2273 = vpack.c.b16 %v2139, %v2137
    %v2274 = vpack.c.b16 %v2142, %v2140
    %v2275 = vpack.c.b16 %v2143, %v2141
    %v2276 = vpack.c.b16 %v2146, %v2144
    %v2277 = vpack.c.b16 %v2147, %v2145
    %v2278 = vpack.c.b16 %v2150, %v2148
    %v2279 = vpack.c.b16 %v2151, %v2149
    %2408 = vmatpush.bf16.msra.mxu0 %v2166
    %2409 = vmatpush.bf16.msra.mxu0 %v2164
    %2410 = vmatpush.bf16.msra.mxu0 %v2162
    %2411 = vmatpush.bf16.msra.mxu0 %v2160
    %2412 = vmatpush.bf16.msra.mxu0 %v2158
    %2413 = vmatpush.bf16.msra.mxu0 %v2156
    %2414 = vmatpush.bf16.msra.mxu0 %v2154
    %2415 = vmatpush.bf16.msra.mxu0 %v2152
    %2416 = vmatmul.bf16.gmra.mxu0 %v1627
    %v2417 = vpop.f32.mrf.mxu0
    %v2418 = vadd.f32 %v1764, %v2417
    %v2419 = vpop.f32.mrf.mxu0
    %2420 = vdwg.mxu0
    %2421 = vmatpush.bf16.msra.mxu0 %v2182
    %2422 = vmatpush.bf16.msra.mxu0 %v2180
    %2423 = vmatpush.bf16.msra.mxu0 %v2178
    %2424 = vmatpush.bf16.msra.mxu0 %v2176
    %2425 = vmatpush.bf16.msra.mxu0 %v2174
    %2426 = vmatpush.bf16.msra.mxu0 %v2172
    %2427 = vmatpush.bf16.msra.mxu0 %v2170
    %2428 = vmatpush.bf16.msra.mxu0 %v2168
    %2429 = vmatmul.bf16.gmra.mxu0 %v1628
    %v2430 = vpop.f32.mrf.mxu0
    %v2431 = vadd.f32 %v2418, %v2430
    %v2432 = vpop.f32.mrf.mxu0
    %2433 = vdwg.mxu0
    %2434 = vmatpush.bf16.msra.mxu0 %v2198
    %2435 = vmatpush.bf16.msra.mxu0 %v2196
    %2436 = vmatpush.bf16.msra.mxu0 %v2194
    %2437 = vmatpush.bf16.msra.mxu0 %v2192
    %2438 = vmatpush.bf16.msra.mxu0 %v2190
    %2439 = vmatpush.bf16.msra.mxu0 %v2188
    %2440 = vmatpush.bf16.msra.mxu0 %v2186
    %2441 = vmatpush.bf16.msra.mxu0 %v2184
    %2442 = vmatmul.bf16.gmra.mxu0 %v1629
    %v2443 = vpop.f32.mrf.mxu0
    %v2444 = vadd.f32 %v2431, %v2443
    %v2445 = vpop.f32.mrf.mxu0
    %2446 = vdwg.mxu0
    %2447 = vmatpush.bf16.msra.mxu0 %v2214
    %2448 = vmatpush.bf16.msra.mxu0 %v2212
    %2449 = vmatpush.bf16.msra.mxu0 %v2210
    %2450 = vmatpush.bf16.msra.mxu0 %v2208
    %2451 = vmatpush.bf16.msra.mxu0 %v2206
    %2452 = vmatpush.bf16.msra.mxu0 %v2204
    %2453 = vmatpush.bf16.msra.mxu0 %v2202
    %2454 = vmatpush.bf16.msra.mxu0 %v2200
    %2455 = vmatmul.bf16.gmra.mxu0 %v1630
    %v2456 = vpop.f32.mrf.mxu0
    %v2457 = vadd.f32 %v2444, %v2456
    %v2458 = vpop.f32.mrf.mxu0
    %2459 = vdwg.mxu0
    %2460 = vmatpush.bf16.msra.mxu0 %v2230
    %2461 = vmatpush.bf16.msra.mxu0 %v2228
    %2462 = vmatpush.bf16.msra.mxu0 %v2226
    %2463 = vmatpush.bf16.msra.mxu0 %v2224
    %2464 = vmatpush.bf16.msra.mxu0 %v2222
    %2465 = vmatpush.bf16.msra.mxu0 %v2220
    %2466 = vmatpush.bf16.msra.mxu0 %v2218
    %2467 = vmatpush.bf16.msra.mxu0 %v2216
    %2468 = vmatmul.bf16.gmra.mxu0 %v1631
    %v2469 = vpop.f32.mrf.mxu0
    %v2470 = vadd.f32 %v2457, %v2469
    %v2471 = vpop.f32.mrf.mxu0
    %2472 = vdwg.mxu0
    %2473 = vmatpush.bf16.msra.mxu0 %v2246
    %2474 = vmatpush.bf16.msra.mxu0 %v2244
    %2475 = vmatpush.bf16.msra.mxu0 %v2242
    %2476 = vmatpush.bf16.msra.mxu0 %v2240
    %2477 = vmatpush.bf16.msra.mxu0 %v2238
    %2478 = vmatpush.bf16.msra.mxu0 %v2236
    %2479 = vmatpush.bf16.msra.mxu0 %v2234
    %2480 = vmatpush.bf16.msra.mxu0 %v2232
    %2481 = vmatmul.bf16.gmra.mxu0 %v1632
    %v2482 = vpop.f32.mrf.mxu0
    %v2483 = vadd.f32 %v2470, %v2482
    %v2484 = vpop.f32.mrf.mxu0
    %2485 = vdwg.mxu0
    %2486 = vmatpush.bf16.msra.mxu0 %v2262
    %2487 = vmatpush.bf16.msra.mxu0 %v2260
    %2488 = vmatpush.bf16.msra.mxu0 %v2258
    %2489 = vmatpush.bf16.msra.mxu0 %v2256
    %2490 = vmatpush.bf16.msra.mxu0 %v2254
    %2491 = vmatpush.bf16.msra.mxu0 %v2252
    %2492 = vmatpush.bf16.msra.mxu0 %v2250
    %2493 = vmatpush.bf16.msra.mxu0 %v2248
    %2494 = vmatmul.bf16.gmra.mxu0 %v1633
    %v2495 = vpop.f32.mrf.mxu0
    %v2496 = vadd.f32 %v2483, %v2495
    %v2497 = vpop.f32.mrf.mxu0
    %2498 = vdwg.mxu0
    %2499 = vmatpush.bf16.msra.mxu0 %v2278
    %2500 = vmatpush.bf16.msra.mxu0 %v2276
    %2501 = vmatpush.bf16.msra.mxu0 %v2274
    %2502 = vmatpush.bf16.msra.mxu0 %v2272
    %2503 = vmatpush.bf16.msra.mxu0 %v2270
    %2504 = vmatpush.bf16.msra.mxu0 %v2268
    %2505 = vmatpush.bf16.msra.mxu0 %v2266
    %2506 = vmatpush.bf16.msra.mxu0 %v2264
    %2507 = vmatmul.bf16.gmra.mxu0 %v1634
    %v2508 = vpop.f32.mrf.mxu0
    %v2509 = vadd.f32 %v2496, %v2508
    %v2510 = vpop.f32.mrf.mxu0
    %2511 = vdwg.mxu0
    %2512 = vmatpush.bf16.msra.mxu0 %v2167
    %2513 = vmatpush.bf16.msra.mxu0 %v2165
    %2514 = vmatpush.bf16.msra.mxu0 %v2163
    %2515 = vmatpush.bf16.msra.mxu0 %v2161
    %2516 = vmatpush.bf16.msra.mxu0 %v2159
    %2517 = vmatpush.bf16.msra.mxu0 %v2157
    %2518 = vmatpush.bf16.msra.mxu0 %v2155
    %2519 = vmatpush.bf16.msra.mxu0 %v2153
    %2520 = vmatmul.bf16.gmra.mxu0 %v1627
    %v2521 = vpop.f32.mrf.mxu0
    %v2522 = vadd.f32 %v1765, %v2521
    %v2523 = vpop.f32.mrf.mxu0
    %2524 = vdwg.mxu0
    %2525 = vmatpush.bf16.msra.mxu0 %v2183
    %2526 = vmatpush.bf16.msra.mxu0 %v2181
    %2527 = vmatpush.bf16.msra.mxu0 %v2179
    %2528 = vmatpush.bf16.msra.mxu0 %v2177
    %2529 = vmatpush.bf16.msra.mxu0 %v2175
    %2530 = vmatpush.bf16.msra.mxu0 %v2173
    %2531 = vmatpush.bf16.msra.mxu0 %v2171
    %2532 = vmatpush.bf16.msra.mxu0 %v2169
    %2533 = vmatmul.bf16.gmra.mxu0 %v1628
    %v2534 = vpop.f32.mrf.mxu0
    %v2535 = vadd.f32 %v2522, %v2534
    %v2536 = vpop.f32.mrf.mxu0
    %2537 = vdwg.mxu0
    %2538 = vmatpush.bf16.msra.mxu0 %v2199
    %2539 = vmatpush.bf16.msra.mxu0 %v2197
    %2540 = vmatpush.bf16.msra.mxu0 %v2195
    %2541 = vmatpush.bf16.msra.mxu0 %v2193
    %2542 = vmatpush.bf16.msra.mxu0 %v2191
    %2543 = vmatpush.bf16.msra.mxu0 %v2189
    %2544 = vmatpush.bf16.msra.mxu0 %v2187
    %2545 = vmatpush.bf16.msra.mxu0 %v2185
    %2546 = vmatmul.bf16.gmra.mxu0 %v1629
    %v2547 = vpop.f32.mrf.mxu0
    %v2548 = vadd.f32 %v2535, %v2547
    %v2549 = vpop.f32.mrf.mxu0
    %2550 = vdwg.mxu0
    %2551 = vmatpush.bf16.msra.mxu0 %v2215
    %2552 = vmatpush.bf16.msra.mxu0 %v2213
    %2553 = vmatpush.bf16.msra.mxu0 %v2211
    %2554 = vmatpush.bf16.msra.mxu0 %v2209
    %2555 = vmatpush.bf16.msra.mxu0 %v2207
    %2556 = vmatpush.bf16.msra.mxu0 %v2205
    %2557 = vmatpush.bf16.msra.mxu0 %v2203
    %2558 = vmatpush.bf16.msra.mxu0 %v2201
    %2559 = vmatmul.bf16.gmra.mxu0 %v1630
    %v2560 = vpop.f32.mrf.mxu0
    %v2561 = vadd.f32 %v2548, %v2560
    %v2562 = vpop.f32.mrf.mxu0
    %2563 = vdwg.mxu0
    %2564 = vmatpush.bf16.msra.mxu0 %v2231
    %2565 = vmatpush.bf16.msra.mxu0 %v2229
    %2566 = vmatpush.bf16.msra.mxu0 %v2227
    %2567 = vmatpush.bf16.msra.mxu0 %v2225
    %2568 = vmatpush.bf16.msra.mxu0 %v2223
    %2569 = vmatpush.bf16.msra.mxu0 %v2221
    %2570 = vmatpush.bf16.msra.mxu0 %v2219
    %2571 = vmatpush.bf16.msra.mxu0 %v2217
    %2572 = vmatmul.bf16.gmra.mxu0 %v1631
    %v2573 = vpop.f32.mrf.mxu0
    %v2574 = vadd.f32 %v2561, %v2573
    %v2575 = vpop.f32.mrf.mxu0
    %2576 = vdwg.mxu0
    %2577 = vmatpush.bf16.msra.mxu0 %v2247
    %2578 = vmatpush.bf16.msra.mxu0 %v2245
    %2579 = vmatpush.bf16.msra.mxu0 %v2243
    %2580 = vmatpush.bf16.msra.mxu0 %v2241
    %2581 = vmatpush.bf16.msra.mxu0 %v2239
    %2582 = vmatpush.bf16.msra.mxu0 %v2237
    %2583 = vmatpush.bf16.msra.mxu0 %v2235
    %2584 = vmatpush.bf16.msra.mxu0 %v2233
    %2585 = vmatmul.bf16.gmra.mxu0 %v1632
    %v2586 = vpop.f32.mrf.mxu0
    %v2587 = vadd.f32 %v2574, %v2586
    %v2588 = vpop.f32.mrf.mxu0
    %2589 = vdwg.mxu0
    %2590 = vmatpush.bf16.msra.mxu0 %v2263
    %2591 = vmatpush.bf16.msra.mxu0 %v2261
    %2592 = vmatpush.bf16.msra.mxu0 %v2259
    %2593 = vmatpush.bf16.msra.mxu0 %v2257
    %2594 = vmatpush.bf16.msra.mxu0 %v2255
    %2595 = vmatpush.bf16.msra.mxu0 %v2253
    %2596 = vmatpush.bf16.msra.mxu0 %v2251
    %2597 = vmatpush.bf16.msra.mxu0 %v2249
    %2598 = vmatmul.bf16.gmra.mxu0 %v1633
    %v2599 = vpop.f32.mrf.mxu0
    %v2600 = vadd.f32 %v2587, %v2599
    %v2601 = vpop.f32.mrf.mxu0
    %2602 = vdwg.mxu0
    %2603 = vmatpush.bf16.msra.mxu0 %v2279
    %2604 = vmatpush.bf16.msra.mxu0 %v2277
    %2605 = vmatpush.bf16.msra.mxu0 %v2275
    %2606 = vmatpush.bf16.msra.mxu0 %v2273
    %2607 = vmatpush.bf16.msra.mxu0 %v2271
    %2608 = vmatpush.bf16.msra.mxu0 %v2269
    %2609 = vmatpush.bf16.msra.mxu0 %v2267
    %2610 = vmatpush.bf16.msra.mxu0 %v2265
    %2611 = vmatmul.bf16.gmra.mxu0 %v1634
    %v2612 = vpop.f32.mrf.mxu0
    %v2613 = vadd.f32 %v2600, %v2612
    %v2614 = vpop.f32.mrf.mxu0
    %2615 = vdwg.mxu0
    %v2616 = vadd.f32 %v622, %v2509
    %v2617 = vadd.f32 %v623, %v2613
    %v2618 = vadd.f32 %v2616, %v2617
    %2619 = vadd.xlane.f32.xlu0 %v2618
    %v2620 = vpop.xlane.xlu0 %2619
    %v2621 = vmul.f32 %v2620, %v587
    %v2622 = vsub.f32 %v2616, %v2621
    %v2623 = vsub.f32 %v2617, %v2621
    %v2624 = vmul.f32 %v2622, %v2622
    %v2625 = vmul.f32 %v2623, %v2623
    %v2626 = vadd.f32 %v2624, %v2625
    %2627 = vadd.xlane.f32.xlu0 %v2626
    %v2628 = vpop.xlane.xlu0 %2627
    %v2629 = vmul.f32 %v2628, %v587
    %v2630 = vadd.f32 %v2629, 1e-05
    %v2631 = vrsqrt.pop %v2630
    %v2632 = vmul.f32 %v2631, %v2630
    %v2633 = vmul.f32 %v2632, %v2631
    %v2634 = vmul.f32 0.5, %v2633
    %v2635 = vsub.f32 1.5, %v2634
    %v2636 = vmul.f32 %v2631, %v2635
    %vm2637 = vweird.f32 %v2630
    %vm2638 = vweird.f32 %v2631
    %vm2639 = vmor %vm2637, %vm2638
    %v2640 = vsel %vm2639, %v2631, %v2636
    %v2641 = vmul.f32 %v2622, %v2640
    %v2642 = vmul.f32 %v2623, %v2640
    %v2644 = vperm.slane %v323, 0
    %v2645 = vperm.slane %v323, 1
    %v2648 = vmul.f32 %v2641, %v2644
    %v2649 = vmul.f32 %v2642, %v2645
    %v2651 = vperm.slane %v324, 0
    %v2652 = vperm.slane %v324, 1
    %v2655 = vadd.f32 %v2648, %v2651
    %v2656 = vadd.f32 %v2649, %v2652
    %v2657 = vld [vmem:[#allocation17 + $0x16] sm:$0x3]
    %v2658 = vld [vmem:[#allocation17 + $0x18] sm:$0x3]
    %v2659 = vld [vmem:[#allocation17 + $0x1a] sm:$0x3]
    %v2660 = vld [vmem:[#allocation17 + $0x1c] sm:$0xff]
    %v2661 = vld [vmem:[#allocation17 + $0x24] sm:$0x3]
    %v2662 = vld [vmem:[#allocation17 + $0x26] sm:$0x3]
    %v2663 = vld [vmem:[#allocation17 + $0x28] sm:$0x3]
    %v2664 = vpack.c.bf16 %v2655, %v2655
    %v2665 = vpack.c.bf16 %v2656, %v2656
    %v2666 = vld [vmem:[#allocation11] sm:$0xff]
    %v2667 = vld [vmem:[#allocation11 + $0x8] sm:$0xff]
    %v2668 = vld [vmem:[#allocation11 + $0x10] sm:$0xff]
    %v2669 = vld [vmem:[#allocation11 + $0x18] sm:$0xff]
    %v2670 = vld [vmem:[#allocation11 + $0x20] sm:$0xff]
    %v2671 = vld [vmem:[#allocation11 + $0x28] sm:$0xff]
    %v2672 = vld [vmem:[#allocation11 + $0x30] sm:$0xff]
    %v2673 = vld [vmem:[#allocation11 + $0x38] sm:$0xff]
    %v2674 = vld [vmem:[#allocation11 + $0x40] sm:$0xff]
    %v2675 = vld [vmem:[#allocation11 + $0x48] sm:$0xff]
    %v2676 = vld [vmem:[#allocation11 + $0x50] sm:$0xff]
    %v2677 = vld [vmem:[#allocation11 + $0x58] sm:$0xff]
    %v2678 = vld [vmem:[#allocation11 + $0x60] sm:$0xff]
    %v2679 = vld [vmem:[#allocation11 + $0x68] sm:$0xff]
    %v2680 = vld [vmem:[#allocation11 + $0x70] sm:$0xff]
    %v2681 = vld [vmem:[#allocation11 + $0x78] sm:$0xff]
    %v2682 = vld [vmem:[#allocation11 + $0x80] sm:$0xff]
    %v2683 = vld [vmem:[#allocation11 + $0x88] sm:$0xff]
    %v2684 = vld [vmem:[#allocation11 + $0x90] sm:$0xff]
    %v2685 = vld [vmem:[#allocation11 + $0x98] sm:$0xff]
    %v2686 = vld [vmem:[#allocation11 + $0xa0] sm:$0xff]
    %v2687 = vld [vmem:[#allocation11 + $0xa8] sm:$0xff]
    %v2688 = vld [vmem:[#allocation11 + $0xb0] sm:$0xff]
    %v2689 = vld [vmem:[#allocation11 + $0xb8] sm:$0xff]
    %v2690 = vld [vmem:[#allocation11 + $0xc0] sm:$0xff]
    %v2691 = vld [vmem:[#allocation11 + $0xc8] sm:$0xff]
    %v2692 = vld [vmem:[#allocation11 + $0xd0] sm:$0xff]
    %v2693 = vld [vmem:[#allocation11 + $0xd8] sm:$0xff]
    %v2694 = vld [vmem:[#allocation11 + $0xe0] sm:$0xff]
    %v2695 = vld [vmem:[#allocation11 + $0xe8] sm:$0xff]
    %v2696 = vld [vmem:[#allocation11 + $0xf0] sm:$0xff]
    %v2697 = vld [vmem:[#allocation11 + $0xf8] sm:$0xff]
    %v2699 = vperm.slane %v2657, 0
    %v2700 = vperm.slane %v2657, 1
    %v2735 = vunpack.c.l.b16 %v2666
    %v2736 = vunpack.c.h.b16 %v2666
    %v2737 = vunpack.c.l.b16 %v2667
    %v2738 = vunpack.c.h.b16 %v2667
    %v2739 = vunpack.c.l.b16 %v2668
    %v2740 = vunpack.c.h.b16 %v2668
    %v2741 = vunpack.c.l.b16 %v2669
    %v2742 = vunpack.c.h.b16 %v2669
    %v2743 = vunpack.c.l.b16 %v2670
    %v2744 = vunpack.c.h.b16 %v2670
    %v2745 = vunpack.c.l.b16 %v2671
    %v2746 = vunpack.c.h.b16 %v2671
    %v2747 = vunpack.c.l.b16 %v2672
    %v2748 = vunpack.c.h.b16 %v2672
    %v2749 = vunpack.c.l.b16 %v2673
    %v2750 = vunpack.c.h.b16 %v2673
    %v2751 = vunpack.c.l.b16 %v2674
    %v2752 = vunpack.c.h.b16 %v2674
    %v2753 = vunpack.c.l.b16 %v2675
    %v2754 = vunpack.c.h.b16 %v2675
    %v2755 = vunpack.c.l.b16 %v2676
    %v2756 = vunpack.c.h.b16 %v2676
    %v2757 = vunpack.c.l.b16 %v2677
    %v2758 = vunpack.c.h.b16 %v2677
    %v2759 = vunpack.c.l.b16 %v2678
    %v2760 = vunpack.c.h.b16 %v2678
    %v2761 = vunpack.c.l.b16 %v2679
    %v2762 = vunpack.c.h.b16 %v2679
    %v2763 = vunpack.c.l.b16 %v2680
    %v2764 = vunpack.c.h.b16 %v2680
    %v2765 = vunpack.c.l.b16 %v2681
    %v2766 = vunpack.c.h.b16 %v2681
    %v2767 = vunpack.c.l.b16 %v2682
    %v2768 = vunpack.c.h.b16 %v2682
    %v2769 = vunpack.c.l.b16 %v2683
    %v2770 = vunpack.c.h.b16 %v2683
    %v2771 = vunpack.c.l.b16 %v2684
    %v2772 = vunpack.c.h.b16 %v2684
    %v2773 = vunpack.c.l.b16 %v2685
    %v2774 = vunpack.c.h.b16 %v2685
    %v2775 = vunpack.c.l.b16 %v2686
    %v2776 = vunpack.c.h.b16 %v2686
    %v2777 = vunpack.c.l.b16 %v2687
    %v2778 = vunpack.c.h.b16 %v2687
    %v2779 = vunpack.c.l.b16 %v2688
    %v2780 = vunpack.c.h.b16 %v2688
    %v2781 = vunpack.c.l.b16 %v2689
    %v2782 = vunpack.c.h.b16 %v2689
    %v2783 = vunpack.c.l.b16 %v2690
    %v2784 = vunpack.c.h.b16 %v2690
    %v2785 = vunpack.c.l.b16 %v2691
    %v2786 = vunpack.c.h.b16 %v2691
    %v2787 = vunpack.c.l.b16 %v2692
    %v2788 = vunpack.c.h.b16 %v2692
    %v2789 = vunpack.c.l.b16 %v2693
    %v2790 = vunpack.c.h.b16 %v2693
    %v2791 = vunpack.c.l.b16 %v2694
    %v2792 = vunpack.c.h.b16 %v2694
    %v2793 = vunpack.c.l.b16 %v2695
    %v2794 = vunpack.c.h.b16 %v2695
    %v2795 = vunpack.c.l.b16 %v2696
    %v2796 = vunpack.c.h.b16 %v2696
    %v2797 = vunpack.c.l.b16 %v2697
    %v2798 = vunpack.c.h.b16 %v2697
    %v2799 = vpack.c.b16 %v2737, %v2735
    %v2800 = vpack.c.b16 %v2738, %v2736
    %v2801 = vpack.c.b16 %v2741, %v2739
    %v2802 = vpack.c.b16 %v2742, %v2740
    %v2803 = vpack.c.b16 %v2745, %v2743
    %v2804 = vpack.c.b16 %v2746, %v2744
    %v2805 = vpack.c.b16 %v2749, %v2747
    %v2806 = vpack.c.b16 %v2750, %v2748
    %v2807 = vpack.c.b16 %v2753, %v2751
    %v2808 = vpack.c.b16 %v2754, %v2752
    %v2809 = vpack.c.b16 %v2757, %v2755
    %v2810 = vpack.c.b16 %v2758, %v2756
    %v2811 = vpack.c.b16 %v2761, %v2759
    %v2812 = vpack.c.b16 %v2762, %v2760
    %v2813 = vpack.c.b16 %v2765, %v2763
    %v2814 = vpack.c.b16 %v2766, %v2764
    %v2815 = vpack.c.b16 %v2769, %v2767
    %v2816 = vpack.c.b16 %v2770, %v2768
    %v2817 = vpack.c.b16 %v2773, %v2771
    %v2818 = vpack.c.b16 %v2774, %v2772
    %v2819 = vpack.c.b16 %v2777, %v2775
    %v2820 = vpack.c.b16 %v2778, %v2776
    %v2821 = vpack.c.b16 %v2781, %v2779
    %v2822 = vpack.c.b16 %v2782, %v2780
    %v2823 = vpack.c.b16 %v2785, %v2783
    %v2824 = vpack.c.b16 %v2786, %v2784
    %v2825 = vpack.c.b16 %v2789, %v2787
    %v2826 = vpack.c.b16 %v2790, %v2788
    %v2827 = vpack.c.b16 %v2793, %v2791
    %v2828 = vpack.c.b16 %v2794, %v2792
    %v2829 = vpack.c.b16 %v2797, %v2795
    %v2830 = vpack.c.b16 %v2798, %v2796
    %2863 = vmatpush.bf16.msra.mxu0 %v2813
    %2864 = vmatpush.bf16.msra.mxu0 %v2811
    %2865 = vmatpush.bf16.msra.mxu0 %v2809
    %2866 = vmatpush.bf16.msra.mxu0 %v2807
    %2867 = vmatpush.bf16.msra.mxu0 %v2805
    %2868 = vmatpush.bf16.msra.mxu0 %v2803
    %2869 = vmatpush.bf16.msra.mxu0 %v2801
    %2870 = vmatpush.bf16.msra.mxu0 %v2799
    %2871 = vmatmul.bf16.gmra.mxu0 %v2664
    %v2872 = vpop.f32.mrf.mxu0
    %v2873 = vadd.f32 %v2699, %v2872
    %v2874 = vpop.f32.mrf.mxu0
    %2875 = vdwg.mxu0
    %2876 = vmatpush.bf16.msra.mxu0 %v2829
    %2877 = vmatpush.bf16.msra.mxu0 %v2827
    %2878 = vmatpush.bf16.msra.mxu0 %v2825
    %2879 = vmatpush.bf16.msra.mxu0 %v2823
    %2880 = vmatpush.bf16.msra.mxu0 %v2821
    %2881 = vmatpush.bf16.msra.mxu0 %v2819
    %2882 = vmatpush.bf16.msra.mxu0 %v2817
    %2883 = vmatpush.bf16.msra.mxu0 %v2815
    %2884 = vmatmul.bf16.gmra.mxu0 %v2665
    %v2885 = vpop.f32.mrf.mxu0
    %v2886 = vadd.f32 %v2873, %v2885
    %v2887 = vpop.f32.mrf.mxu0
    %2888 = vdwg.mxu0
    %2889 = vmatpush.bf16.msra.mxu0 %v2814
    %2890 = vmatpush.bf16.msra.mxu0 %v2812
    %2891 = vmatpush.bf16.msra.mxu0 %v2810
    %2892 = vmatpush.bf16.msra.mxu0 %v2808
    %2893 = vmatpush.bf16.msra.mxu0 %v2806
    %2894 = vmatpush.bf16.msra.mxu0 %v2804
    %2895 = vmatpush.bf16.msra.mxu0 %v2802
    %2896 = vmatpush.bf16.msra.mxu0 %v2800
    %2897 = vmatmul.bf16.gmra.mxu0 %v2664
    %v2898 = vpop.f32.mrf.mxu0
    %v2899 = vadd.f32 %v2700, %v2898
    %v2900 = vpop.f32.mrf.mxu0
    %2901 = vdwg.mxu0
    %2902 = vmatpush.bf16.msra.mxu0 %v2830
    %2903 = vmatpush.bf16.msra.mxu0 %v2828
    %2904 = vmatpush.bf16.msra.mxu0 %v2826
    %2905 = vmatpush.bf16.msra.mxu0 %v2824
    %2906 = vmatpush.bf16.msra.mxu0 %v2822
    %2907 = vmatpush.bf16.msra.mxu0 %v2820
    %2908 = vmatpush.bf16.msra.mxu0 %v2818
    %2909 = vmatpush.bf16.msra.mxu0 %v2816
    %2910 = vmatmul.bf16.gmra.mxu0 %v2665
    %v2911 = vpop.f32.mrf.mxu0
    %v2912 = vadd.f32 %v2899, %v2911
    %v2913 = vpop.f32.mrf.mxu0
    %2914 = vdwg.mxu0
    %v2915 = vadd.f32 %v2655, %v2886
    %v2916 = vadd.f32 %v2656, %v2912
    %v2917 = vadd.f32 %v2915, %v2916
    %2918 = vadd.xlane.f32.xlu0 %v2917
    %v2919 = vpop.xlane.xlu0 %2918
    %v2920 = vmul.f32 %v2919, %v587
    %v2921 = vsub.f32 %v2915, %v2920
    %v2922 = vsub.f32 %v2916, %v2920
    %v2923 = vmul.f32 %v2921, %v2921
    %v2924 = vmul.f32 %v2922, %v2922
    %v2925 = vadd.f32 %v2923, %v2924
    %2926 = vadd.xlane.f32.xlu0 %v2925
    %v2927 = vpop.xlane.xlu0 %2926
    %v2928 = vmul.f32 %v2927, %v587
    %v2929 = vadd.f32 %v2928, 1e-05
    %v2930 = vrsqrt.pop %v2929
    %v2931 = vmul.f32 %v2930, %v2929
    %v2932 = vmul.f32 %v2931, %v2930
    %v2933 = vmul.f32 0.5, %v2932
    %v2934 = vsub.f32 1.5, %v2933
    %v2935 = vmul.f32 %v2930, %v2934
    %vm2936 = vweird.f32 %v2929
    %vm2937 = vweird.f32 %v2930
    %vm2938 = vmor %vm2936, %vm2937
    %v2939 = vsel %vm2938, %v2930, %v2935
    %v2940 = vmul.f32 %v2921, %v2939
    %v2941 = vmul.f32 %v2922, %v2939
    %v2943 = vperm.slane %v2658, 0
    %v2944 = vperm.slane %v2658, 1
    %v2947 = vmul.f32 %v2940, %v2943
    %v2948 = vmul.f32 %v2941, %v2944
    %v2950 = vperm.slane %v2659, 0
    %v2951 = vperm.slane %v2659, 1
    %v2954 = vadd.f32 %v2947, %v2950
    %v2955 = vadd.f32 %v2948, %v2951
    %v2956 = vpack.c.bf16 %v2954, %v2954
    %v2957 = vpack.c.bf16 %v2955, %v2955
    %v2958 = vld [vmem:[#allocation13] sm:$0xff]
    %v2959 = vld [vmem:[#allocation13 + $0x8] sm:$0xff]
    %v2960 = vld [vmem:[#allocation13 + $0x10] sm:$0xff]
    %v2961 = vld [vmem:[#allocation13 + $0x18] sm:$0xff]
    %v2962 = vld [vmem:[#allocation13 + $0x20] sm:$0xff]
    %v2963 = vld [vmem:[#allocation13 + $0x28] sm:$0xff]
    %v2964 = vld [vmem:[#allocation13 + $0x30] sm:$0xff]
    %v2965 = vld [vmem:[#allocation13 + $0x38] sm:$0xff]
    %v2966 = vld [vmem:[#allocation13 + $0x40] sm:$0xff]
    %v2967 = vld [vmem:[#allocation13 + $0x48] sm:$0xff]
    %v2968 = vld [vmem:[#allocation13 + $0x50] sm:$0xff]
    %v2969 = vld [vmem:[#allocation13 + $0x58] sm:$0xff]
    %v2970 = vld [vmem:[#allocation13 + $0x60] sm:$0xff]
    %v2971 = vld [vmem:[#allocation13 + $0x68] sm:$0xff]
    %v2972 = vld [vmem:[#allocation13 + $0x70] sm:$0xff]
    %v2973 = vld [vmem:[#allocation13 + $0x78] sm:$0xff]
    %v2974 = vld [vmem:[#allocation13 + $0x80] sm:$0xff]
    %v2975 = vld [vmem:[#allocation13 + $0x88] sm:$0xff]
    %v2976 = vld [vmem:[#allocation13 + $0x90] sm:$0xff]
    %v2977 = vld [vmem:[#allocation13 + $0x98] sm:$0xff]
    %v2978 = vld [vmem:[#allocation13 + $0xa0] sm:$0xff]
    %v2979 = vld [vmem:[#allocation13 + $0xa8] sm:$0xff]
    %v2980 = vld [vmem:[#allocation13 + $0xb0] sm:$0xff]
    %v2981 = vld [vmem:[#allocation13 + $0xb8] sm:$0xff]
    %v2982 = vld [vmem:[#allocation13 + $0xc0] sm:$0xff]
    %v2983 = vld [vmem:[#allocation13 + $0xc8] sm:$0xff]
    %v2984 = vld [vmem:[#allocation13 + $0xd0] sm:$0xff]
    %v2985 = vld [vmem:[#allocation13 + $0xd8] sm:$0xff]
    %v2986 = vld [vmem:[#allocation13 + $0xe0] sm:$0xff]
    %v2987 = vld [vmem:[#allocation13 + $0xe8] sm:$0xff]
    %v2988 = vld [vmem:[#allocation13 + $0xf0] sm:$0xff]
    %v2989 = vld [vmem:[#allocation13 + $0xf8] sm:$0xff]
    %v2990 = vld [vmem:[#allocation13 + $0x100] sm:$0xff]
    %v2991 = vld [vmem:[#allocation13 + $0x108] sm:$0xff]
    %v2992 = vld [vmem:[#allocation13 + $0x110] sm:$0xff]
    %v2993 = vld [vmem:[#allocation13 + $0x118] sm:$0xff]
    %v2994 = vld [vmem:[#allocation13 + $0x120] sm:$0xff]
    %v2995 = vld [vmem:[#allocation13 + $0x128] sm:$0xff]
    %v2996 = vld [vmem:[#allocation13 + $0x130] sm:$0xff]
    %v2997 = vld [vmem:[#allocation13 + $0x138] sm:$0xff]
    %v2998 = vld [vmem:[#allocation13 + $0x140] sm:$0xff]
    %v2999 = vld [vmem:[#allocation13 + $0x148] sm:$0xff]
    %v3000 = vld [vmem:[#allocation13 + $0x150] sm:$0xff]
    %v3001 = vld [vmem:[#allocation13 + $0x158] sm:$0xff]
    %v3002 = vld [vmem:[#allocation13 + $0x160] sm:$0xff]
    %v3003 = vld [vmem:[#allocation13 + $0x168] sm:$0xff]
    %v3004 = vld [vmem:[#allocation13 + $0x170] sm:$0xff]
    %v3005 = vld [vmem:[#allocation13 + $0x178] sm:$0xff]
    %v3006 = vld [vmem:[#allocation13 + $0x180] sm:$0xff]
    %v3007 = vld [vmem:[#allocation13 + $0x188] sm:$0xff]
    %v3008 = vld [vmem:[#allocation13 + $0x190] sm:$0xff]
    %v3009 = vld [vmem:[#allocation13 + $0x198] sm:$0xff]
    %v3010 = vld [vmem:[#allocation13 + $0x1a0] sm:$0xff]
    %v3011 = vld [vmem:[#allocation13 + $0x1a8] sm:$0xff]
    %v3012 = vld [vmem:[#allocation13 + $0x1b0] sm:$0xff]
    %v3013 = vld [vmem:[#allocation13 + $0x1b8] sm:$0xff]
    %v3014 = vld [vmem:[#allocation13 + $0x1c0] sm:$0xff]
    %v3015 = vld [vmem:[#allocation13 + $0x1c8] sm:$0xff]
    %v3016 = vld [vmem:[#allocation13 + $0x1d0] sm:$0xff]
    %v3017 = vld [vmem:[#allocation13 + $0x1d8] sm:$0xff]
    %v3018 = vld [vmem:[#allocation13 + $0x1e0] sm:$0xff]
    %v3019 = vld [vmem:[#allocation13 + $0x1e8] sm:$0xff]
    %v3020 = vld [vmem:[#allocation13 + $0x1f0] sm:$0xff]
    %v3021 = vld [vmem:[#allocation13 + $0x1f8] sm:$0xff]
    %v3022 = vld [vmem:[#allocation13 + $0x200] sm:$0xff]
    %v3023 = vld [vmem:[#allocation13 + $0x208] sm:$0xff]
    %v3024 = vld [vmem:[#allocation13 + $0x210] sm:$0xff]
    %v3025 = vld [vmem:[#allocation13 + $0x218] sm:$0xff]
    %v3026 = vld [vmem:[#allocation13 + $0x220] sm:$0xff]
    %v3027 = vld [vmem:[#allocation13 + $0x228] sm:$0xff]
    %v3028 = vld [vmem:[#allocation13 + $0x230] sm:$0xff]
    %v3029 = vld [vmem:[#allocation13 + $0x238] sm:$0xff]
    %v3030 = vld [vmem:[#allocation13 + $0x240] sm:$0xff]
    %v3031 = vld [vmem:[#allocation13 + $0x248] sm:$0xff]
    %v3032 = vld [vmem:[#allocation13 + $0x250] sm:$0xff]
    %v3033 = vld [vmem:[#allocation13 + $0x258] sm:$0xff]
    %v3034 = vld [vmem:[#allocation13 + $0x260] sm:$0xff]
    %v3035 = vld [vmem:[#allocation13 + $0x268] sm:$0xff]
    %v3036 = vld [vmem:[#allocation13 + $0x270] sm:$0xff]
    %v3037 = vld [vmem:[#allocation13 + $0x278] sm:$0xff]
    %v3038 = vld [vmem:[#allocation13 + $0x280] sm:$0xff]
    %v3039 = vld [vmem:[#allocation13 + $0x288] sm:$0xff]
    %v3040 = vld [vmem:[#allocation13 + $0x290] sm:$0xff]
    %v3041 = vld [vmem:[#allocation13 + $0x298] sm:$0xff]
    %v3042 = vld [vmem:[#allocation13 + $0x2a0] sm:$0xff]
    %v3043 = vld [vmem:[#allocation13 + $0x2a8] sm:$0xff]
    %v3044 = vld [vmem:[#allocation13 + $0x2b0] sm:$0xff]
    %v3045 = vld [vmem:[#allocation13 + $0x2b8] sm:$0xff]
    %v3046 = vld [vmem:[#allocation13 + $0x2c0] sm:$0xff]
    %v3047 = vld [vmem:[#allocation13 + $0x2c8] sm:$0xff]
    %v3048 = vld [vmem:[#allocation13 + $0x2d0] sm:$0xff]
    %v3049 = vld [vmem:[#allocation13 + $0x2d8] sm:$0xff]
    %v3050 = vld [vmem:[#allocation13 + $0x2e0] sm:$0xff]
    %v3051 = vld [vmem:[#allocation13 + $0x2e8] sm:$0xff]
    %v3052 = vld [vmem:[#allocation13 + $0x2f0] sm:$0xff]
    %v3053 = vld [vmem:[#allocation13 + $0x2f8] sm:$0xff]
    %v3054 = vld [vmem:[#allocation13 + $0x300] sm:$0xff]
    %v3055 = vld [vmem:[#allocation13 + $0x308] sm:$0xff]
    %v3056 = vld [vmem:[#allocation13 + $0x310] sm:$0xff]
    %v3057 = vld [vmem:[#allocation13 + $0x318] sm:$0xff]
    %v3058 = vld [vmem:[#allocation13 + $0x320] sm:$0xff]
    %v3059 = vld [vmem:[#allocation13 + $0x328] sm:$0xff]
    %v3060 = vld [vmem:[#allocation13 + $0x330] sm:$0xff]
    %v3061 = vld [vmem:[#allocation13 + $0x338] sm:$0xff]
    %v3062 = vld [vmem:[#allocation13 + $0x340] sm:$0xff]
    %v3063 = vld [vmem:[#allocation13 + $0x348] sm:$0xff]
    %v3064 = vld [vmem:[#allocation13 + $0x350] sm:$0xff]
    %v3065 = vld [vmem:[#allocation13 + $0x358] sm:$0xff]
    %v3066 = vld [vmem:[#allocation13 + $0x360] sm:$0xff]
    %v3067 = vld [vmem:[#allocation13 + $0x368] sm:$0xff]
    %v3068 = vld [vmem:[#allocation13 + $0x370] sm:$0xff]
    %v3069 = vld [vmem:[#allocation13 + $0x378] sm:$0xff]
    %v3070 = vld [vmem:[#allocation13 + $0x380] sm:$0xff]
    %v3071 = vld [vmem:[#allocation13 + $0x388] sm:$0xff]
    %v3072 = vld [vmem:[#allocation13 + $0x390] sm:$0xff]
    %v3073 = vld [vmem:[#allocation13 + $0x398] sm:$0xff]
    %v3074 = vld [vmem:[#allocation13 + $0x3a0] sm:$0xff]
    %v3075 = vld [vmem:[#allocation13 + $0x3a8] sm:$0xff]
    %v3076 = vld [vmem:[#allocation13 + $0x3b0] sm:$0xff]
    %v3077 = vld [vmem:[#allocation13 + $0x3b8] sm:$0xff]
    %v3078 = vld [vmem:[#allocation13 + $0x3c0] sm:$0xff]
    %v3079 = vld [vmem:[#allocation13 + $0x3c8] sm:$0xff]
    %v3080 = vld [vmem:[#allocation13 + $0x3d0] sm:$0xff]
    %v3081 = vld [vmem:[#allocation13 + $0x3d8] sm:$0xff]
    %v3082 = vld [vmem:[#allocation13 + $0x3e0] sm:$0xff]
    %v3083 = vld [vmem:[#allocation13 + $0x3e8] sm:$0xff]
    %v3084 = vld [vmem:[#allocation13 + $0x3f0] sm:$0xff]
    %v3085 = vld [vmem:[#allocation13 + $0x3f8] sm:$0xff]
    %v3087 = vperm.slane %v2660, 0
    %v3088 = vperm.slane %v2660, 1
    %v3089 = vperm.slane %v2660, 2
    %v3090 = vperm.slane %v2660, 3
    %v3091 = vperm.slane %v2660, 4
    %v3092 = vperm.slane %v2660, 5
    %v3093 = vperm.slane %v2660, 6
    %v3094 = vperm.slane %v2660, 7
    %v3231 = vunpack.c.l.b16 %v2958
    %v3232 = vunpack.c.h.b16 %v2958
    %v3233 = vunpack.c.l.b16 %v2959
    %v3234 = vunpack.c.h.b16 %v2959
    %v3235 = vunpack.c.l.b16 %v2960
    %v3236 = vunpack.c.h.b16 %v2960
    %v3237 = vunpack.c.l.b16 %v2961
    %v3238 = vunpack.c.h.b16 %v2961
    %v3239 = vunpack.c.l.b16 %v2962
    %v3240 = vunpack.c.h.b16 %v2962
    %v3241 = vunpack.c.l.b16 %v2963
    %v3242 = vunpack.c.h.b16 %v2963
    %v3243 = vunpack.c.l.b16 %v2964
    %v3244 = vunpack.c.h.b16 %v2964
    %v3245 = vunpack.c.l.b16 %v2965
    %v3246 = vunpack.c.h.b16 %v2965
    %v3247 = vunpack.c.l.b16 %v2966
    %v3248 = vunpack.c.h.b16 %v2966
    %v3249 = vunpack.c.l.b16 %v2967
    %v3250 = vunpack.c.h.b16 %v2967
    %v3251 = vunpack.c.l.b16 %v2968
    %v3252 = vunpack.c.h.b16 %v2968
    %v3253 = vunpack.c.l.b16 %v2969
    %v3254 = vunpack.c.h.b16 %v2969
    %v3255 = vunpack.c.l.b16 %v2970
    %v3256 = vunpack.c.h.b16 %v2970
    %v3257 = vunpack.c.l.b16 %v2971
    %v3258 = vunpack.c.h.b16 %v2971
    %v3259 = vunpack.c.l.b16 %v2972
    %v3260 = vunpack.c.h.b16 %v2972
    %v3261 = vunpack.c.l.b16 %v2973
    %v3262 = vunpack.c.h.b16 %v2973
    %v3263 = vunpack.c.l.b16 %v2974
    %v3264 = vunpack.c.h.b16 %v2974
    %v3265 = vunpack.c.l.b16 %v2975
    %v3266 = vunpack.c.h.b16 %v2975
    %v3267 = vunpack.c.l.b16 %v2976
    %v3268 = vunpack.c.h.b16 %v2976
    %v3269 = vunpack.c.l.b16 %v2977
    %v3270 = vunpack.c.h.b16 %v2977
    %v3271 = vunpack.c.l.b16 %v2978
    %v3272 = vunpack.c.h.b16 %v2978
    %v3273 = vunpack.c.l.b16 %v2979
    %v3274 = vunpack.c.h.b16 %v2979
    %v3275 = vunpack.c.l.b16 %v2980
    %v3276 = vunpack.c.h.b16 %v2980
    %v3277 = vunpack.c.l.b16 %v2981
    %v3278 = vunpack.c.h.b16 %v2981
    %v3279 = vunpack.c.l.b16 %v2982
    %v3280 = vunpack.c.h.b16 %v2982
    %v3281 = vunpack.c.l.b16 %v2983
    %v3282 = vunpack.c.h.b16 %v2983
    %v3283 = vunpack.c.l.b16 %v2984
    %v3284 = vunpack.c.h.b16 %v2984
    %v3285 = vunpack.c.l.b16 %v2985
    %v3286 = vunpack.c.h.b16 %v2985
    %v3287 = vunpack.c.l.b16 %v2986
    %v3288 = vunpack.c.h.b16 %v2986
    %v3289 = vunpack.c.l.b16 %v2987
    %v3290 = vunpack.c.h.b16 %v2987
    %v3291 = vunpack.c.l.b16 %v2988
    %v3292 = vunpack.c.h.b16 %v2988
    %v3293 = vunpack.c.l.b16 %v2989
    %v3294 = vunpack.c.h.b16 %v2989
    %v3295 = vunpack.c.l.b16 %v2990
    %v3296 = vunpack.c.h.b16 %v2990
    %v3297 = vunpack.c.l.b16 %v2991
    %v3298 = vunpack.c.h.b16 %v2991
    %v3299 = vunpack.c.l.b16 %v2992
    %v3300 = vunpack.c.h.b16 %v2992
    %v3301 = vunpack.c.l.b16 %v2993
    %v3302 = vunpack.c.h.b16 %v2993
    %v3303 = vunpack.c.l.b16 %v2994
    %v3304 = vunpack.c.h.b16 %v2994
    %v3305 = vunpack.c.l.b16 %v2995
    %v3306 = vunpack.c.h.b16 %v2995
    %v3307 = vunpack.c.l.b16 %v2996
    %v3308 = vunpack.c.h.b16 %v2996
    %v3309 = vunpack.c.l.b16 %v2997
    %v3310 = vunpack.c.h.b16 %v2997
    %v3311 = vunpack.c.l.b16 %v2998
    %v3312 = vunpack.c.h.b16 %v2998
    %v3313 = vunpack.c.l.b16 %v2999
    %v3314 = vunpack.c.h.b16 %v2999
    %v3315 = vunpack.c.l.b16 %v3000
    %v3316 = vunpack.c.h.b16 %v3000
    %v3317 = vunpack.c.l.b16 %v3001
    %v3318 = vunpack.c.h.b16 %v3001
    %v3319 = vunpack.c.l.b16 %v3002
    %v3320 = vunpack.c.h.b16 %v3002
    %v3321 = vunpack.c.l.b16 %v3003
    %v3322 = vunpack.c.h.b16 %v3003
    %v3323 = vunpack.c.l.b16 %v3004
    %v3324 = vunpack.c.h.b16 %v3004
    %v3325 = vunpack.c.l.b16 %v3005
    %v3326 = vunpack.c.h.b16 %v3005
    %v3327 = vunpack.c.l.b16 %v3006
    %v3328 = vunpack.c.h.b16 %v3006
    %v3329 = vunpack.c.l.b16 %v3007
    %v3330 = vunpack.c.h.b16 %v3007
    %v3331 = vunpack.c.l.b16 %v3008
    %v3332 = vunpack.c.h.b16 %v3008
    %v3333 = vunpack.c.l.b16 %v3009
    %v3334 = vunpack.c.h.b16 %v3009
    %v3335 = vunpack.c.l.b16 %v3010
    %v3336 = vunpack.c.h.b16 %v3010
    %v3337 = vunpack.c.l.b16 %v3011
    %v3338 = vunpack.c.h.b16 %v3011
    %v3339 = vunpack.c.l.b16 %v3012
    %v3340 = vunpack.c.h.b16 %v3012
    %v3341 = vunpack.c.l.b16 %v3013
    %v3342 = vunpack.c.h.b16 %v3013
    %v3343 = vunpack.c.l.b16 %v3014
    %v3344 = vunpack.c.h.b16 %v3014
    %v3345 = vunpack.c.l.b16 %v3015
    %v3346 = vunpack.c.h.b16 %v3015
    %v3347 = vunpack.c.l.b16 %v3016
    %v3348 = vunpack.c.h.b16 %v3016
    %v3349 = vunpack.c.l.b16 %v3017
    %v3350 = vunpack.c.h.b16 %v3017
    %v3351 = vunpack.c.l.b16 %v3018
    %v3352 = vunpack.c.h.b16 %v3018
    %v3353 = vunpack.c.l.b16 %v3019
    %v3354 = vunpack.c.h.b16 %v3019
    %v3355 = vunpack.c.l.b16 %v3020
    %v3356 = vunpack.c.h.b16 %v3020
    %v3357 = vunpack.c.l.b16 %v3021
    %v3358 = vunpack.c.h.b16 %v3021
    %v3359 = vunpack.c.l.b16 %v3022
    %v3360 = vunpack.c.h.b16 %v3022
    %v3361 = vunpack.c.l.b16 %v3023
    %v3362 = vunpack.c.h.b16 %v3023
    %v3363 = vunpack.c.l.b16 %v3024
    %v3364 = vunpack.c.h.b16 %v3024
    %v3365 = vunpack.c.l.b16 %v3025
    %v3366 = vunpack.c.h.b16 %v3025
    %v3367 = vunpack.c.l.b16 %v3026
    %v3368 = vunpack.c.h.b16 %v3026
    %v3369 = vunpack.c.l.b16 %v3027
    %v3370 = vunpack.c.h.b16 %v3027
    %v3371 = vunpack.c.l.b16 %v3028
    %v3372 = vunpack.c.h.b16 %v3028
    %v3373 = vunpack.c.l.b16 %v3029
    %v3374 = vunpack.c.h.b16 %v3029
    %v3375 = vunpack.c.l.b16 %v3030
    %v3376 = vunpack.c.h.b16 %v3030
    %v3377 = vunpack.c.l.b16 %v3031
    %v3378 = vunpack.c.h.b16 %v3031
    %v3379 = vunpack.c.l.b16 %v3032
    %v3380 = vunpack.c.h.b16 %v3032
    %v3381 = vunpack.c.l.b16 %v3033
    %v3382 = vunpack.c.h.b16 %v3033
    %v3383 = vunpack.c.l.b16 %v3034
    %v3384 = vunpack.c.h.b16 %v3034
    %v3385 = vunpack.c.l.b16 %v3035
    %v3386 = vunpack.c.h.b16 %v3035
    %v3387 = vunpack.c.l.b16 %v3036
    %v3388 = vunpack.c.h.b16 %v3036
    %v3389 = vunpack.c.l.b16 %v3037
    %v3390 = vunpack.c.h.b16 %v3037
    %v3391 = vunpack.c.l.b16 %v3038
    %v3392 = vunpack.c.h.b16 %v3038
    %v3393 = vunpack.c.l.b16 %v3039
    %v3394 = vunpack.c.h.b16 %v3039
    %v3395 = vunpack.c.l.b16 %v3040
    %v3396 = vunpack.c.h.b16 %v3040
    %v3397 = vunpack.c.l.b16 %v3041
    %v3398 = vunpack.c.h.b16 %v3041
    %v3399 = vunpack.c.l.b16 %v3042
    %v3400 = vunpack.c.h.b16 %v3042
    %v3401 = vunpack.c.l.b16 %v3043
    %v3402 = vunpack.c.h.b16 %v3043
    %v3403 = vunpack.c.l.b16 %v3044
    %v3404 = vunpack.c.h.b16 %v3044
    %v3405 = vunpack.c.l.b16 %v3045
    %v3406 = vunpack.c.h.b16 %v3045
    %v3407 = vunpack.c.l.b16 %v3046
    %v3408 = vunpack.c.h.b16 %v3046
    %v3409 = vunpack.c.l.b16 %v3047
    %v3410 = vunpack.c.h.b16 %v3047
    %v3411 = vunpack.c.l.b16 %v3048
    %v3412 = vunpack.c.h.b16 %v3048
    %v3413 = vunpack.c.l.b16 %v3049
    %v3414 = vunpack.c.h.b16 %v3049
    %v3415 = vunpack.c.l.b16 %v3050
    %v3416 = vunpack.c.h.b16 %v3050
    %v3417 = vunpack.c.l.b16 %v3051
    %v3418 = vunpack.c.h.b16 %v3051
    %v3419 = vunpack.c.l.b16 %v3052
    %v3420 = vunpack.c.h.b16 %v3052
    %v3421 = vunpack.c.l.b16 %v3053
    %v3422 = vunpack.c.h.b16 %v3053
    %v3423 = vunpack.c.l.b16 %v3054
    %v3424 = vunpack.c.h.b16 %v3054
    %v3425 = vunpack.c.l.b16 %v3055
    %v3426 = vunpack.c.h.b16 %v3055
    %v3427 = vunpack.c.l.b16 %v3056
    %v3428 = vunpack.c.h.b16 %v3056
    %v3429 = vunpack.c.l.b16 %v3057
    %v3430 = vunpack.c.h.b16 %v3057
    %v3431 = vunpack.c.l.b16 %v3058
    %v3432 = vunpack.c.h.b16 %v3058
    %v3433 = vunpack.c.l.b16 %v3059
    %v3434 = vunpack.c.h.b16 %v3059
    %v3435 = vunpack.c.l.b16 %v3060
    %v3436 = vunpack.c.h.b16 %v3060
    %v3437 = vunpack.c.l.b16 %v3061
    %v3438 = vunpack.c.h.b16 %v3061
    %v3439 = vunpack.c.l.b16 %v3062
    %v3440 = vunpack.c.h.b16 %v3062
    %v3441 = vunpack.c.l.b16 %v3063
    %v3442 = vunpack.c.h.b16 %v3063
    %v3443 = vunpack.c.l.b16 %v3064
    %v3444 = vunpack.c.h.b16 %v3064
    %v3445 = vunpack.c.l.b16 %v3065
    %v3446 = vunpack.c.h.b16 %v3065
    %v3447 = vunpack.c.l.b16 %v3066
    %v3448 = vunpack.c.h.b16 %v3066
    %v3449 = vunpack.c.l.b16 %v3067
    %v3450 = vunpack.c.h.b16 %v3067
    %v3451 = vunpack.c.l.b16 %v3068
    %v3452 = vunpack.c.h.b16 %v3068
    %v3453 = vunpack.c.l.b16 %v3069
    %v3454 = vunpack.c.h.b16 %v3069
    %v3455 = vunpack.c.l.b16 %v3070
    %v3456 = vunpack.c.h.b16 %v3070
    %v3457 = vunpack.c.l.b16 %v3071
    %v3458 = vunpack.c.h.b16 %v3071
    %v3459 = vunpack.c.l.b16 %v3072
    %v3460 = vunpack.c.h.b16 %v3072
    %v3461 = vunpack.c.l.b16 %v3073
    %v3462 = vunpack.c.h.b16 %v3073
    %v3463 = vunpack.c.l.b16 %v3074
    %v3464 = vunpack.c.h.b16 %v3074
    %v3465 = vunpack.c.l.b16 %v3075
    %v3466 = vunpack.c.h.b16 %v3075
    %v3467 = vunpack.c.l.b16 %v3076
    %v3468 = vunpack.c.h.b16 %v3076
    %v3469 = vunpack.c.l.b16 %v3077
    %v3470 = vunpack.c.h.b16 %v3077
    %v3471 = vunpack.c.l.b16 %v3078
    %v3472 = vunpack.c.h.b16 %v3078
    %v3473 = vunpack.c.l.b16 %v3079
    %v3474 = vunpack.c.h.b16 %v3079
    %v3475 = vunpack.c.l.b16 %v3080
    %v3476 = vunpack.c.h.b16 %v3080
    %v3477 = vunpack.c.l.b16 %v3081
    %v3478 = vunpack.c.h.b16 %v3081
    %v3479 = vunpack.c.l.b16 %v3082
    %v3480 = vunpack.c.h.b16 %v3082
    %v3481 = vunpack.c.l.b16 %v3083
    %v3482 = vunpack.c.h.b16 %v3083
    %v3483 = vunpack.c.l.b16 %v3084
    %v3484 = vunpack.c.h.b16 %v3084
    %v3485 = vunpack.c.l.b16 %v3085
    %v3486 = vunpack.c.h.b16 %v3085
    %v3487 = vpack.c.b16 %v3239, %v3231
    %v3488 = vpack.c.b16 %v3240, %v3232
    %v3489 = vpack.c.b16 %v3241, %v3233
    %v3490 = vpack.c.b16 %v3242, %v3234
    %v3491 = vpack.c.b16 %v3243, %v3235
    %v3492 = vpack.c.b16 %v3244, %v3236
    %v3493 = vpack.c.b16 %v3245, %v3237
    %v3494 = vpack.c.b16 %v3246, %v3238
    %v3495 = vpack.c.b16 %v3255, %v3247
    %v3496 = vpack.c.b16 %v3256, %v3248
    %v3497 = vpack.c.b16 %v3257, %v3249
    %v3498 = vpack.c.b16 %v3258, %v3250
    %v3499 = vpack.c.b16 %v3259, %v3251
    %v3500 = vpack.c.b16 %v3260, %v3252
    %v3501 = vpack.c.b16 %v3261, %v3253
    %v3502 = vpack.c.b16 %v3262, %v3254
    %v3503 = vpack.c.b16 %v3271, %v3263
    %v3504 = vpack.c.b16 %v3272, %v3264
    %v3505 = vpack.c.b16 %v3273, %v3265
    %v3506 = vpack.c.b16 %v3274, %v3266
    %v3507 = vpack.c.b16 %v3275, %v3267
    %v3508 = vpack.c.b16 %v3276, %v3268
    %v3509 = vpack.c.b16 %v3277, %v3269
    %v3510 = vpack.c.b16 %v3278, %v3270
    %v3511 = vpack.c.b16 %v3287, %v3279
    %v3512 = vpack.c.b16 %v3288, %v3280
    %v3513 = vpack.c.b16 %v3289, %v3281
    %v3514 = vpack.c.b16 %v3290, %v3282
    %v3515 = vpack.c.b16 %v3291, %v3283
    %v3516 = vpack.c.b16 %v3292, %v3284
    %v3517 = vpack.c.b16 %v3293, %v3285
    %v3518 = vpack.c.b16 %v3294, %v3286
    %v3519 = vpack.c.b16 %v3303, %v3295
    %v3520 = vpack.c.b16 %v3304, %v3296
    %v3521 = vpack.c.b16 %v3305, %v3297
    %v3522 = vpack.c.b16 %v3306, %v3298
    %v3523 = vpack.c.b16 %v3307, %v3299
    %v3524 = vpack.c.b16 %v3308, %v3300
    %v3525 = vpack.c.b16 %v3309, %v3301
    %v3526 = vpack.c.b16 %v3310, %v3302
    %v3527 = vpack.c.b16 %v3319, %v3311
    %v3528 = vpack.c.b16 %v3320, %v3312
    %v3529 = vpack.c.b16 %v3321, %v3313
    %v3530 = vpack.c.b16 %v3322, %v3314
    %v3531 = vpack.c.b16 %v3323, %v3315
    %v3532 = vpack.c.b16 %v3324, %v3316
    %v3533 = vpack.c.b16 %v3325, %v3317
    %v3534 = vpack.c.b16 %v3326, %v3318
    %v3535 = vpack.c.b16 %v3335, %v3327
    %v3536 = vpack.c.b16 %v3336, %v3328
    %v3537 = vpack.c.b16 %v3337, %v3329
    %v3538 = vpack.c.b16 %v3338, %v3330
    %v3539 = vpack.c.b16 %v3339, %v3331
    %v3540 = vpack.c.b16 %v3340, %v3332
    %v3541 = vpack.c.b16 %v3341, %v3333
    %v3542 = vpack.c.b16 %v3342, %v3334
    %v3543 = vpack.c.b16 %v3351, %v3343
    %v3544 = vpack.c.b16 %v3352, %v3344
    %v3545 = vpack.c.b16 %v3353, %v3345
    %v3546 = vpack.c.b16 %v3354, %v3346
    %v3547 = vpack.c.b16 %v3355, %v3347
    %v3548 = vpack.c.b16 %v3356, %v3348
    %v3549 = vpack.c.b16 %v3357, %v3349
    %v3550 = vpack.c.b16 %v3358, %v3350
    %v3551 = vpack.c.b16 %v3367, %v3359
    %v3552 = vpack.c.b16 %v3368, %v3360
    %v3553 = vpack.c.b16 %v3369, %v3361
    %v3554 = vpack.c.b16 %v3370, %v3362
    %v3555 = vpack.c.b16 %v3371, %v3363
    %v3556 = vpack.c.b16 %v3372, %v3364
    %v3557 = vpack.c.b16 %v3373, %v3365
    %v3558 = vpack.c.b16 %v3374, %v3366
    %v3559 = vpack.c.b16 %v3383, %v3375
    %v3560 = vpack.c.b16 %v3384, %v3376
    %v3561 = vpack.c.b16 %v3385, %v3377
    %v3562 = vpack.c.b16 %v3386, %v3378
    %v3563 = vpack.c.b16 %v3387, %v3379
    %v3564 = vpack.c.b16 %v3388, %v3380
    %v3565 = vpack.c.b16 %v3389, %v3381
    %v3566 = vpack.c.b16 %v3390, %v3382
    %v3567 = vpack.c.b16 %v3399, %v3391
    %v3568 = vpack.c.b16 %v3400, %v3392
    %v3569 = vpack.c.b16 %v3401, %v3393
    %v3570 = vpack.c.b16 %v3402, %v3394
    %v3571 = vpack.c.b16 %v3403, %v3395
    %v3572 = vpack.c.b16 %v3404, %v3396
    %v3573 = vpack.c.b16 %v3405, %v3397
    %v3574 = vpack.c.b16 %v3406, %v3398
    %v3575 = vpack.c.b16 %v3415, %v3407
    %v3576 = vpack.c.b16 %v3416, %v3408
    %v3577 = vpack.c.b16 %v3417, %v3409
    %v3578 = vpack.c.b16 %v3418, %v3410
    %v3579 = vpack.c.b16 %v3419, %v3411
    %v3580 = vpack.c.b16 %v3420, %v3412
    %v3581 = vpack.c.b16 %v3421, %v3413
    %v3582 = vpack.c.b16 %v3422, %v3414
    %v3583 = vpack.c.b16 %v3431, %v3423
    %v3584 = vpack.c.b16 %v3432, %v3424
    %v3585 = vpack.c.b16 %v3433, %v3425
    %v3586 = vpack.c.b16 %v3434, %v3426
    %v3587 = vpack.c.b16 %v3435, %v3427
    %v3588 = vpack.c.b16 %v3436, %v3428
    %v3589 = vpack.c.b16 %v3437, %v3429
    %v3590 = vpack.c.b16 %v3438, %v3430
    %v3591 = vpack.c.b16 %v3447, %v3439
    %v3592 = vpack.c.b16 %v3448, %v3440
    %v3593 = vpack.c.b16 %v3449, %v3441
    %v3594 = vpack.c.b16 %v3450, %v3442
    %v3595 = vpack.c.b16 %v3451, %v3443
    %v3596 = vpack.c.b16 %v3452, %v3444
    %v3597 = vpack.c.b16 %v3453, %v3445
    %v3598 = vpack.c.b16 %v3454, %v3446
    %v3599 = vpack.c.b16 %v3463, %v3455
    %v3600 = vpack.c.b16 %v3464, %v3456
    %v3601 = vpack.c.b16 %v3465, %v3457
    %v3602 = vpack.c.b16 %v3466, %v3458
    %v3603 = vpack.c.b16 %v3467, %v3459
    %v3604 = vpack.c.b16 %v3468, %v3460
    %v3605 = vpack.c.b16 %v3469, %v3461
    %v3606 = vpack.c.b16 %v3470, %v3462
    %v3607 = vpack.c.b16 %v3479, %v3471
    %v3608 = vpack.c.b16 %v3480, %v3472
    %v3609 = vpack.c.b16 %v3481, %v3473
    %v3610 = vpack.c.b16 %v3482, %v3474
    %v3611 = vpack.c.b16 %v3483, %v3475
    %v3612 = vpack.c.b16 %v3484, %v3476
    %v3613 = vpack.c.b16 %v3485, %v3477
    %v3614 = vpack.c.b16 %v3486, %v3478
    %3743 = vmatpush.bf16.msra.mxu0 %v3543
    %3744 = vmatpush.bf16.msra.mxu0 %v3535
    %3745 = vmatpush.bf16.msra.mxu0 %v3527
    %3746 = vmatpush.bf16.msra.mxu0 %v3519
    %3747 = vmatpush.bf16.msra.mxu0 %v3511
    %3748 = vmatpush.bf16.msra.mxu0 %v3503
    %3749 = vmatpush.bf16.msra.mxu0 %v3495
    %3750 = vmatpush.bf16.msra.mxu0 %v3487
    %3751 = vmatmul.bf16.gmra.mxu0 %v2956
    %v3752 = vpop.f32.mrf.mxu0
    %v3753 = vadd.f32 %v3087, %v3752
    %v3754 = vpop.f32.mrf.mxu0
    %3755 = vdwg.mxu0
    %3756 = vmatpush.bf16.msra.mxu0 %v3607
    %3757 = vmatpush.bf16.msra.mxu0 %v3599
    %3758 = vmatpush.bf16.msra.mxu0 %v3591
    %3759 = vmatpush.bf16.msra.mxu0 %v3583
    %3760 = vmatpush.bf16.msra.mxu0 %v3575
    %3761 = vmatpush.bf16.msra.mxu0 %v3567
    %3762 = vmatpush.bf16.msra.mxu0 %v3559
    %3763 = vmatpush.bf16.msra.mxu0 %v3551
    %3764 = vmatmul.bf16.gmra.mxu0 %v2957
    %v3765 = vpop.f32.mrf.mxu0
    %v3766 = vadd.f32 %v3753, %v3765
    %v3767 = vpop.f32.mrf.mxu0
    %3768 = vdwg.mxu0
    %3769 = vmatpush.bf16.msra.mxu0 %v3544
    %3770 = vmatpush.bf16.msra.mxu0 %v3536
    %3771 = vmatpush.bf16.msra.mxu0 %v3528
    %3772 = vmatpush.bf16.msra.mxu0 %v3520
    %3773 = vmatpush.bf16.msra.mxu0 %v3512
    %3774 = vmatpush.bf16.msra.mxu0 %v3504
    %3775 = vmatpush.bf16.msra.mxu0 %v3496
    %3776 = vmatpush.bf16.msra.mxu0 %v3488
    %3777 = vmatmul.bf16.gmra.mxu0 %v2956
    %v3778 = vpop.f32.mrf.mxu0
    %v3779 = vadd.f32 %v3088, %v3778
    %v3780 = vpop.f32.mrf.mxu0
    %3781 = vdwg.mxu0
    %3782 = vmatpush.bf16.msra.mxu0 %v3608
    %3783 = vmatpush.bf16.msra.mxu0 %v3600
    %3784 = vmatpush.bf16.msra.mxu0 %v3592
    %3785 = vmatpush.bf16.msra.mxu0 %v3584
    %3786 = vmatpush.bf16.msra.mxu0 %v3576
    %3787 = vmatpush.bf16.msra.mxu0 %v3568
    %3788 = vmatpush.bf16.msra.mxu0 %v3560
    %3789 = vmatpush.bf16.msra.mxu0 %v3552
    %3790 = vmatmul.bf16.gmra.mxu0 %v2957
    %v3791 = vpop.f32.mrf.mxu0
    %v3792 = vadd.f32 %v3779, %v3791
    %v3793 = vpop.f32.mrf.mxu0
    %3794 = vdwg.mxu0
    %3795 = vmatpush.bf16.msra.mxu0 %v3545
    %3796 = vmatpush.bf16.msra.mxu0 %v3537
    %3797 = vmatpush.bf16.msra.mxu0 %v3529
    %3798 = vmatpush.bf16.msra.mxu0 %v3521
    %3799 = vmatpush.bf16.msra.mxu0 %v3513
    %3800 = vmatpush.bf16.msra.mxu0 %v3505
    %3801 = vmatpush.bf16.msra.mxu0 %v3497
    %3802 = vmatpush.bf16.msra.mxu0 %v3489
    %3803 = vmatmul.bf16.gmra.mxu0 %v2956
    %v3804 = vpop.f32.mrf.mxu0
    %v3805 = vadd.f32 %v3089, %v3804
    %v3806 = vpop.f32.mrf.mxu0
    %3807 = vdwg.mxu0
    %3808 = vmatpush.bf16.msra.mxu0 %v3609
    %3809 = vmatpush.bf16.msra.mxu0 %v3601
    %3810 = vmatpush.bf16.msra.mxu0 %v3593
    %3811 = vmatpush.bf16.msra.mxu0 %v3585
    %3812 = vmatpush.bf16.msra.mxu0 %v3577
    %3813 = vmatpush.bf16.msra.mxu0 %v3569
    %3814 = vmatpush.bf16.msra.mxu0 %v3561
    %3815 = vmatpush.bf16.msra.mxu0 %v3553
    %3816 = vmatmul.bf16.gmra.mxu0 %v2957
    %v3817 = vpop.f32.mrf.mxu0
    %v3818 = vadd.f32 %v3805, %v3817
    %v3819 = vpop.f32.mrf.mxu0
    %3820 = vdwg.mxu0
    %3821 = vmatpush.bf16.msra.mxu0 %v3546
    %3822 = vmatpush.bf16.msra.mxu0 %v3538
    %3823 = vmatpush.bf16.msra.mxu0 %v3530
    %3824 = vmatpush.bf16.msra.mxu0 %v3522
    %3825 = vmatpush.bf16.msra.mxu0 %v3514
    %3826 = vmatpush.bf16.msra.mxu0 %v3506
    %3827 = vmatpush.bf16.msra.mxu0 %v3498
    %3828 = vmatpush.bf16.msra.mxu0 %v3490
    %3829 = vmatmul.bf16.gmra.mxu0 %v2956
    %v3830 = vpop.f32.mrf.mxu0
    %v3831 = vadd.f32 %v3090, %v3830
    %v3832 = vpop.f32.mrf.mxu0
    %3833 = vdwg.mxu0
    %3834 = vmatpush.bf16.msra.mxu0 %v3610
    %3835 = vmatpush.bf16.msra.mxu0 %v3602
    %3836 = vmatpush.bf16.msra.mxu0 %v3594
    %3837 = vmatpush.bf16.msra.mxu0 %v3586
    %3838 = vmatpush.bf16.msra.mxu0 %v3578
    %3839 = vmatpush.bf16.msra.mxu0 %v3570
    %3840 = vmatpush.bf16.msra.mxu0 %v3562
    %3841 = vmatpush.bf16.msra.mxu0 %v3554
    %3842 = vmatmul.bf16.gmra.mxu0 %v2957
    %v3843 = vpop.f32.mrf.mxu0
    %v3844 = vadd.f32 %v3831, %v3843
    %v3845 = vpop.f32.mrf.mxu0
    %3846 = vdwg.mxu0
    %3847 = vmatpush.bf16.msra.mxu0 %v3547
    %3848 = vmatpush.bf16.msra.mxu0 %v3539
    %3849 = vmatpush.bf16.msra.mxu0 %v3531
    %3850 = vmatpush.bf16.msra.mxu0 %v3523
    %3851 = vmatpush.bf16.msra.mxu0 %v3515
    %3852 = vmatpush.bf16.msra.mxu0 %v3507
    %3853 = vmatpush.bf16.msra.mxu0 %v3499
    %3854 = vmatpush.bf16.msra.mxu0 %v3491
    %3855 = vmatmul.bf16.gmra.mxu0 %v2956
    %v3856 = vpop.f32.mrf.mxu0
    %v3857 = vadd.f32 %v3091, %v3856
    %v3858 = vpop.f32.mrf.mxu0
    %3859 = vdwg.mxu0
    %3860 = vmatpush.bf16.msra.mxu0 %v3611
    %3861 = vmatpush.bf16.msra.mxu0 %v3603
    %3862 = vmatpush.bf16.msra.mxu0 %v3595
    %3863 = vmatpush.bf16.msra.mxu0 %v3587
    %3864 = vmatpush.bf16.msra.mxu0 %v3579
    %3865 = vmatpush.bf16.msra.mxu0 %v3571
    %3866 = vmatpush.bf16.msra.mxu0 %v3563
    %3867 = vmatpush.bf16.msra.mxu0 %v3555
    %3868 = vmatmul.bf16.gmra.mxu0 %v2957
    %v3869 = vpop.f32.mrf.mxu0
    %v3870 = vadd.f32 %v3857, %v3869
    %v3871 = vpop.f32.mrf.mxu0
    %3872 = vdwg.mxu0
    %3873 = vmatpush.bf16.msra.mxu0 %v3548
    %3874 = vmatpush.bf16.msra.mxu0 %v3540
    %3875 = vmatpush.bf16.msra.mxu0 %v3532
    %3876 = vmatpush.bf16.msra.mxu0 %v3524
    %3877 = vmatpush.bf16.msra.mxu0 %v3516
    %3878 = vmatpush.bf16.msra.mxu0 %v3508
    %3879 = vmatpush.bf16.msra.mxu0 %v3500
    %3880 = vmatpush.bf16.msra.mxu0 %v3492
    %3881 = vmatmul.bf16.gmra.mxu0 %v2956
    %v3882 = vpop.f32.mrf.mxu0
    %v3883 = vadd.f32 %v3092, %v3882
    %v3884 = vpop.f32.mrf.mxu0
    %3885 = vdwg.mxu0
    %3886 = vmatpush.bf16.msra.mxu0 %v3612
    %3887 = vmatpush.bf16.msra.mxu0 %v3604
    %3888 = vmatpush.bf16.msra.mxu0 %v3596
    %3889 = vmatpush.bf16.msra.mxu0 %v3588
    %3890 = vmatpush.bf16.msra.mxu0 %v3580
    %3891 = vmatpush.bf16.msra.mxu0 %v3572
    %3892 = vmatpush.bf16.msra.mxu0 %v3564
    %3893 = vmatpush.bf16.msra.mxu0 %v3556
    %3894 = vmatmul.bf16.gmra.mxu0 %v2957
    %v3895 = vpop.f32.mrf.mxu0
    %v3896 = vadd.f32 %v3883, %v3895
    %v3897 = vpop.f32.mrf.mxu0
    %3898 = vdwg.mxu0
    %3899 = vmatpush.bf16.msra.mxu0 %v3549
    %3900 = vmatpush.bf16.msra.mxu0 %v3541
    %3901 = vmatpush.bf16.msra.mxu0 %v3533
    %3902 = vmatpush.bf16.msra.mxu0 %v3525
    %3903 = vmatpush.bf16.msra.mxu0 %v3517
    %3904 = vmatpush.bf16.msra.mxu0 %v3509
    %3905 = vmatpush.bf16.msra.mxu0 %v3501
    %3906 = vmatpush.bf16.msra.mxu0 %v3493
    %3907 = vmatmul.bf16.gmra.mxu0 %v2956
    %v3908 = vpop.f32.mrf.mxu0
    %v3909 = vadd.f32 %v3093, %v3908
    %v3910 = vpop.f32.mrf.mxu0
    %3911 = vdwg.mxu0
    %3912 = vmatpush.bf16.msra.mxu0 %v3613
    %3913 = vmatpush.bf16.msra.mxu0 %v3605
    %3914 = vmatpush.bf16.msra.mxu0 %v3597
    %3915 = vmatpush.bf16.msra.mxu0 %v3589
    %3916 = vmatpush.bf16.msra.mxu0 %v3581
    %3917 = vmatpush.bf16.msra.mxu0 %v3573
    %3918 = vmatpush.bf16.msra.mxu0 %v3565
    %3919 = vmatpush.bf16.msra.mxu0 %v3557
    %3920 = vmatmul.bf16.gmra.mxu0 %v2957
    %v3921 = vpop.f32.mrf.mxu0
    %v3922 = vadd.f32 %v3909, %v3921
    %v3923 = vpop.f32.mrf.mxu0
    %3924 = vdwg.mxu0
    %3925 = vmatpush.bf16.msra.mxu0 %v3550
    %3926 = vmatpush.bf16.msra.mxu0 %v3542
    %3927 = vmatpush.bf16.msra.mxu0 %v3534
    %3928 = vmatpush.bf16.msra.mxu0 %v3526
    %3929 = vmatpush.bf16.msra.mxu0 %v3518
    %3930 = vmatpush.bf16.msra.mxu0 %v3510
    %3931 = vmatpush.bf16.msra.mxu0 %v3502
    %3932 = vmatpush.bf16.msra.mxu0 %v3494
    %3933 = vmatmul.bf16.gmra.mxu0 %v2956
    %v3934 = vpop.f32.mrf.mxu0
    %v3935 = vadd.f32 %v3094, %v3934
    %v3936 = vpop.f32.mrf.mxu0
    %3937 = vdwg.mxu0
    %3938 = vmatpush.bf16.msra.mxu0 %v3614
    %3939 = vmatpush.bf16.msra.mxu0 %v3606
    %3940 = vmatpush.bf16.msra.mxu0 %v3598
    %3941 = vmatpush.bf16.msra.mxu0 %v3590
    %3942 = vmatpush.bf16.msra.mxu0 %v3582
    %3943 = vmatpush.bf16.msra.mxu0 %v3574
    %3944 = vmatpush.bf16.msra.mxu0 %v3566
    %3945 = vmatpush.bf16.msra.mxu0 %v3558
    %3946 = vmatmul.bf16.gmra.mxu0 %v2957
    %v3947 = vpop.f32.mrf.mxu0
    %v3948 = vadd.f32 %v3935, %v3947
    %v3949 = vpop.f32.mrf.mxu0
    %3950 = vdwg.mxu0
    %v3951 = vmax.f32 %v3766, 0.0
    %v3952 = vmax.f32 %v3792, 0.0
    %v3953 = vmax.f32 %v3818, 0.0
    %v3954 = vmax.f32 %v3844, 0.0
    %v3955 = vmax.f32 %v3870, 0.0
    %v3956 = vmax.f32 %v3896, 0.0
    %v3957 = vmax.f32 %v3922, 0.0
    %v3958 = vmax.f32 %v3948, 0.0
    %v3959 = vpack.c.bf16 %v3951, %v3951
    %v3960 = vpack.c.bf16 %v3952, %v3952
    %v3961 = vpack.c.bf16 %v3953, %v3953
    %v3962 = vpack.c.bf16 %v3954, %v3954
    %v3963 = vpack.c.bf16 %v3955, %v3955
    %v3964 = vpack.c.bf16 %v3956, %v3956
    %v3965 = vpack.c.bf16 %v3957, %v3957
    %v3966 = vpack.c.bf16 %v3958, %v3958
    %v3967 = vld [vmem:[#allocation14] sm:$0xff]
    %v3968 = vld [vmem:[#allocation14 + $0x8] sm:$0xff]
    %v3969 = vld [vmem:[#allocation14 + $0x10] sm:$0xff]
    %v3970 = vld [vmem:[#allocation14 + $0x18] sm:$0xff]
    %v3971 = vld [vmem:[#allocation14 + $0x20] sm:$0xff]
    %v3972 = vld [vmem:[#allocation14 + $0x28] sm:$0xff]
    %v3973 = vld [vmem:[#allocation14 + $0x30] sm:$0xff]
    %v3974 = vld [vmem:[#allocation14 + $0x38] sm:$0xff]
    %v3975 = vld [vmem:[#allocation14 + $0x40] sm:$0xff]
    %v3976 = vld [vmem:[#allocation14 + $0x48] sm:$0xff]
    %v3977 = vld [vmem:[#allocation14 + $0x50] sm:$0xff]
    %v3978 = vld [vmem:[#allocation14 + $0x58] sm:$0xff]
    %v3979 = vld [vmem:[#allocation14 + $0x60] sm:$0xff]
    %v3980 = vld [vmem:[#allocation14 + $0x68] sm:$0xff]
    %v3981 = vld [vmem:[#allocation14 + $0x70] sm:$0xff]
    %v3982 = vld [vmem:[#allocation14 + $0x78] sm:$0xff]
    %v3983 = vld [vmem:[#allocation14 + $0x80] sm:$0xff]
    %v3984 = vld [vmem:[#allocation14 + $0x88] sm:$0xff]
    %v3985 = vld [vmem:[#allocation14 + $0x90] sm:$0xff]
    %v3986 = vld [vmem:[#allocation14 + $0x98] sm:$0xff]
    %v3987 = vld [vmem:[#allocation14 + $0xa0] sm:$0xff]
    %v3988 = vld [vmem:[#allocation14 + $0xa8] sm:$0xff]
    %v3989 = vld [vmem:[#allocation14 + $0xb0] sm:$0xff]
    %v3990 = vld [vmem:[#allocation14 + $0xb8] sm:$0xff]
    %v3991 = vld [vmem:[#allocation14 + $0xc0] sm:$0xff]
    %v3992 = vld [vmem:[#allocation14 + $0xc8] sm:$0xff]
    %v3993 = vld [vmem:[#allocation14 + $0xd0] sm:$0xff]
    %v3994 = vld [vmem:[#allocation14 + $0xd8] sm:$0xff]
    %v3995 = vld [vmem:[#allocation14 + $0xe0] sm:$0xff]
    %v3996 = vld [vmem:[#allocation14 + $0xe8] sm:$0xff]
    %v3997 = vld [vmem:[#allocation14 + $0xf0] sm:$0xff]
    %v3998 = vld [vmem:[#allocation14 + $0xf8] sm:$0xff]
    %v3999 = vld [vmem:[#allocation14 + $0x100] sm:$0xff]
    %v4000 = vld [vmem:[#allocation14 + $0x108] sm:$0xff]
    %v4001 = vld [vmem:[#allocation14 + $0x110] sm:$0xff]
    %v4002 = vld [vmem:[#allocation14 + $0x118] sm:$0xff]
    %v4003 = vld [vmem:[#allocation14 + $0x120] sm:$0xff]
    %v4004 = vld [vmem:[#allocation14 + $0x128] sm:$0xff]
    %v4005 = vld [vmem:[#allocation14 + $0x130] sm:$0xff]
    %v4006 = vld [vmem:[#allocation14 + $0x138] sm:$0xff]
    %v4007 = vld [vmem:[#allocation14 + $0x140] sm:$0xff]
    %v4008 = vld [vmem:[#allocation14 + $0x148] sm:$0xff]
    %v4009 = vld [vmem:[#allocation14 + $0x150] sm:$0xff]
    %v4010 = vld [vmem:[#allocation14 + $0x158] sm:$0xff]
    %v4011 = vld [vmem:[#allocation14 + $0x160] sm:$0xff]
    %v4012 = vld [vmem:[#allocation14 + $0x168] sm:$0xff]
    %v4013 = vld [vmem:[#allocation14 + $0x170] sm:$0xff]
    %v4014 = vld [vmem:[#allocation14 + $0x178] sm:$0xff]
    %v4015 = vld [vmem:[#allocation14 + $0x180] sm:$0xff]
    %v4016 = vld [vmem:[#allocation14 + $0x188] sm:$0xff]
    %v4017 = vld [vmem:[#allocation14 + $0x190] sm:$0xff]
    %v4018 = vld [vmem:[#allocation14 + $0x198] sm:$0xff]
    %v4019 = vld [vmem:[#allocation14 + $0x1a0] sm:$0xff]
    %v4020 = vld [vmem:[#allocation14 + $0x1a8] sm:$0xff]
    %v4021 = vld [vmem:[#allocation14 + $0x1b0] sm:$0xff]
    %v4022 = vld [vmem:[#allocation14 + $0x1b8] sm:$0xff]
    %v4023 = vld [vmem:[#allocation14 + $0x1c0] sm:$0xff]
    %v4024 = vld [vmem:[#allocation14 + $0x1c8] sm:$0xff]
    %v4025 = vld [vmem:[#allocation14 + $0x1d0] sm:$0xff]
    %v4026 = vld [vmem:[#allocation14 + $0x1d8] sm:$0xff]
    %v4027 = vld [vmem:[#allocation14 + $0x1e0] sm:$0xff]
    %v4028 = vld [vmem:[#allocation14 + $0x1e8] sm:$0xff]
    %v4029 = vld [vmem:[#allocation14 + $0x1f0] sm:$0xff]
    %v4030 = vld [vmem:[#allocation14 + $0x1f8] sm:$0xff]
    %v4031 = vld [vmem:[#allocation14 + $0x200] sm:$0xff]
    %v4032 = vld [vmem:[#allocation14 + $0x208] sm:$0xff]
    %v4033 = vld [vmem:[#allocation14 + $0x210] sm:$0xff]
    %v4034 = vld [vmem:[#allocation14 + $0x218] sm:$0xff]
    %v4035 = vld [vmem:[#allocation14 + $0x220] sm:$0xff]
    %v4036 = vld [vmem:[#allocation14 + $0x228] sm:$0xff]
    %v4037 = vld [vmem:[#allocation14 + $0x230] sm:$0xff]
    %v4038 = vld [vmem:[#allocation14 + $0x238] sm:$0xff]
    %v4039 = vld [vmem:[#allocation14 + $0x240] sm:$0xff]
    %v4040 = vld [vmem:[#allocation14 + $0x248] sm:$0xff]
    %v4041 = vld [vmem:[#allocation14 + $0x250] sm:$0xff]
    %v4042 = vld [vmem:[#allocation14 + $0x258] sm:$0xff]
    %v4043 = vld [vmem:[#allocation14 + $0x260] sm:$0xff]
    %v4044 = vld [vmem:[#allocation14 + $0x268] sm:$0xff]
    %v4045 = vld [vmem:[#allocation14 + $0x270] sm:$0xff]
    %v4046 = vld [vmem:[#allocation14 + $0x278] sm:$0xff]
    %v4047 = vld [vmem:[#allocation14 + $0x280] sm:$0xff]
    %v4048 = vld [vmem:[#allocation14 + $0x288] sm:$0xff]
    %v4049 = vld [vmem:[#allocation14 + $0x290] sm:$0xff]
    %v4050 = vld [vmem:[#allocation14 + $0x298] sm:$0xff]
    %v4051 = vld [vmem:[#allocation14 + $0x2a0] sm:$0xff]
    %v4052 = vld [vmem:[#allocation14 + $0x2a8] sm:$0xff]
    %v4053 = vld [vmem:[#allocation14 + $0x2b0] sm:$0xff]
    %v4054 = vld [vmem:[#allocation14 + $0x2b8] sm:$0xff]
    %v4055 = vld [vmem:[#allocation14 + $0x2c0] sm:$0xff]
    %v4056 = vld [vmem:[#allocation14 + $0x2c8] sm:$0xff]
    %v4057 = vld [vmem:[#allocation14 + $0x2d0] sm:$0xff]
    %v4058 = vld [vmem:[#allocation14 + $0x2d8] sm:$0xff]
    %v4059 = vld [vmem:[#allocation14 + $0x2e0] sm:$0xff]
    %v4060 = vld [vmem:[#allocation14 + $0x2e8] sm:$0xff]
    %v4061 = vld [vmem:[#allocation14 + $0x2f0] sm:$0xff]
    %v4062 = vld [vmem:[#allocation14 + $0x2f8] sm:$0xff]
    %v4063 = vld [vmem:[#allocation14 + $0x300] sm:$0xff]
    %v4064 = vld [vmem:[#allocation14 + $0x308] sm:$0xff]
    %v4065 = vld [vmem:[#allocation14 + $0x310] sm:$0xff]
    %v4066 = vld [vmem:[#allocation14 + $0x318] sm:$0xff]
    %v4067 = vld [vmem:[#allocation14 + $0x320] sm:$0xff]
    %v4068 = vld [vmem:[#allocation14 + $0x328] sm:$0xff]
    %v4069 = vld [vmem:[#allocation14 + $0x330] sm:$0xff]
    %v4070 = vld [vmem:[#allocation14 + $0x338] sm:$0xff]
    %v4071 = vld [vmem:[#allocation14 + $0x340] sm:$0xff]
    %v4072 = vld [vmem:[#allocation14 + $0x348] sm:$0xff]
    %v4073 = vld [vmem:[#allocation14 + $0x350] sm:$0xff]
    %v4074 = vld [vmem:[#allocation14 + $0x358] sm:$0xff]
    %v4075 = vld [vmem:[#allocation14 + $0x360] sm:$0xff]
    %v4076 = vld [vmem:[#allocation14 + $0x368] sm:$0xff]
    %v4077 = vld [vmem:[#allocation14 + $0x370] sm:$0xff]
    %v4078 = vld [vmem:[#allocation14 + $0x378] sm:$0xff]
    %v4079 = vld [vmem:[#allocation14 + $0x380] sm:$0xff]
    %v4080 = vld [vmem:[#allocation14 + $0x388] sm:$0xff]
    %v4081 = vld [vmem:[#allocation14 + $0x390] sm:$0xff]
    %v4082 = vld [vmem:[#allocation14 + $0x398] sm:$0xff]
    %v4083 = vld [vmem:[#allocation14 + $0x3a0] sm:$0xff]
    %v4084 = vld [vmem:[#allocation14 + $0x3a8] sm:$0xff]
    %v4085 = vld [vmem:[#allocation14 + $0x3b0] sm:$0xff]
    %v4086 = vld [vmem:[#allocation14 + $0x3b8] sm:$0xff]
    %v4087 = vld [vmem:[#allocation14 + $0x3c0] sm:$0xff]
    %v4088 = vld [vmem:[#allocation14 + $0x3c8] sm:$0xff]
    %v4089 = vld [vmem:[#allocation14 + $0x3d0] sm:$0xff]
    %v4090 = vld [vmem:[#allocation14 + $0x3d8] sm:$0xff]
    %v4091 = vld [vmem:[#allocation14 + $0x3e0] sm:$0xff]
    %v4092 = vld [vmem:[#allocation14 + $0x3e8] sm:$0xff]
    %v4093 = vld [vmem:[#allocation14 + $0x3f0] sm:$0xff]
    %v4094 = vld [vmem:[#allocation14 + $0x3f8] sm:$0xff]
    %v4096 = vperm.slane %v2661, 0
    %v4097 = vperm.slane %v2661, 1
    %v4228 = vunpack.c.l.b16 %v3967
    %v4229 = vunpack.c.h.b16 %v3967
    %v4230 = vunpack.c.l.b16 %v3968
    %v4231 = vunpack.c.h.b16 %v3968
    %v4232 = vunpack.c.l.b16 %v3969
    %v4233 = vunpack.c.h.b16 %v3969
    %v4234 = vunpack.c.l.b16 %v3970
    %v4235 = vunpack.c.h.b16 %v3970
    %v4236 = vunpack.c.l.b16 %v3971
    %v4237 = vunpack.c.h.b16 %v3971
    %v4238 = vunpack.c.l.b16 %v3972
    %v4239 = vunpack.c.h.b16 %v3972
    %v4240 = vunpack.c.l.b16 %v3973
    %v4241 = vunpack.c.h.b16 %v3973
    %v4242 = vunpack.c.l.b16 %v3974
    %v4243 = vunpack.c.h.b16 %v3974
    %v4244 = vunpack.c.l.b16 %v3975
    %v4245 = vunpack.c.h.b16 %v3975
    %v4246 = vunpack.c.l.b16 %v3976
    %v4247 = vunpack.c.h.b16 %v3976
    %v4248 = vunpack.c.l.b16 %v3977
    %v4249 = vunpack.c.h.b16 %v3977
    %v4250 = vunpack.c.l.b16 %v3978
    %v4251 = vunpack.c.h.b16 %v3978
    %v4252 = vunpack.c.l.b16 %v3979
    %v4253 = vunpack.c.h.b16 %v3979
    %v4254 = vunpack.c.l.b16 %v3980
    %v4255 = vunpack.c.h.b16 %v3980
    %v4256 = vunpack.c.l.b16 %v3981
    %v4257 = vunpack.c.h.b16 %v3981
    %v4258 = vunpack.c.l.b16 %v3982
    %v4259 = vunpack.c.h.b16 %v3982
    %v4260 = vunpack.c.l.b16 %v3983
    %v4261 = vunpack.c.h.b16 %v3983
    %v4262 = vunpack.c.l.b16 %v3984
    %v4263 = vunpack.c.h.b16 %v3984
    %v4264 = vunpack.c.l.b16 %v3985
    %v4265 = vunpack.c.h.b16 %v3985
    %v4266 = vunpack.c.l.b16 %v3986
    %v4267 = vunpack.c.h.b16 %v3986
    %v4268 = vunpack.c.l.b16 %v3987
    %v4269 = vunpack.c.h.b16 %v3987
    %v4270 = vunpack.c.l.b16 %v3988
    %v4271 = vunpack.c.h.b16 %v3988
    %v4272 = vunpack.c.l.b16 %v3989
    %v4273 = vunpack.c.h.b16 %v3989
    %v4274 = vunpack.c.l.b16 %v3990
    %v4275 = vunpack.c.h.b16 %v3990
    %v4276 = vunpack.c.l.b16 %v3991
    %v4277 = vunpack.c.h.b16 %v3991
    %v4278 = vunpack.c.l.b16 %v3992
    %v4279 = vunpack.c.h.b16 %v3992
    %v4280 = vunpack.c.l.b16 %v3993
    %v4281 = vunpack.c.h.b16 %v3993
    %v4282 = vunpack.c.l.b16 %v3994
    %v4283 = vunpack.c.h.b16 %v3994
    %v4284 = vunpack.c.l.b16 %v3995
    %v4285 = vunpack.c.h.b16 %v3995
    %v4286 = vunpack.c.l.b16 %v3996
    %v4287 = vunpack.c.h.b16 %v3996
    %v4288 = vunpack.c.l.b16 %v3997
    %v4289 = vunpack.c.h.b16 %v3997
    %v4290 = vunpack.c.l.b16 %v3998
    %v4291 = vunpack.c.h.b16 %v3998
    %v4292 = vunpack.c.l.b16 %v3999
    %v4293 = vunpack.c.h.b16 %v3999
    %v4294 = vunpack.c.l.b16 %v4000
    %v4295 = vunpack.c.h.b16 %v4000
    %v4296 = vunpack.c.l.b16 %v4001
    %v4297 = vunpack.c.h.b16 %v4001
    %v4298 = vunpack.c.l.b16 %v4002
    %v4299 = vunpack.c.h.b16 %v4002
    %v4300 = vunpack.c.l.b16 %v4003
    %v4301 = vunpack.c.h.b16 %v4003
    %v4302 = vunpack.c.l.b16 %v4004
    %v4303 = vunpack.c.h.b16 %v4004
    %v4304 = vunpack.c.l.b16 %v4005
    %v4305 = vunpack.c.h.b16 %v4005
    %v4306 = vunpack.c.l.b16 %v4006
    %v4307 = vunpack.c.h.b16 %v4006
    %v4308 = vunpack.c.l.b16 %v4007
    %v4309 = vunpack.c.h.b16 %v4007
    %v4310 = vunpack.c.l.b16 %v4008
    %v4311 = vunpack.c.h.b16 %v4008
    %v4312 = vunpack.c.l.b16 %v4009
    %v4313 = vunpack.c.h.b16 %v4009
    %v4314 = vunpack.c.l.b16 %v4010
    %v4315 = vunpack.c.h.b16 %v4010
    %v4316 = vunpack.c.l.b16 %v4011
    %v4317 = vunpack.c.h.b16 %v4011
    %v4318 = vunpack.c.l.b16 %v4012
    %v4319 = vunpack.c.h.b16 %v4012
    %v4320 = vunpack.c.l.b16 %v4013
    %v4321 = vunpack.c.h.b16 %v4013
    %v4322 = vunpack.c.l.b16 %v4014
    %v4323 = vunpack.c.h.b16 %v4014
    %v4324 = vunpack.c.l.b16 %v4015
    %v4325 = vunpack.c.h.b16 %v4015
    %v4326 = vunpack.c.l.b16 %v4016
    %v4327 = vunpack.c.h.b16 %v4016
    %v4328 = vunpack.c.l.b16 %v4017
    %v4329 = vunpack.c.h.b16 %v4017
    %v4330 = vunpack.c.l.b16 %v4018
    %v4331 = vunpack.c.h.b16 %v4018
    %v4332 = vunpack.c.l.b16 %v4019
    %v4333 = vunpack.c.h.b16 %v4019
    %v4334 = vunpack.c.l.b16 %v4020
    %v4335 = vunpack.c.h.b16 %v4020
    %v4336 = vunpack.c.l.b16 %v4021
    %v4337 = vunpack.c.h.b16 %v4021
    %v4338 = vunpack.c.l.b16 %v4022
    %v4339 = vunpack.c.h.b16 %v4022
    %v4340 = vunpack.c.l.b16 %v4023
    %v4341 = vunpack.c.h.b16 %v4023
    %v4342 = vunpack.c.l.b16 %v4024
    %v4343 = vunpack.c.h.b16 %v4024
    %v4344 = vunpack.c.l.b16 %v4025
    %v4345 = vunpack.c.h.b16 %v4025
    %v4346 = vunpack.c.l.b16 %v4026
    %v4347 = vunpack.c.h.b16 %v4026
    %v4348 = vunpack.c.l.b16 %v4027
    %v4349 = vunpack.c.h.b16 %v4027
    %v4350 = vunpack.c.l.b16 %v4028
    %v4351 = vunpack.c.h.b16 %v4028
    %v4352 = vunpack.c.l.b16 %v4029
    %v4353 = vunpack.c.h.b16 %v4029
    %v4354 = vunpack.c.l.b16 %v4030
    %v4355 = vunpack.c.h.b16 %v4030
    %v4356 = vunpack.c.l.b16 %v4031
    %v4357 = vunpack.c.h.b16 %v4031
    %v4358 = vunpack.c.l.b16 %v4032
    %v4359 = vunpack.c.h.b16 %v4032
    %v4360 = vunpack.c.l.b16 %v4033
    %v4361 = vunpack.c.h.b16 %v4033
    %v4362 = vunpack.c.l.b16 %v4034
    %v4363 = vunpack.c.h.b16 %v4034
    %v4364 = vunpack.c.l.b16 %v4035
    %v4365 = vunpack.c.h.b16 %v4035
    %v4366 = vunpack.c.l.b16 %v4036
    %v4367 = vunpack.c.h.b16 %v4036
    %v4368 = vunpack.c.l.b16 %v4037
    %v4369 = vunpack.c.h.b16 %v4037
    %v4370 = vunpack.c.l.b16 %v4038
    %v4371 = vunpack.c.h.b16 %v4038
    %v4372 = vunpack.c.l.b16 %v4039
    %v4373 = vunpack.c.h.b16 %v4039
    %v4374 = vunpack.c.l.b16 %v4040
    %v4375 = vunpack.c.h.b16 %v4040
    %v4376 = vunpack.c.l.b16 %v4041
    %v4377 = vunpack.c.h.b16 %v4041
    %v4378 = vunpack.c.l.b16 %v4042
    %v4379 = vunpack.c.h.b16 %v4042
    %v4380 = vunpack.c.l.b16 %v4043
    %v4381 = vunpack.c.h.b16 %v4043
    %v4382 = vunpack.c.l.b16 %v4044
    %v4383 = vunpack.c.h.b16 %v4044
    %v4384 = vunpack.c.l.b16 %v4045
    %v4385 = vunpack.c.h.b16 %v4045
    %v4386 = vunpack.c.l.b16 %v4046
    %v4387 = vunpack.c.h.b16 %v4046
    %v4388 = vunpack.c.l.b16 %v4047
    %v4389 = vunpack.c.h.b16 %v4047
    %v4390 = vunpack.c.l.b16 %v4048
    %v4391 = vunpack.c.h.b16 %v4048
    %v4392 = vunpack.c.l.b16 %v4049
    %v4393 = vunpack.c.h.b16 %v4049
    %v4394 = vunpack.c.l.b16 %v4050
    %v4395 = vunpack.c.h.b16 %v4050
    %v4396 = vunpack.c.l.b16 %v4051
    %v4397 = vunpack.c.h.b16 %v4051
    %v4398 = vunpack.c.l.b16 %v4052
    %v4399 = vunpack.c.h.b16 %v4052
    %v4400 = vunpack.c.l.b16 %v4053
    %v4401 = vunpack.c.h.b16 %v4053
    %v4402 = vunpack.c.l.b16 %v4054
    %v4403 = vunpack.c.h.b16 %v4054
    %v4404 = vunpack.c.l.b16 %v4055
    %v4405 = vunpack.c.h.b16 %v4055
    %v4406 = vunpack.c.l.b16 %v4056
    %v4407 = vunpack.c.h.b16 %v4056
    %v4408 = vunpack.c.l.b16 %v4057
    %v4409 = vunpack.c.h.b16 %v4057
    %v4410 = vunpack.c.l.b16 %v4058
    %v4411 = vunpack.c.h.b16 %v4058
    %v4412 = vunpack.c.l.b16 %v4059
    %v4413 = vunpack.c.h.b16 %v4059
    %v4414 = vunpack.c.l.b16 %v4060
    %v4415 = vunpack.c.h.b16 %v4060
    %v4416 = vunpack.c.l.b16 %v4061
    %v4417 = vunpack.c.h.b16 %v4061
    %v4418 = vunpack.c.l.b16 %v4062
    %v4419 = vunpack.c.h.b16 %v4062
    %v4420 = vunpack.c.l.b16 %v4063
    %v4421 = vunpack.c.h.b16 %v4063
    %v4422 = vunpack.c.l.b16 %v4064
    %v4423 = vunpack.c.h.b16 %v4064
    %v4424 = vunpack.c.l.b16 %v4065
    %v4425 = vunpack.c.h.b16 %v4065
    %v4426 = vunpack.c.l.b16 %v4066
    %v4427 = vunpack.c.h.b16 %v4066
    %v4428 = vunpack.c.l.b16 %v4067
    %v4429 = vunpack.c.h.b16 %v4067
    %v4430 = vunpack.c.l.b16 %v4068
    %v4431 = vunpack.c.h.b16 %v4068
    %v4432 = vunpack.c.l.b16 %v4069
    %v4433 = vunpack.c.h.b16 %v4069
    %v4434 = vunpack.c.l.b16 %v4070
    %v4435 = vunpack.c.h.b16 %v4070
    %v4436 = vunpack.c.l.b16 %v4071
    %v4437 = vunpack.c.h.b16 %v4071
    %v4438 = vunpack.c.l.b16 %v4072
    %v4439 = vunpack.c.h.b16 %v4072
    %v4440 = vunpack.c.l.b16 %v4073
    %v4441 = vunpack.c.h.b16 %v4073
    %v4442 = vunpack.c.l.b16 %v4074
    %v4443 = vunpack.c.h.b16 %v4074
    %v4444 = vunpack.c.l.b16 %v4075
    %v4445 = vunpack.c.h.b16 %v4075
    %v4446 = vunpack.c.l.b16 %v4076
    %v4447 = vunpack.c.h.b16 %v4076
    %v4448 = vunpack.c.l.b16 %v4077
    %v4449 = vunpack.c.h.b16 %v4077
    %v4450 = vunpack.c.l.b16 %v4078
    %v4451 = vunpack.c.h.b16 %v4078
    %v4452 = vunpack.c.l.b16 %v4079
    %v4453 = vunpack.c.h.b16 %v4079
    %v4454 = vunpack.c.l.b16 %v4080
    %v4455 = vunpack.c.h.b16 %v4080
    %v4456 = vunpack.c.l.b16 %v4081
    %v4457 = vunpack.c.h.b16 %v4081
    %v4458 = vunpack.c.l.b16 %v4082
    %v4459 = vunpack.c.h.b16 %v4082
    %v4460 = vunpack.c.l.b16 %v4083
    %v4461 = vunpack.c.h.b16 %v4083
    %v4462 = vunpack.c.l.b16 %v4084
    %v4463 = vunpack.c.h.b16 %v4084
    %v4464 = vunpack.c.l.b16 %v4085
    %v4465 = vunpack.c.h.b16 %v4085
    %v4466 = vunpack.c.l.b16 %v4086
    %v4467 = vunpack.c.h.b16 %v4086
    %v4468 = vunpack.c.l.b16 %v4087
    %v4469 = vunpack.c.h.b16 %v4087
    %v4470 = vunpack.c.l.b16 %v4088
    %v4471 = vunpack.c.h.b16 %v4088
    %v4472 = vunpack.c.l.b16 %v4089
    %v4473 = vunpack.c.h.b16 %v4089
    %v4474 = vunpack.c.l.b16 %v4090
    %v4475 = vunpack.c.h.b16 %v4090
    %v4476 = vunpack.c.l.b16 %v4091
    %v4477 = vunpack.c.h.b16 %v4091
    %v4478 = vunpack.c.l.b16 %v4092
    %v4479 = vunpack.c.h.b16 %v4092
    %v4480 = vunpack.c.l.b16 %v4093
    %v4481 = vunpack.c.h.b16 %v4093
    %v4482 = vunpack.c.l.b16 %v4094
    %v4483 = vunpack.c.h.b16 %v4094
    %v4484 = vpack.c.b16 %v4230, %v4228
    %v4485 = vpack.c.b16 %v4231, %v4229
    %v4486 = vpack.c.b16 %v4234, %v4232
    %v4487 = vpack.c.b16 %v4235, %v4233
    %v4488 = vpack.c.b16 %v4238, %v4236
    %v4489 = vpack.c.b16 %v4239, %v4237
    %v4490 = vpack.c.b16 %v4242, %v4240
    %v4491 = vpack.c.b16 %v4243, %v4241
    %v4492 = vpack.c.b16 %v4246, %v4244
    %v4493 = vpack.c.b16 %v4247, %v4245
    %v4494 = vpack.c.b16 %v4250, %v4248
    %v4495 = vpack.c.b16 %v4251, %v4249
    %v4496 = vpack.c.b16 %v4254, %v4252
    %v4497 = vpack.c.b16 %v4255, %v4253
    %v4498 = vpack.c.b16 %v4258, %v4256
    %v4499 = vpack.c.b16 %v4259, %v4257
    %v4500 = vpack.c.b16 %v4262, %v4260
    %v4501 = vpack.c.b16 %v4263, %v4261
    %v4502 = vpack.c.b16 %v4266, %v4264
    %v4503 = vpack.c.b16 %v4267, %v4265
    %v4504 = vpack.c.b16 %v4270, %v4268
    %v4505 = vpack.c.b16 %v4271, %v4269
    %v4506 = vpack.c.b16 %v4274, %v4272
    %v4507 = vpack.c.b16 %v4275, %v4273
    %v4508 = vpack.c.b16 %v4278, %v4276
    %v4509 = vpack.c.b16 %v4279, %v4277
    %v4510 = vpack.c.b16 %v4282, %v4280
    %v4511 = vpack.c.b16 %v4283, %v4281
    %v4512 = vpack.c.b16 %v4286, %v4284
    %v4513 = vpack.c.b16 %v4287, %v4285
    %v4514 = vpack.c.b16 %v4290, %v4288
    %v4515 = vpack.c.b16 %v4291, %v4289
    %v4516 = vpack.c.b16 %v4294, %v4292
    %v4517 = vpack.c.b16 %v4295, %v4293
    %v4518 = vpack.c.b16 %v4298, %v4296
    %v4519 = vpack.c.b16 %v4299, %v4297
    %v4520 = vpack.c.b16 %v4302, %v4300
    %v4521 = vpack.c.b16 %v4303, %v4301
    %v4522 = vpack.c.b16 %v4306, %v4304
    %v4523 = vpack.c.b16 %v4307, %v4305
    %v4524 = vpack.c.b16 %v4310, %v4308
    %v4525 = vpack.c.b16 %v4311, %v4309
    %v4526 = vpack.c.b16 %v4314, %v4312
    %v4527 = vpack.c.b16 %v4315, %v4313
    %v4528 = vpack.c.b16 %v4318, %v4316
    %v4529 = vpack.c.b16 %v4319, %v4317
    %v4530 = vpack.c.b16 %v4322, %v4320
    %v4531 = vpack.c.b16 %v4323, %v4321
    %v4532 = vpack.c.b16 %v4326, %v4324
    %v4533 = vpack.c.b16 %v4327, %v4325
    %v4534 = vpack.c.b16 %v4330, %v4328
    %v4535 = vpack.c.b16 %v4331, %v4329
    %v4536 = vpack.c.b16 %v4334, %v4332
    %v4537 = vpack.c.b16 %v4335, %v4333
    %v4538 = vpack.c.b16 %v4338, %v4336
    %v4539 = vpack.c.b16 %v4339, %v4337
    %v4540 = vpack.c.b16 %v4342, %v4340
    %v4541 = vpack.c.b16 %v4343, %v4341
    %v4542 = vpack.c.b16 %v4346, %v4344
    %v4543 = vpack.c.b16 %v4347, %v4345
    %v4544 = vpack.c.b16 %v4350, %v4348
    %v4545 = vpack.c.b16 %v4351, %v4349
    %v4546 = vpack.c.b16 %v4354, %v4352
    %v4547 = vpack.c.b16 %v4355, %v4353
    %v4548 = vpack.c.b16 %v4358, %v4356
    %v4549 = vpack.c.b16 %v4359, %v4357
    %v4550 = vpack.c.b16 %v4362, %v4360
    %v4551 = vpack.c.b16 %v4363, %v4361
    %v4552 = vpack.c.b16 %v4366, %v4364
    %v4553 = vpack.c.b16 %v4367, %v4365
    %v4554 = vpack.c.b16 %v4370, %v4368
    %v4555 = vpack.c.b16 %v4371, %v4369
    %v4556 = vpack.c.b16 %v4374, %v4372
    %v4557 = vpack.c.b16 %v4375, %v4373
    %v4558 = vpack.c.b16 %v4378, %v4376
    %v4559 = vpack.c.b16 %v4379, %v4377
    %v4560 = vpack.c.b16 %v4382, %v4380
    %v4561 = vpack.c.b16 %v4383, %v4381
    %v4562 = vpack.c.b16 %v4386, %v4384
    %v4563 = vpack.c.b16 %v4387, %v4385
    %v4564 = vpack.c.b16 %v4390, %v4388
    %v4565 = vpack.c.b16 %v4391, %v4389
    %v4566 = vpack.c.b16 %v4394, %v4392
    %v4567 = vpack.c.b16 %v4395, %v4393
    %v4568 = vpack.c.b16 %v4398, %v4396
    %v4569 = vpack.c.b16 %v4399, %v4397
    %v4570 = vpack.c.b16 %v4402, %v4400
    %v4571 = vpack.c.b16 %v4403, %v4401
    %v4572 = vpack.c.b16 %v4406, %v4404
    %v4573 = vpack.c.b16 %v4407, %v4405
    %v4574 = vpack.c.b16 %v4410, %v4408
    %v4575 = vpack.c.b16 %v4411, %v4409
    %v4576 = vpack.c.b16 %v4414, %v4412
    %v4577 = vpack.c.b16 %v4415, %v4413
    %v4578 = vpack.c.b16 %v4418, %v4416
    %v4579 = vpack.c.b16 %v4419, %v4417
    %v4580 = vpack.c.b16 %v4422, %v4420
    %v4581 = vpack.c.b16 %v4423, %v4421
    %v4582 = vpack.c.b16 %v4426, %v4424
    %v4583 = vpack.c.b16 %v4427, %v4425
    %v4584 = vpack.c.b16 %v4430, %v4428
    %v4585 = vpack.c.b16 %v4431, %v4429
    %v4586 = vpack.c.b16 %v4434, %v4432
    %v4587 = vpack.c.b16 %v4435, %v4433
    %v4588 = vpack.c.b16 %v4438, %v4436
    %v4589 = vpack.c.b16 %v4439, %v4437
    %v4590 = vpack.c.b16 %v4442, %v4440
    %v4591 = vpack.c.b16 %v4443, %v4441
    %v4592 = vpack.c.b16 %v4446, %v4444
    %v4593 = vpack.c.b16 %v4447, %v4445
    %v4594 = vpack.c.b16 %v4450, %v4448
    %v4595 = vpack.c.b16 %v4451, %v4449
    %v4596 = vpack.c.b16 %v4454, %v4452
    %v4597 = vpack.c.b16 %v4455, %v4453
    %v4598 = vpack.c.b16 %v4458, %v4456
    %v4599 = vpack.c.b16 %v4459, %v4457
    %v4600 = vpack.c.b16 %v4462, %v4460
    %v4601 = vpack.c.b16 %v4463, %v4461
    %v4602 = vpack.c.b16 %v4466, %v4464
    %v4603 = vpack.c.b16 %v4467, %v4465
    %v4604 = vpack.c.b16 %v4470, %v4468
    %v4605 = vpack.c.b16 %v4471, %v4469
    %v4606 = vpack.c.b16 %v4474, %v4472
    %v4607 = vpack.c.b16 %v4475, %v4473
    %v4608 = vpack.c.b16 %v4478, %v4476
    %v4609 = vpack.c.b16 %v4479, %v4477
    %v4610 = vpack.c.b16 %v4482, %v4480
    %v4611 = vpack.c.b16 %v4483, %v4481
    %4740 = vmatpush.bf16.msra.mxu0 %v4498
    %4741 = vmatpush.bf16.msra.mxu0 %v4496
    %4742 = vmatpush.bf16.msra.mxu0 %v4494
    %4743 = vmatpush.bf16.msra.mxu0 %v4492
    %4744 = vmatpush.bf16.msra.mxu0 %v4490
    %4745 = vmatpush.bf16.msra.mxu0 %v4488
    %4746 = vmatpush.bf16.msra.mxu0 %v4486
    %4747 = vmatpush.bf16.msra.mxu0 %v4484
    %4748 = vmatmul.bf16.gmra.mxu0 %v3959
    %v4749 = vpop.f32.mrf.mxu0
    %v4750 = vadd.f32 %v4096, %v4749
    %v4751 = vpop.f32.mrf.mxu0
    %4752 = vdwg.mxu0
    %4753 = vmatpush.bf16.msra.mxu0 %v4514
    %4754 = vmatpush.bf16.msra.mxu0 %v4512
    %4755 = vmatpush.bf16.msra.mxu0 %v4510
    %4756 = vmatpush.bf16.msra.mxu0 %v4508
    %4757 = vmatpush.bf16.msra.mxu0 %v4506
    %4758 = vmatpush.bf16.msra.mxu0 %v4504
    %4759 = vmatpush.bf16.msra.mxu0 %v4502
    %4760 = vmatpush.bf16.msra.mxu0 %v4500
    %4761 = vmatmul.bf16.gmra.mxu0 %v3960
    %v4762 = vpop.f32.mrf.mxu0
    %v4763 = vadd.f32 %v4750, %v4762
    %v4764 = vpop.f32.mrf.mxu0
    %4765 = vdwg.mxu0
    %4766 = vmatpush.bf16.msra.mxu0 %v4530
    %4767 = vmatpush.bf16.msra.mxu0 %v4528
    %4768 = vmatpush.bf16.msra.mxu0 %v4526
    %4769 = vmatpush.bf16.msra.mxu0 %v4524
    %4770 = vmatpush.bf16.msra.mxu0 %v4522
    %4771 = vmatpush.bf16.msra.mxu0 %v4520
    %4772 = vmatpush.bf16.msra.mxu0 %v4518
    %4773 = vmatpush.bf16.msra.mxu0 %v4516
    %4774 = vmatmul.bf16.gmra.mxu0 %v3961
    %v4775 = vpop.f32.mrf.mxu0
    %v4776 = vadd.f32 %v4763, %v4775
    %v4777 = vpop.f32.mrf.mxu0
    %4778 = vdwg.mxu0
    %4779 = vmatpush.bf16.msra.mxu0 %v4546
    %4780 = vmatpush.bf16.msra.mxu0 %v4544
    %4781 = vmatpush.bf16.msra.mxu0 %v4542
    %4782 = vmatpush.bf16.msra.mxu0 %v4540
    %4783 = vmatpush.bf16.msra.mxu0 %v4538
    %4784 = vmatpush.bf16.msra.mxu0 %v4536
    %4785 = vmatpush.bf16.msra.mxu0 %v4534
    %4786 = vmatpush.bf16.msra.mxu0 %v4532
    %4787 = vmatmul.bf16.gmra.mxu0 %v3962
    %v4788 = vpop.f32.mrf.mxu0
    %v4789 = vadd.f32 %v4776, %v4788
    %v4790 = vpop.f32.mrf.mxu0
    %4791 = vdwg.mxu0
    %4792 = vmatpush.bf16.msra.mxu0 %v4562
    %4793 = vmatpush.bf16.msra.mxu0 %v4560
    %4794 = vmatpush.bf16.msra.mxu0 %v4558
    %4795 = vmatpush.bf16.msra.mxu0 %v4556
    %4796 = vmatpush.bf16.msra.mxu0 %v4554
    %4797 = vmatpush.bf16.msra.mxu0 %v4552
    %4798 = vmatpush.bf16.msra.mxu0 %v4550
    %4799 = vmatpush.bf16.msra.mxu0 %v4548
    %4800 = vmatmul.bf16.gmra.mxu0 %v3963
    %v4801 = vpop.f32.mrf.mxu0
    %v4802 = vadd.f32 %v4789, %v4801
    %v4803 = vpop.f32.mrf.mxu0
    %4804 = vdwg.mxu0
    %4805 = vmatpush.bf16.msra.mxu0 %v4578
    %4806 = vmatpush.bf16.msra.mxu0 %v4576
    %4807 = vmatpush.bf16.msra.mxu0 %v4574
    %4808 = vmatpush.bf16.msra.mxu0 %v4572
    %4809 = vmatpush.bf16.msra.mxu0 %v4570
    %4810 = vmatpush.bf16.msra.mxu0 %v4568
    %4811 = vmatpush.bf16.msra.mxu0 %v4566
    %4812 = vmatpush.bf16.msra.mxu0 %v4564
    %4813 = vmatmul.bf16.gmra.mxu0 %v3964
    %v4814 = vpop.f32.mrf.mxu0
    %v4815 = vadd.f32 %v4802, %v4814
    %v4816 = vpop.f32.mrf.mxu0
    %4817 = vdwg.mxu0
    %4818 = vmatpush.bf16.msra.mxu0 %v4594
    %4819 = vmatpush.bf16.msra.mxu0 %v4592
    %4820 = vmatpush.bf16.msra.mxu0 %v4590
    %4821 = vmatpush.bf16.msra.mxu0 %v4588
    %4822 = vmatpush.bf16.msra.mxu0 %v4586
    %4823 = vmatpush.bf16.msra.mxu0 %v4584
    %4824 = vmatpush.bf16.msra.mxu0 %v4582
    %4825 = vmatpush.bf16.msra.mxu0 %v4580
    %4826 = vmatmul.bf16.gmra.mxu0 %v3965
    %v4827 = vpop.f32.mrf.mxu0
    %v4828 = vadd.f32 %v4815, %v4827
    %v4829 = vpop.f32.mrf.mxu0
    %4830 = vdwg.mxu0
    %4831 = vmatpush.bf16.msra.mxu0 %v4610
    %4832 = vmatpush.bf16.msra.mxu0 %v4608
    %4833 = vmatpush.bf16.msra.mxu0 %v4606
    %4834 = vmatpush.bf16.msra.mxu0 %v4604
    %4835 = vmatpush.bf16.msra.mxu0 %v4602
    %4836 = vmatpush.bf16.msra.mxu0 %v4600
    %4837 = vmatpush.bf16.msra.mxu0 %v4598
    %4838 = vmatpush.bf16.msra.mxu0 %v4596
    %4839 = vmatmul.bf16.gmra.mxu0 %v3966
    %v4840 = vpop.f32.mrf.mxu0
    %v4841 = vadd.f32 %v4828, %v4840
    %v4842 = vpop.f32.mrf.mxu0
    %4843 = vdwg.mxu0
    %4844 = vmatpush.bf16.msra.mxu0 %v4499
    %4845 = vmatpush.bf16.msra.mxu0 %v4497
    %4846 = vmatpush.bf16.msra.mxu0 %v4495
    %4847 = vmatpush.bf16.msra.mxu0 %v4493
    %4848 = vmatpush.bf16.msra.mxu0 %v4491
    %4849 = vmatpush.bf16.msra.mxu0 %v4489
    %4850 = vmatpush.bf16.msra.mxu0 %v4487
    %4851 = vmatpush.bf16.msra.mxu0 %v4485
    %4852 = vmatmul.bf16.gmra.mxu0 %v3959
    %v4853 = vpop.f32.mrf.mxu0
    %v4854 = vadd.f32 %v4097, %v4853
    %v4855 = vpop.f32.mrf.mxu0
    %4856 = vdwg.mxu0
    %4857 = vmatpush.bf16.msra.mxu0 %v4515
    %4858 = vmatpush.bf16.msra.mxu0 %v4513
    %4859 = vmatpush.bf16.msra.mxu0 %v4511
    %4860 = vmatpush.bf16.msra.mxu0 %v4509
    %4861 = vmatpush.bf16.msra.mxu0 %v4507
    %4862 = vmatpush.bf16.msra.mxu0 %v4505
    %4863 = vmatpush.bf16.msra.mxu0 %v4503
    %4864 = vmatpush.bf16.msra.mxu0 %v4501
    %4865 = vmatmul.bf16.gmra.mxu0 %v3960
    %v4866 = vpop.f32.mrf.mxu0
    %v4867 = vadd.f32 %v4854, %v4866
    %v4868 = vpop.f32.mrf.mxu0
    %4869 = vdwg.mxu0
    %4870 = vmatpush.bf16.msra.mxu0 %v4531
    %4871 = vmatpush.bf16.msra.mxu0 %v4529
    %4872 = vmatpush.bf16.msra.mxu0 %v4527
    %4873 = vmatpush.bf16.msra.mxu0 %v4525
    %4874 = vmatpush.bf16.msra.mxu0 %v4523
    %4875 = vmatpush.bf16.msra.mxu0 %v4521
    %4876 = vmatpush.bf16.msra.mxu0 %v4519
    %4877 = vmatpush.bf16.msra.mxu0 %v4517
    %4878 = vmatmul.bf16.gmra.mxu0 %v3961
    %v4879 = vpop.f32.mrf.mxu0
    %v4880 = vadd.f32 %v4867, %v4879
    %v4881 = vpop.f32.mrf.mxu0
    %4882 = vdwg.mxu0
    %4883 = vmatpush.bf16.msra.mxu0 %v4547
    %4884 = vmatpush.bf16.msra.mxu0 %v4545
    %4885 = vmatpush.bf16.msra.mxu0 %v4543
    %4886 = vmatpush.bf16.msra.mxu0 %v4541
    %4887 = vmatpush.bf16.msra.mxu0 %v4539
    %4888 = vmatpush.bf16.msra.mxu0 %v4537
    %4889 = vmatpush.bf16.msra.mxu0 %v4535
    %4890 = vmatpush.bf16.msra.mxu0 %v4533
    %4891 = vmatmul.bf16.gmra.mxu0 %v3962
    %v4892 = vpop.f32.mrf.mxu0
    %v4893 = vadd.f32 %v4880, %v4892
    %v4894 = vpop.f32.mrf.mxu0
    %4895 = vdwg.mxu0
    %4896 = vmatpush.bf16.msra.mxu0 %v4563
    %4897 = vmatpush.bf16.msra.mxu0 %v4561
    %4898 = vmatpush.bf16.msra.mxu0 %v4559
    %4899 = vmatpush.bf16.msra.mxu0 %v4557
    %4900 = vmatpush.bf16.msra.mxu0 %v4555
    %4901 = vmatpush.bf16.msra.mxu0 %v4553
    %4902 = vmatpush.bf16.msra.mxu0 %v4551
    %4903 = vmatpush.bf16.msra.mxu0 %v4549
    %4904 = vmatmul.bf16.gmra.mxu0 %v3963
    %v4905 = vpop.f32.mrf.mxu0
    %v4906 = vadd.f32 %v4893, %v4905
    %v4907 = vpop.f32.mrf.mxu0
    %4908 = vdwg.mxu0
    %4909 = vmatpush.bf16.msra.mxu0 %v4579
    %4910 = vmatpush.bf16.msra.mxu0 %v4577
    %4911 = vmatpush.bf16.msra.mxu0 %v4575
    %4912 = vmatpush.bf16.msra.mxu0 %v4573
    %4913 = vmatpush.bf16.msra.mxu0 %v4571
    %4914 = vmatpush.bf16.msra.mxu0 %v4569
    %4915 = vmatpush.bf16.msra.mxu0 %v4567
    %4916 = vmatpush.bf16.msra.mxu0 %v4565
    %4917 = vmatmul.bf16.gmra.mxu0 %v3964
    %v4918 = vpop.f32.mrf.mxu0
    %v4919 = vadd.f32 %v4906, %v4918
    %v4920 = vpop.f32.mrf.mxu0
    %4921 = vdwg.mxu0
    %4922 = vmatpush.bf16.msra.mxu0 %v4595
    %4923 = vmatpush.bf16.msra.mxu0 %v4593
    %4924 = vmatpush.bf16.msra.mxu0 %v4591
    %4925 = vmatpush.bf16.msra.mxu0 %v4589
    %4926 = vmatpush.bf16.msra.mxu0 %v4587
    %4927 = vmatpush.bf16.msra.mxu0 %v4585
    %4928 = vmatpush.bf16.msra.mxu0 %v4583
    %4929 = vmatpush.bf16.msra.mxu0 %v4581
    %4930 = vmatmul.bf16.gmra.mxu0 %v3965
    %v4931 = vpop.f32.mrf.mxu0
    %v4932 = vadd.f32 %v4919, %v4931
    %v4933 = vpop.f32.mrf.mxu0
    %4934 = vdwg.mxu0
    %4935 = vmatpush.bf16.msra.mxu0 %v4611
    %4936 = vmatpush.bf16.msra.mxu0 %v4609
    %4937 = vmatpush.bf16.msra.mxu0 %v4607
    %4938 = vmatpush.bf16.msra.mxu0 %v4605
    %4939 = vmatpush.bf16.msra.mxu0 %v4603
    %4940 = vmatpush.bf16.msra.mxu0 %v4601
    %4941 = vmatpush.bf16.msra.mxu0 %v4599
    %4942 = vmatpush.bf16.msra.mxu0 %v4597
    %4943 = vmatmul.bf16.gmra.mxu0 %v3966
    %v4944 = vpop.f32.mrf.mxu0
    %v4945 = vadd.f32 %v4932, %v4944
    %v4946 = vpop.f32.mrf.mxu0
    %4947 = vdwg.mxu0
    %v4948 = vadd.f32 %v2954, %v4841
    %v4949 = vadd.f32 %v2955, %v4945
    %v4950 = vadd.f32 %v4948, %v4949
    %4951 = vadd.xlane.f32.xlu0 %v4950
    %v4952 = vpop.xlane.xlu0 %4951
    %v4953 = vmul.f32 %v4952, %v587
    %v4954 = vsub.f32 %v4948, %v4953
    %v4955 = vsub.f32 %v4949, %v4953
    %v4956 = vmul.f32 %v4954, %v4954
    %v4957 = vmul.f32 %v4955, %v4955
    %v4958 = vadd.f32 %v4956, %v4957
    %4959 = vadd.xlane.f32.xlu0 %v4958
    %v4960 = vpop.xlane.xlu0 %4959
    %v4961 = vmul.f32 %v4960, %v587
    %v4962 = vadd.f32 %v4961, 1e-05
    %v4963 = vrsqrt.pop %v4962
    %v4964 = vmul.f32 %v4963, %v4962
    %v4965 = vmul.f32 %v4964, %v4963
    %v4966 = vmul.f32 0.5, %v4965
    %v4967 = vsub.f32 1.5, %v4966
    %v4968 = vmul.f32 %v4963, %v4967
    %vm4969 = vweird.f32 %v4962
    %vm4970 = vweird.f32 %v4963
    %vm4971 = vmor %vm4969, %vm4970
    %v4972 = vsel %vm4971, %v4963, %v4968
    %v4973 = vmul.f32 %v4954, %v4972
    %v4974 = vmul.f32 %v4955, %v4972
    %v4976 = vperm.slane %v2662, 0
    %v4977 = vperm.slane %v2662, 1
    %v4980 = vmul.f32 %v4973, %v4976
    %v4981 = vmul.f32 %v4974, %v4977
    %v4983 = vperm.slane %v2663, 0
    %v4984 = vperm.slane %v2663, 1
    %v4987 = vadd.f32 %v4980, %v4983
    %v4988 = vadd.f32 %v4981, %v4984
    %v4989 = vld [vmem:[#allocation17 + $0x2a] sm:$0x1]
    %v4990 = vld [vmem:[#allocation17 + $0x2b] sm:$0x1]
    %v4991 = vld [vmem:[#allocation17 + $0x2c] sm:$0x1]
    %v4992 = vpack.c.bf16 %v4987, %v4987
    %v4993 = vpack.c.bf16 %v4988, %v4988
    %v4994 = vld [vmem:[#allocation16] sm:$0xf]
    %v4995 = vld [vmem:[#allocation16 + $0x4] sm:$0xf]
    %v4996 = vld [vmem:[#allocation16 + $0x8] sm:$0xf]
    %v4997 = vld [vmem:[#allocation16 + $0xc] sm:$0xf]
    %v4998 = vld [vmem:[#allocation16 + $0x10] sm:$0xf]
    %v4999 = vld [vmem:[#allocation16 + $0x14] sm:$0xf]
    %v5000 = vld [vmem:[#allocation16 + $0x18] sm:$0xf]
    %v5001 = vld [vmem:[#allocation16 + $0x1c] sm:$0xf]
    %v5002 = vld [vmem:[#allocation16 + $0x20] sm:$0xf]
    %v5003 = vld [vmem:[#allocation16 + $0x24] sm:$0xf]
    %v5004 = vld [vmem:[#allocation16 + $0x28] sm:$0xf]
    %v5005 = vld [vmem:[#allocation16 + $0x2c] sm:$0xf]
    %v5006 = vld [vmem:[#allocation16 + $0x30] sm:$0xf]
    %v5007 = vld [vmem:[#allocation16 + $0x34] sm:$0xf]
    %v5008 = vld [vmem:[#allocation16 + $0x38] sm:$0xf]
    %v5009 = vld [vmem:[#allocation16 + $0x3c] sm:$0xf]
    %v5010 = vld [vmem:[#allocation16 + $0x40] sm:$0xf]
    %v5011 = vld [vmem:[#allocation16 + $0x44] sm:$0xf]
    %v5012 = vld [vmem:[#allocation16 + $0x48] sm:$0xf]
    %v5013 = vld [vmem:[#allocation16 + $0x4c] sm:$0xf]
    %v5014 = vld [vmem:[#allocation16 + $0x50] sm:$0xf]
    %v5015 = vld [vmem:[#allocation16 + $0x54] sm:$0xf]
    %v5016 = vld [vmem:[#allocation16 + $0x58] sm:$0xf]
    %v5017 = vld [vmem:[#allocation16 + $0x5c] sm:$0xf]
    %v5018 = vld [vmem:[#allocation16 + $0x60] sm:$0xf]
    %v5019 = vld [vmem:[#allocation16 + $0x64] sm:$0xf]
    %v5020 = vld [vmem:[#allocation16 + $0x68] sm:$0xf]
    %v5021 = vld [vmem:[#allocation16 + $0x6c] sm:$0xf]
    %v5022 = vld [vmem:[#allocation16 + $0x70] sm:$0xf]
    %v5023 = vld [vmem:[#allocation16 + $0x74] sm:$0xf]
    %v5024 = vld [vmem:[#allocation16 + $0x78] sm:$0xf]
    %v5025 = vld [vmem:[#allocation16 + $0x7c] sm:$0xf]
    %v5027 = vperm.slane %v4989, 0
    %v5061 = vunpack.c.l.b16 %v4994
    %v5062 = vunpack.c.l.b16 %v4995
    %v5063 = vunpack.c.l.b16 %v4996
    %v5064 = vunpack.c.l.b16 %v4997
    %v5065 = vunpack.c.l.b16 %v4998
    %v5066 = vunpack.c.l.b16 %v4999
    %v5067 = vunpack.c.l.b16 %v5000
    %v5068 = vunpack.c.l.b16 %v5001
    %v5069 = vunpack.c.l.b16 %v5002
    %v5070 = vunpack.c.l.b16 %v5003
    %v5071 = vunpack.c.l.b16 %v5004
    %v5072 = vunpack.c.l.b16 %v5005
    %v5073 = vunpack.c.l.b16 %v5006
    %v5074 = vunpack.c.l.b16 %v5007
    %v5075 = vunpack.c.l.b16 %v5008
    %v5076 = vunpack.c.l.b16 %v5009
    %v5077 = vunpack.c.l.b16 %v5010
    %v5078 = vunpack.c.l.b16 %v5011
    %v5079 = vunpack.c.l.b16 %v5012
    %v5080 = vunpack.c.l.b16 %v5013
    %v5081 = vunpack.c.l.b16 %v5014
    %v5082 = vunpack.c.l.b16 %v5015
    %v5083 = vunpack.c.l.b16 %v5016
    %v5084 = vunpack.c.l.b16 %v5017
    %v5085 = vunpack.c.l.b16 %v5018
    %v5086 = vunpack.c.l.b16 %v5019
    %v5087 = vunpack.c.l.b16 %v5020
    %v5088 = vunpack.c.l.b16 %v5021
    %v5089 = vunpack.c.l.b16 %v5022
    %v5090 = vunpack.c.l.b16 %v5023
    %v5091 = vunpack.c.l.b16 %v5024
    %v5092 = vunpack.c.l.b16 %v5025
    %v5093 = vpack.c.b16 %v5062, %v5061
    %v5094 = vpack.c.b16 %v5064, %v5063
    %v5095 = vpack.c.b16 %v5066, %v5065
    %v5096 = vpack.c.b16 %v5068, %v5067
    %v5097 = vpack.c.b16 %v5070, %v5069
    %v5098 = vpack.c.b16 %v5072, %v5071
    %v5099 = vpack.c.b16 %v5074, %v5073
    %v5100 = vpack.c.b16 %v5076, %v5075
    %v5101 = vpack.c.b16 %v5078, %v5077
    %v5102 = vpack.c.b16 %v5080, %v5079
    %v5103 = vpack.c.b16 %v5082, %v5081
    %v5104 = vpack.c.b16 %v5084, %v5083
    %v5105 = vpack.c.b16 %v5086, %v5085
    %v5106 = vpack.c.b16 %v5088, %v5087
    %v5107 = vpack.c.b16 %v5090, %v5089
    %v5108 = vpack.c.b16 %v5092, %v5091
    %5125 = vmatpush.bf16.msra.mxu0 %v5100
    %5126 = vmatpush.bf16.msra.mxu0 %v5099
    %5127 = vmatpush.bf16.msra.mxu0 %v5098
    %5128 = vmatpush.bf16.msra.mxu0 %v5097
    %5129 = vmatpush.bf16.msra.mxu0 %v5096
    %5130 = vmatpush.bf16.msra.mxu0 %v5095
    %5131 = vmatpush.bf16.msra.mxu0 %v5094
    %5132 = vmatpush.bf16.msra.mxu0 %v5093
    %5133 = vmatmul.bf16.gmra.mxu0 %v4992
    %v5134 = vpop.f32.mrf.mxu0
    %v5135 = vadd.f32 %v5027, %v5134
    %v5136 = vpop.f32.mrf.mxu0
    %5137 = vdwg.mxu0
    %5138 = vmatpush.bf16.msra.mxu0 %v5108
    %5139 = vmatpush.bf16.msra.mxu0 %v5107
    %5140 = vmatpush.bf16.msra.mxu0 %v5106
    %5141 = vmatpush.bf16.msra.mxu0 %v5105
    %5142 = vmatpush.bf16.msra.mxu0 %v5104
    %5143 = vmatpush.bf16.msra.mxu0 %v5103
    %5144 = vmatpush.bf16.msra.mxu0 %v5102
    %5145 = vmatpush.bf16.msra.mxu0 %v5101
    %5146 = vmatmul.bf16.gmra.mxu0 %v4993
    %v5147 = vpop.f32.mrf.mxu0
    %v5148 = vadd.f32 %v5135, %v5147
    %v5149 = vpop.f32.mrf.mxu0
    %5150 = vdwg.mxu0
    %5151 = vadd.xlane.f32.xlu0 %v5148
    %v5152 = vpop.xlane.xlu0 %5151
    %v5153 = vrcp.pop 128.0
    %v5154 = vmul.f32 128.0, %v5153
    %v5155 = vsub.f32 1.0, %v5154
    %v5156 = vmul.f32 %v5153, %v5155
    %v5157 = vadd.f32 %v5153, %v5156
    %vm5158 = vweird.f32 %v5153
    %v5159 = vsel %vm5158, %v5153, %v5157
    %v5160 = vmul.f32 %v5152, %v5159
    %v5161 = vsub.f32 %v5148, %v5160
    %v5162 = vmul.f32 %v5161, %v5161
    %5163 = vadd.xlane.f32.xlu0 %v5162
    %v5164 = vpop.xlane.xlu0 %5163
    %v5165 = vmul.f32 %v5164, %v5159
    %v5166 = vadd.f32 %v5165, 1e-05
    %v5167 = vrsqrt.pop %v5166
    %v5168 = vmul.f32 %v5167, %v5166
    %v5169 = vmul.f32 %v5168, %v5167
    %v5170 = vmul.f32 0.5, %v5169
    %v5171 = vsub.f32 1.5, %v5170
    %v5172 = vmul.f32 %v5167, %v5171
    %vm5173 = vweird.f32 %v5166
    %vm5174 = vweird.f32 %v5167
    %vm5175 = vmor %vm5173, %vm5174
    %v5176 = vsel %vm5175, %v5167, %v5172
    %v5177 = vmul.f32 %v5161, %v5176
    %v5179 = vperm.slane %v4990, 0
    %v5181 = vmul.f32 %v5177, %v5179
    %v5183 = vperm.slane %v4991, 0
    %v5185 = vadd.f32 %v5181, %v5183
    %v5186 = vmul.f32 %v5185, %v5185
    %5187 = vadd.xlane.f32.xlu0 %v5186
    %v5188 = vpop.xlane.xlu0 %5187
    %v5189 = vmax.f32 %v5188, 1e-24
    %v5190 = vrsqrt.pop %v5189
    %v5191 = vmul.f32 %v5190, %v5189
    %v5192 = vmul.f32 %v5191, %v5190
    %v5193 = vmul.f32 0.5, %v5192
    %v5194 = vsub.f32 1.5, %v5193
    %v5195 = vmul.f32 %v5190, %v5194
    %vm5196 = vweird.f32 %v5189
    %vm5197 = vweird.f32 %v5190
    %vm5198 = vmor %vm5196, %vm5197
    %v5199 = vsel %vm5198, %v5190, %v5195
    %v5200 = vmul.f32 %v5185, %v5199
    %5201 = vst [vmem:[#allocation19] sm:$0xff] %v5200
    // Predicated region
    $region82: #{tpu_custom_call.1} parent=1 // pred_check
      _
    $region83: #{tpu_custom_call.1} parent=1 // pred_check_branch
      %5203 = sbr.rel (0) target = $region85
    $region84: #{tpu_custom_call.1} parent=1 // pred_region
      %5205 = vsyncadd [#allocation4], 0
      %s5207 = sshll.u32 [#allocation19], 4
      %s5208 = int_to_ptr.vmem [resolvable:$true] %s5207
      %s5209 = sshll.u32 %s10, 4
      %s5210 = int_to_ptr.hbm [resolvable:$true] %s5209
      %5212 = dma.vmem_to_hbm [thread:$0]  %s5208, 128, %s5210, [#allocation4]
    $region85: #{tpu_custom_call.1} parent=1 // pred_fallthru
      _
    // Predicated region
    $region86: #{tpu_custom_call.1} parent=1 // pred_check
      _
    $region87: #{tpu_custom_call.1} parent=1 // pred_check_branch
      %5214 = sbr.rel (0) target = $region89
    $region88: #{tpu_custom_call.1} parent=1 // pred_region
      %5216 = dma.done [#allocation4], 128
    $region89: #{tpu_custom_call.1} parent=1 // pred_fallthru
      _
    %5217 = vsyncpa [#allocation3], 1
    %5218 = vsyncpa [#allocation6], 1
    %5219 = vsyncpa [#allocation9], 1
    %5220 = vsyncpa [#allocation12], 1
    %5221 = vsyncpa [#allocation15], 1
    %5222 = vsyncpa [#allocation18], 1
    %5223 = vsyncpa [#allocation4], 1

</llo_original>
